<compile_context>
chip_gen: v5e
topology: v5e:2x2
jax: 0.10.0
libtpu: 0.0.40
codegen_flags: <defaults>
</compile_context>

<pallas_src>
import math

import jax
import jax.numpy as jnp
from jax import lax
from jax.experimental import pallas as pl
from jax.experimental.pallas import tpu as pltpu


def _vmem_capacity_bytes():
    """Physical per-core VMEM, with a conservative (v7x, 64 MiB) fallback."""
    try:
        cap = getattr(pltpu.get_tpu_info(), "vmem_capacity_bytes", None)
        if cap:
            return int(cap)
    except Exception:
        pass
    return 64 * 2 ** 20


def _make_block_kernel(num_heads, head_dim, has_conv):
    f32, bf16 = jnp.float32, jnp.bfloat16
    H, Dh = num_heads, head_dim
    C2 = H * Dh

    def kernel(*refs):
        idx = 0
        x_ref = refs[idx]; idx += 1
        if has_conv:
            wc_ref, bc_ref = refs[idx], refs[idx + 1]; idx += 2
        we_ref, be_ref = refs[idx], refs[idx + 1]; idx += 2
        (mq_ref, bq_ref, mk_ref, bk_ref, mv_ref, bv_ref,
         wo_ref, bo_ref, mff_ref) = refs[idx:idx + 9]
        o_ref = refs[idx + 9]
        xt_scr = refs[idx + 10]                 # (C2, S) f32, persists across layer steps

        l = pl.program_id(1)
        S = x_ref.shape[-1]

        def mmT(w, a):                          # (Co,Ci) @ (Ci,S): bf16 MXU, f32 accum
            return jnp.dot(w, a.astype(bf16), preferred_element_type=f32)

        # -- first layer step of each batch element: conv(+BN+SiLU) + positional embed --
        @pl.when(l == 0)
        def _():
            if has_conv:
                z = mmT(wc_ref[...], x_ref[0]) + bc_ref[...]        # (C2, S), BN folded
                xin = z * (1.0 / (1.0 + jnp.exp(-z)))               # SiLU
            else:
                xin = x_ref[0].astype(f32)
            # positional linear with residual, channel-major: x = p + (We @ p + be)
            xt_scr[...] = xin + mmT(we_ref[...], xin) + be_ref[...]

        # ---- one transformer layer per grid step (weights streamed along grid axis 1) ----
        xt = xt_scr[...]                                            # (C2, S) f32
        qT = mmT(mq_ref[0], xt) + bq_ref[0]                         # fused q-Linear+in_proj (scale folded)
        kT = mmT(mk_ref[0], xt) + bk_ref[0]
        vT = mmT(mv_ref[0], xt) + bv_ref[0]

        # head split is a free leading-dim split; the only relayouts are batched
        # last-two-dim swaps (XLU slot) -- no per-head lane slicing, no concatenate.
        k3 = kT.reshape(H, Dh, S).astype(bf16)                      # (H, Dh, S)
        qh = jnp.swapaxes(qT.reshape(H, Dh, S), 1, 2).astype(bf16)  # (H, S, Dh)
        vh = jnp.swapaxes(vT.reshape(H, Dh, S), 1, 2).astype(bf16)  # (H, S, Dh)

        s = lax.dot_general(qh, k3, (((2,), (1,)), ((0,), (0,))),
                            preferred_element_type=f32)             # (H, S, S)
        s = s - jnp.max(s, axis=-1, keepdims=True)
        p = jnp.exp(s)
        inv = pl.reciprocal(jnp.sum(p, axis=-1, keepdims=True), approx=True)   # (H, S, 1)
        o = lax.dot_general(p.astype(bf16), vh, (((2,), (1,)), ((0,), (0,))),
                            preferred_element_type=f32)             # (H, S, Dh)
        o = o * inv                                                  # deferred softmax norm
        oT = jnp.swapaxes(o, 1, 2).reshape(C2, S)                    # heads -> channels (free merge)

        attn = mmT(wo_ref[0], oT) + bo_ref[0]                        # single big out-projection
        x1 = attn + xt                                               # residual 1
        x2 = mmT(mff_ref[0], x1) + x1                                # fused fc2(fc1(.)) + residual 2
        xt_scr[...] = x2

        @pl.when(l == pl.num_programs(1) - 1)
        def _():
            o_ref[0] = x2.astype(o_ref.dtype)                        # already NCHW-flattened layout

    return kernel


def fuse_transformer_block_params(params, num_heads, compute_dtype=jnp.bfloat16):
    """Algebraic parameter fusion, hoisted out of the per-call path (call once & reuse).

    All matrices are kept in the PyTorch (out, in) orientation because the kernel runs in
    channel-major (transposed) activation layout; biases become (C, 1) columns.
    """
    f32, cdt = jnp.float32, compute_dtype
    we = params["linear_w"].astype(f32)
    C2 = we.shape[0]
    Dh = C2 // num_heads
    has_conv = "conv_w" in params

    fused = {}
    if has_conv:
        g = params["bn_gamma"] / jnp.sqrt(params["bn_var"] + params["bn_eps"])
        wc = params["conv_w"].reshape(C2, -1).astype(f32)
        fused["wc"] = (wc * g[:, None]).astype(cdt)                              # conv * BN folded
        fused["bc"] = (params["bn_beta"] - params["bn_mean"] * g).reshape(C2, 1).astype(f32)
    fused["we"] = we.astype(cdt)
    fused["be"] = params["linear_b"].reshape(C2, 1).astype(f32)

    scale = 1.0 / math.sqrt(Dh)
    mq, bq, mk, bk, mv, bv, wo, bo, mff = [], [], [], [], [], [], [], [], []
    for lp in params["layers"]:
        in_w = lp["in_proj_w"].astype(f32)
        in_b = lp["in_proj_b"].astype(f32)
        mq.append((in_w[:C2] @ lp["wq"]) * scale)          # q Linear + in_proj fused, softmax scale folded
        bq.append(in_b[:C2].reshape(C2, 1) * scale)
        mk.append(in_w[C2:2 * C2] @ lp["wk"])
        bk.append(in_b[C2:2 * C2].reshape(C2, 1))
        mv.append(in_w[2 * C2:] @ lp["wv"])
        bv.append(in_b[2 * C2:].reshape(C2, 1))
        wo.append(lp["out_w"])
        bo.append(lp["out_b"].reshape(C2, 1))
        mff.append(lp["wfc2"] @ lp["wfc1"])                # fc2(fc1(.)) is linear -> one matrix
    st = lambda xs, dt: jnp.stack(xs).astype(dt)
    fused.update(mq=st(mq, cdt), bq=st(bq, f32), mk=st(mk, cdt), bk=st(bk, f32),
                 mv=st(mv, cdt), bv=st(bv, f32), wo=st(wo, cdt), bo=st(bo, f32),
                 mff=st(mff, cdt))
    return fused


def transformer_block_forward(x_bchw, fused, num_heads, num_layers):
    """x_bchw: (B, C1, W, H) float32, NCHW like the PyTorch module."""
    f32, bf16 = jnp.float32, jnp.bfloat16
    B, C1, W, Hs = x_bchw.shape
    C2 = fused["we"].shape[0]
    S = W * Hs
    H = num_heads
    Dh = C2 // H
    has_conv = "wc" in fused
    assert C2 % H == 0
    assert fused["mq"].shape[0] == num_layers
    if not has_conv:
        assert C1 == C2

    # Native NCHW layout IS the kernel's channel-major layout: only a free reshape here,
    # no HBM transpose. bf16 input when it feeds straight into the conv matmul.
    in_dtype = bf16 if has_conv else f32
    x = x_bchw.reshape(B, C1, S).astype(in_dtype)

    weight_names = (["wc", "bc"] if has_conv else []) + ["we", "be"]
    layer_names = ["mq", "bq", "mk", "bk", "mv", "bv", "wo", "bo", "mff"]
    args = [x] + [fused[n] for n in weight_names] + [fused[n] for n in layer_names]

    kernel = _make_block_kernel(H, Dh, has_conv)

    # ---- VMEM budget: single-buffered const weights + double-buffered per-layer weight
    # blocks + activation I/O blocks + scratch + rough in-kernel intermediates. ----
    const_b = sum(int(fused[n].size) * fused[n].dtype.itemsize for n in weight_names)
    layer_b = sum((int(fused[n].size) // int(fused[n].shape[0])) * fused[n].dtype.itemsize
                  for n in layer_names)
    io_b = 2 * (C1 * S * x.dtype.itemsize + C2 * S * 4)
    interm_b = (12 * C2 * S + 3 * H * S * S + 3 * H * S * Dh) * 4
    need = const_b + 2 * layer_b + io_b + C2 * S * 4 + interm_b
    cap = _vmem_capacity_bytes()
    vmem_limit = int(max(16 * 2 ** 20,
                         min(cap - 16 * 2 ** 20, max(32 * 2 ** 20, 2 * need))))

    def build_call(single_buffer_weights):
        def const_spec(a):
            nd = a.ndim
            idx_map = lambda i, l, _nd=nd: (0,) * _nd
            if single_buffer_weights:
                # block index never changes -> one resident copy instead of two
                return pl.BlockSpec(a.shape, idx_map, pipeline_mode=pl.Buffered(1))
            return pl.BlockSpec(a.shape, idx_map)

        def layer_spec(a):
            return pl.BlockSpec((1,) + a.shape[1:], lambda i, l: (l, 0, 0))

        in_specs = [pl.BlockSpec((1, C1, S), lambda i, l: (i, 0, 0))]
        in_specs += [const_spec(fused[n]) for n in weight_names]
        in_specs += [layer_spec(fused[n]) for n in layer_names]

        return pl.pallas_call(
            kernel,
            out_shape=jax.ShapeDtypeStruct((B, C2, S), f32),
            grid_spec=pltpu.PrefetchScalarGridSpec(
                num_scalar_prefetch=0,
                grid=(B, num_layers),                      # batch parallel, layers streamed
                in_specs=in_specs,
                out_specs=pl.BlockSpec((1, C2, S), lambda i, l: (i, 0, 0)),
                scratch_shapes=[pltpu.VMEM((C2, S), f32)],  # activation carried across layers
            ),
            compiler_params=pltpu.CompilerParams(
                dimension_semantics=("parallel", "arbitrary"),
                vmem_limit_bytes=vmem_limit,
            ),
        )

    use_single_buffer = hasattr(pl, "Buffered")
    try:
        out = build_call(use_single_buffer)(*args)
    except Exception:
        if not use_single_buffer:
            raise
        # pipeline_mode=pl.Buffered(1) unsupported on this jax/libtpu -> default buffering
        out = build_call(False)(*args)

    # output is already channel-major: free reshape back to NCHW
    return out.reshape(B, C2, W, Hs)


# ----------------------------- pure-JAX f32 reference -----------------------------
def _ref_layer(x, lp, num_heads):
    S, B, C = x.shape
    H, Dh = num_heads, C // num_heads
    lin = lambda t, w: jnp.einsum('sbc,dc->sbd', t, w)
    q = lin(x, lp["wq"]); k = lin(x, lp["wk"]); v = lin(x, lp["wv"])
    in_w, in_b = lp["in_proj_w"], lp["in_proj_b"]
    q1 = (lin(q, in_w[:C]) + in_b[:C]).reshape(S, B, H, Dh) / math.sqrt(Dh)
    k1 = (lin(k, in_w[C:2 * C]) + in_b[C:2 * C]).reshape(S, B, H, Dh)
    v1 = (lin(v, in_w[2 * C:]) + in_b[2 * C:]).reshape(S, B, H, Dh)
    s = jnp.einsum('sbhd,tbhd->bhst', q1, k1)
    p = jax.nn.softmax(s, axis=-1)
    o = jnp.einsum('bhst,tbhd->sbhd', p, v1).reshape(S, B, C)
    o = lin(o, lp["out_w"]) + lp["out_b"]
    x1 = o + x
    return lin(lin(x1, lp["wfc1"]), lp["wfc2"]) + x1


def ref_forward(x_bchw, params, num_heads, num_layers):
    """Mirrors the PyTorch TransformerBlock forward (eval-mode BN)."""
    x = x_bchw.astype(jnp.float32)
    B, C1, W, Hs = x.shape
    C2 = params["linear_w"].shape[0]
    if C1 != C2:
        w = params["conv_w"].reshape(C2, C1)
        y = jnp.einsum('bchw,oc->bohw', x, w)
        g = params["bn_gamma"] / jnp.sqrt(params["bn_var"] + params["bn_eps"])
        y = (y - params["bn_mean"][None, :, None, None]) * g[None, :, None, None] \
            + params["bn_beta"][None, :, None, None]
        x = y * jax.nn.sigmoid(y)
    S = W * Hs
    p = jnp.transpose(x.reshape(B, C2, S), (2, 0, 1))            # (S, B, C2)
    e = jnp.einsum('sbc,dc->sbd', p, params["linear_w"]) + params["linear_b"]
    x = p + e
    for lp in params["layers"]:
        x = _ref_layer(x, lp, num_heads)
    return jnp.transpose(x, (1, 2, 0)).reshape(B, C2, W, Hs)


def init_params(key, c1, c2, num_layers):
    n = lambda k, shape: (0.1 * jax.random.normal(k, shape)).astype(jnp.float32)
    keys = iter(jax.random.split(key, 8 + 9 * num_layers))
    params = {}
    if c1 != c2:
        params["conv_w"] = n(next(keys), (c2, c1, 1, 1))
        params["bn_gamma"] = 1.0 + n(next(keys), (c2,))
        params["bn_beta"] = n(next(keys), (c2,))
        params["bn_mean"] = n(next(keys), (c2,))
        params["bn_var"] = jax.random.uniform(next(keys), (c2,), minval=0.5,
                                              maxval=1.5).astype(jnp.float32)
        params["bn_eps"] = 1e-5
    else:
        for _ in range(5):
            next(keys)
    params["linear_w"] = n(next(keys), (c2, c2))
    params["linear_b"] = n(next(keys), (c2,))
    layers = []
    for _ in range(num_layers):
        layers.append({
            "wq": n(next(keys), (c2, c2)),
            "wk": n(next(keys), (c2, c2)),
            "wv": n(next(keys), (c2, c2)),
            "in_proj_w": n(next(keys), (3 * c2, c2)),
            "in_proj_b": n(next(keys), (3 * c2,)),
            "out_w": n(next(keys), (c2, c2)),
            "out_b": n(next(keys), (c2,)),
            "wfc1": n(next(keys), (c2, c2)),
            "wfc2": n(next(keys), (c2, c2)),
        })
    params["layers"] = layers
    return params


if __name__ == "__main__":
    B, C1, C2, W, Hs = 2, 16, 32, 4, 4        # c1 != c2 -> Conv path exercised; S = 16
    num_heads, num_layers = 4, 2

    key = jax.random.PRNGKey(0)
    kx, kp = jax.random.split(key)
    x = jax.random.normal(kx, (B, C1, W, Hs), dtype=jnp.float32)
    params = init_params(kp, C1, C2, num_layers)

    # parameter fusion is hoisted: build once, reuse for every forward call
    fused = fuse_transformer_block_params(params, num_heads)

    out = transformer_block_forward(x, fused, num_heads, num_layers)
    out = jax.block_until_ready(out)

    ref = ref_forward(x, params, num_heads, num_layers)
    if not jnp.allclose(out, ref, atol=3e-2, rtol=3e-2):
        err = float(jnp.max(jnp.abs(out - ref)))
        raise AssertionError(f"Pallas kernel mismatch, max abs err {err}")

    print("KERNEL_OK")
</pallas_src>

<mosaic_0001>
module attributes {stable_mosaic.version = 11 : i64} {
  func.func @kernel(%arg0: i32, %arg1: i32, %arg2: memref<1x16x16xbf16, #tpu.memory_space<vmem>>, %arg3: memref<32x16xbf16, #tpu.memory_space<vmem>>, %arg4: memref<32x1xf32, #tpu.memory_space<vmem>>, %arg5: memref<32x32xbf16, #tpu.memory_space<vmem>>, %arg6: memref<32x1xf32, #tpu.memory_space<vmem>>, %arg7: memref<1x32x32xbf16, #tpu.memory_space<vmem>>, %arg8: memref<1x32x1xf32, #tpu.memory_space<vmem>>, %arg9: memref<1x32x32xbf16, #tpu.memory_space<vmem>>, %arg10: memref<1x32x1xf32, #tpu.memory_space<vmem>>, %arg11: memref<1x32x32xbf16, #tpu.memory_space<vmem>>, %arg12: memref<1x32x1xf32, #tpu.memory_space<vmem>>, %arg13: memref<1x32x32xbf16, #tpu.memory_space<vmem>>, %arg14: memref<1x32x1xf32, #tpu.memory_space<vmem>>, %arg15: memref<1x32x32xbf16, #tpu.memory_space<vmem>>, %arg16: memref<1x32x16xf32, #tpu.memory_space<vmem>>, %arg17: memref<32x16xf32, #tpu.memory_space<vmem>>) attributes {dimension_semantics = [#tpu.dimension_semantics<parallel>, #tpu.dimension_semantics<arbitrary>], iteration_bounds = array<i64: 2, 2>, scalar_prefetch = 0 : i64, scratch_operands = 1 : i64, tpu.core_type = #tpu.core_type<tc>, window_params = [{transform_indices = @transform_0, window_bounds = array<i64: 1, 16, 16>}, {pipeline_mode = #tpu.pipeline_mode<synchronous>, transform_indices = @transform_1, window_bounds = array<i64: 32, 16>}, {pipeline_mode = #tpu.pipeline_mode<synchronous>, transform_indices = @transform_2, window_bounds = array<i64: 32, 1>}, {pipeline_mode = #tpu.pipeline_mode<synchronous>, transform_indices = @transform_3, window_bounds = array<i64: 32, 32>}, {pipeline_mode = #tpu.pipeline_mode<synchronous>, transform_indices = @transform_4, window_bounds = array<i64: 32, 1>}, {transform_indices = @transform_5, window_bounds = array<i64: 1, 32, 32>}, {transform_indices = @transform_6, window_bounds = array<i64: 1, 32, 1>}, {transform_indices = @transform_7, window_bounds = array<i64: 1, 32, 32>}, {transform_indices = @transform_8, window_bounds = array<i64: 1, 32, 1>}, {transform_indices = @transform_9, window_bounds = array<i64: 1, 32, 32>}, {transform_indices = @transform_10, window_bounds = array<i64: 1, 32, 1>}, {transform_indices = @transform_11, window_bounds = array<i64: 1, 32, 32>}, {transform_indices = @transform_12, window_bounds = array<i64: 1, 32, 1>}, {transform_indices = @transform_13, window_bounds = array<i64: 1, 32, 32>}, {transform_indices = @transform_14, window_bounds = array<i64: 1, 32, 16>}]} {
    %c0_i32 = arith.constant 0 : i32
    %0 = arith.cmpi eq, %arg1, %c0_i32 : i32
    %1 = arith.extui %0 : i1 to i32
    %c0_i32_0 = arith.constant 0 : i32
    %2 = arith.cmpi ne, %1, %c0_i32_0 : i32
    scf.if %2 {
      %c0_40 = arith.constant 0 : index
      %c0_41 = arith.constant 0 : index
      %69 = vector.load %arg3[%c0_40, %c0_41] : memref<32x16xbf16, #tpu.memory_space<vmem>>, vector<32x16xbf16>
      %c0_42 = arith.constant 0 : index
      %c0_43 = arith.constant 0 : index
      %c0_44 = arith.constant 0 : index
      %70 = vector.load %arg2[%c0_42, %c0_43, %c0_44] : memref<1x16x16xbf16, #tpu.memory_space<vmem>>, vector<1x16x16xbf16>
      %71 = vector.shape_cast %70 : vector<1x16x16xbf16> to vector<16x16xbf16>
      %cst_45 = arith.constant dense<0.000000e+00> : vector<32x16xf32>
      %72 = tpu.matmul %69, %71, %cst_45 {dimension_numbers = #tpu.dot_dimension_numbers<[1], [0], [0], [1], [0, 0, 1, 1], [], []>} : vector<32x16xbf16>, vector<16x16xbf16>, vector<32x16xf32> -> vector<32x16xf32>
      %c0_46 = arith.constant 0 : index
      %c0_47 = arith.constant 0 : index
      %73 = vector.load %arg4[%c0_46, %c0_47] : memref<32x1xf32, #tpu.memory_space<vmem>>, vector<32x1xf32>
      %74 = vector.broadcast %73 : vector<32x1xf32> to vector<32x16xf32>
      %75 = arith.addf %72, %74 : vector<32x16xf32>
      %cst_48 = arith.constant 0.000000e+00 : f32
      %76 = vector.broadcast %cst_48 : f32 to vector<32x16xf32>
      %77 = arith.subf %76, %75 : vector<32x16xf32>
      %78 = math.exp %77 : vector<32x16xf32>
      %cst_49 = arith.constant 1.000000e+00 : f32
      %79 = vector.broadcast %cst_49 : f32 to vector<32x16xf32>
      %80 = arith.addf %79, %78 : vector<32x16xf32>
      %cst_50 = arith.constant 1.000000e+00 : f32
      %81 = vector.broadcast %cst_50 : f32 to vector<32x16xf32>
      %82 = arith.divf %81, %80 : vector<32x16xf32>
      %83 = arith.mulf %75, %82 : vector<32x16xf32>
      %c0_51 = arith.constant 0 : index
      %c0_52 = arith.constant 0 : index
      %84 = vector.load %arg5[%c0_51, %c0_52] : memref<32x32xbf16, #tpu.memory_space<vmem>>, vector<32x32xbf16>
      %85 = arith.truncf %83 : vector<32x16xf32> to vector<32x16xbf16>
      %cst_53 = arith.constant dense<0.000000e+00> : vector<32x16xf32>
      %86 = tpu.matmul %84, %85, %cst_53 {dimension_numbers = #tpu.dot_dimension_numbers<[1], [0], [0], [1], [0, 0, 1, 1], [], []>} : vector<32x32xbf16>, vector<32x16xbf16>, vector<32x16xf32> -> vector<32x16xf32>
      %87 = arith.addf %83, %86 : vector<32x16xf32>
      %c0_54 = arith.constant 0 : index
      %c0_55 = arith.constant 0 : index
      %88 = vector.load %arg6[%c0_54, %c0_55] : memref<32x1xf32, #tpu.memory_space<vmem>>, vector<32x1xf32>
      %89 = vector.broadcast %88 : vector<32x1xf32> to vector<32x16xf32>
      %90 = arith.addf %87, %89 : vector<32x16xf32>
      %c0_56 = arith.constant 0 : index
      %c0_57 = arith.constant 0 : index
      %91 = vector.load %arg17[%c0_56, %c0_57] : memref<32x16xf32, #tpu.memory_space<vmem>>, vector<32x16xf32>
      tpu.vector_store %arg17[%c0_56, %c0_57], %90 {strides = array<i32>} : memref<32x16xf32, #tpu.memory_space<vmem>>, vector<32x16xf32>,
    } else {
    }
    %c0 = arith.constant 0 : index
    %c0_1 = arith.constant 0 : index
    %3 = vector.load %arg17[%c0, %c0_1] : memref<32x16xf32, #tpu.memory_space<vmem>>, vector<32x16xf32>
    %c0_2 = arith.constant 0 : index
    %c0_3 = arith.constant 0 : index
    %c0_4 = arith.constant 0 : index
    %4 = vector.load %arg7[%c0_2, %c0_3, %c0_4] : memref<1x32x32xbf16, #tpu.memory_space<vmem>>, vector<1x32x32xbf16>
    %5 = vector.shape_cast %4 : vector<1x32x32xbf16> to vector<32x32xbf16>
    %6 = arith.truncf %3 : vector<32x16xf32> to vector<32x16xbf16>
    %cst = arith.constant dense<0.000000e+00> : vector<32x16xf32>
    %7 = tpu.matmul %5, %6, %cst {dimension_numbers = #tpu.dot_dimension_numbers<[1], [0], [0], [1], [0, 0, 1, 1], [], []>} : vector<32x32xbf16>, vector<32x16xbf16>, vector<32x16xf32> -> vector<32x16xf32>
    %c0_5 = arith.constant 0 : index
    %c0_6 = arith.constant 0 : index
    %c0_7 = arith.constant 0 : index
    %8 = vector.load %arg8[%c0_5, %c0_6, %c0_7] : memref<1x32x1xf32, #tpu.memory_space<vmem>>, vector<1x32x1xf32>
    %9 = vector.shape_cast %8 : vector<1x32x1xf32> to vector<32x1xf32>
    %10 = vector.broadcast %9 : vector<32x1xf32> to vector<32x16xf32>
    %11 = arith.addf %7, %10 : vector<32x16xf32>
    %c0_8 = arith.constant 0 : index
    %c0_9 = arith.constant 0 : index
    %c0_10 = arith.constant 0 : index
    %12 = vector.load %arg9[%c0_8, %c0_9, %c0_10] : memref<1x32x32xbf16, #tpu.memory_space<vmem>>, vector<1x32x32xbf16>
    %13 = vector.shape_cast %12 : vector<1x32x32xbf16> to vector<32x32xbf16>
    %14 = arith.truncf %3 : vector<32x16xf32> to vector<32x16xbf16>
    %cst_11 = arith.constant dense<0.000000e+00> : vector<32x16xf32>
    %15 = tpu.matmul %13, %14, %cst_11 {dimension_numbers = #tpu.dot_dimension_numbers<[1], [0], [0], [1], [0, 0, 1, 1], [], []>} : vector<32x32xbf16>, vector<32x16xbf16>, vector<32x16xf32> -> vector<32x16xf32>
    %c0_12 = arith.constant 0 : index
    %c0_13 = arith.constant 0 : index
    %c0_14 = arith.constant 0 : index
    %16 = vector.load %arg10[%c0_12, %c0_13, %c0_14] : memref<1x32x1xf32, #tpu.memory_space<vmem>>, vector<1x32x1xf32>
    %17 = vector.shape_cast %16 : vector<1x32x1xf32> to vector<32x1xf32>
    %18 = vector.broadcast %17 : vector<32x1xf32> to vector<32x16xf32>
    %19 = arith.addf %15, %18 : vector<32x16xf32>
    %c0_15 = arith.constant 0 : index
    %c0_16 = arith.constant 0 : index
    %c0_17 = arith.constant 0 : index
    %20 = vector.load %arg11[%c0_15, %c0_16, %c0_17] : memref<1x32x32xbf16, #tpu.memory_space<vmem>>, vector<1x32x32xbf16>
    %21 = vector.shape_cast %20 : vector<1x32x32xbf16> to vector<32x32xbf16>
    %22 = arith.truncf %3 : vector<32x16xf32> to vector<32x16xbf16>
    %cst_18 = arith.constant dense<0.000000e+00> : vector<32x16xf32>
    %23 = tpu.matmul %21, %22, %cst_18 {dimension_numbers = #tpu.dot_dimension_numbers<[1], [0], [0], [1], [0, 0, 1, 1], [], []>} : vector<32x32xbf16>, vector<32x16xbf16>, vector<32x16xf32> -> vector<32x16xf32>
    %c0_19 = arith.constant 0 : index
    %c0_20 = arith.constant 0 : index
    %c0_21 = arith.constant 0 : index
    %24 = vector.load %arg12[%c0_19, %c0_20, %c0_21] : memref<1x32x1xf32, #tpu.memory_space<vmem>>, vector<1x32x1xf32>
    %25 = vector.shape_cast %24 : vector<1x32x1xf32> to vector<32x1xf32>
    %26 = vector.broadcast %25 : vector<32x1xf32> to vector<32x16xf32>
    %27 = arith.addf %23, %26 : vector<32x16xf32>
    %28 = vector.shape_cast %19 : vector<32x16xf32> to vector<4x8x16xf32>
    %29 = arith.truncf %28 : vector<4x8x16xf32> to vector<4x8x16xbf16>
    %30 = vector.shape_cast %11 : vector<32x16xf32> to vector<4x8x16xf32>
    %31 = tpu.transpose %30, [0, 2, 1] : vector<4x8x16xf32> -> vector<4x16x8xf32>
    %32 = arith.truncf %31 : vector<4x16x8xf32> to vector<4x16x8xbf16>
    %33 = vector.shape_cast %27 : vector<32x16xf32> to vector<4x8x16xf32>
    %34 = tpu.transpose %33, [0, 2, 1] : vector<4x8x16xf32> -> vector<4x16x8xf32>
    %35 = arith.truncf %34 : vector<4x16x8xf32> to vector<4x16x8xbf16>
    %cst_22 = arith.constant dense<0.000000e+00> : vector<4x16x16xf32>
    %36 = tpu.matmul %32, %29, %cst_22 {dimension_numbers = #tpu.dot_dimension_numbers<[2], [1], [1], [2], [0, 0, 0, 1, 1, 2], [0], [0]>} : vector<4x16x8xbf16>, vector<4x8x16xbf16>, vector<4x16x16xf32> -> vector<4x16x16xf32>
    %cst_23 = arith.constant dense<0xFF800000> : vector<4x16xf32>
    %37 = vector.multi_reduction <maximumf>, %36, %cst_23 [2] : vector<4x16x16xf32> to vector<4x16xf32>
    %38 = vector.shape_cast %37 : vector<4x16xf32> to vector<4x16x1xf32>
    %39 = vector.broadcast %38 : vector<4x16x1xf32> to vector<4x16x16xf32>
    %40 = arith.subf %36, %39 : vector<4x16x16xf32>
    %41 = math.exp %40 : vector<4x16x16xf32>
    %cst_24 = arith.constant dense<0.000000e+00> : vector<4x16xf32>
    %42 = vector.multi_reduction <add>, %41, %cst_24 [2] : vector<4x16x16xf32> to vector<4x16xf32>
    %43 = vector.shape_cast %42 : vector<4x16xf32> to vector<4x16x1xf32>
    %44 = tpu.reciprocal %43 {approx = true} : vector<4x16x1xf32> -> vector<4x16x1xf32>
    %45 = arith.truncf %41 : vector<4x16x16xf32> to vector<4x16x16xbf16>
    %cst_25 = arith.constant dense<0.000000e+00> : vector<4x16x8xf32>
    %46 = tpu.matmul %45, %35, %cst_25 {dimension_numbers = #tpu.dot_dimension_numbers<[2], [1], [1], [2], [0, 0, 0, 1, 1, 2], [0], [0]>} : vector<4x16x16xbf16>, vector<4x16x8xbf16>, vector<4x16x8xf32> -> vector<4x16x8xf32>
    %47 = vector.broadcast %44 : vector<4x16x1xf32> to vector<4x16x8xf32>
    %48 = arith.mulf %46, %47 : vector<4x16x8xf32>
    %49 = tpu.transpose %48, [0, 2, 1] : vector<4x16x8xf32> -> vector<4x8x16xf32>
    %50 = vector.shape_cast %49 : vector<4x8x16xf32> to vector<32x16xf32>
    %c0_26 = arith.constant 0 : index
    %c0_27 = arith.constant 0 : index
    %c0_28 = arith.constant 0 : index
    %51 = vector.load %arg13[%c0_26, %c0_27, %c0_28] : memref<1x32x32xbf16, #tpu.memory_space<vmem>>, vector<1x32x32xbf16>
    %52 = vector.shape_cast %51 : vector<1x32x32xbf16> to vector<32x32xbf16>
    %53 = arith.truncf %50 : vector<32x16xf32> to vector<32x16xbf16>
    %cst_29 = arith.constant dense<0.000000e+00> : vector<32x16xf32>
    %54 = tpu.matmul %52, %53, %cst_29 {dimension_numbers = #tpu.dot_dimension_numbers<[1], [0], [0], [1], [0, 0, 1, 1], [], []>} : vector<32x32xbf16>, vector<32x16xbf16>, vector<32x16xf32> -> vector<32x16xf32>
    %c0_30 = arith.constant 0 : index
    %c0_31 = arith.constant 0 : index
    %c0_32 = arith.constant 0 : index
    %55 = vector.load %arg14[%c0_30, %c0_31, %c0_32] : memref<1x32x1xf32, #tpu.memory_space<vmem>>, vector<1x32x1xf32>
    %56 = vector.shape_cast %55 : vector<1x32x1xf32> to vector<32x1xf32>
    %57 = vector.broadcast %56 : vector<32x1xf32> to vector<32x16xf32>
    %58 = arith.addf %54, %57 : vector<32x16xf32>
    %59 = arith.addf %58, %3 : vector<32x16xf32>
    %c0_33 = arith.constant 0 : index
    %c0_34 = arith.constant 0 : index
    %c0_35 = arith.constant 0 : index
    %60 = vector.load %arg15[%c0_33, %c0_34, %c0_35] : memref<1x32x32xbf16, #tpu.memory_space<vmem>>, vector<1x32x32xbf16>
    %61 = vector.shape_cast %60 : vector<1x32x32xbf16> to vector<32x32xbf16>
    %62 = arith.truncf %59 : vector<32x16xf32> to vector<32x16xbf16>
    %cst_36 = arith.constant dense<0.000000e+00> : vector<32x16xf32>
    %63 = tpu.matmul %61, %62, %cst_36 {dimension_numbers = #tpu.dot_dimension_numbers<[1], [0], [0], [1], [0, 0, 1, 1], [], []>} : vector<32x32xbf16>, vector<32x16xbf16>, vector<32x16xf32> -> vector<32x16xf32>
    %64 = arith.addf %63, %59 : vector<32x16xf32>
    %c0_37 = arith.constant 0 : index
    %c0_38 = arith.constant 0 : index
    %65 = vector.load %arg17[%c0_37, %c0_38] : memref<32x16xf32, #tpu.memory_space<vmem>>, vector<32x16xf32>
    tpu.vector_store %arg17[%c0_37, %c0_38], %64 {strides = array<i32>} : memref<32x16xf32, #tpu.memory_space<vmem>>, vector<32x16xf32>,
    %c1_i32 = arith.constant 1 : i32
    %66 = arith.cmpi eq, %arg1, %c1_i32 : i32
    %67 = arith.extui %66 : i1 to i32
    %c0_i32_39 = arith.constant 0 : i32
    %68 = arith.cmpi ne, %67, %c0_i32_39 : i32
    scf.if %68 {
      %c0_40 = arith.constant 0 : index
      %c0_41 = arith.constant 0 : index
      %c0_42 = arith.constant 0 : index
      %69 = vector.load %arg16[%c0_40, %c0_41, %c0_42] : memref<1x32x16xf32, #tpu.memory_space<vmem>>, vector<1x32x16xf32>
      %70 = vector.shape_cast %69 : vector<1x32x16xf32> to vector<32x16xf32>
      %71 = vector.shape_cast %64 : vector<32x16xf32> to vector<1x32x16xf32>
      tpu.vector_store %arg16[%c0_40, %c0_41, %c0_42], %71 {strides = array<i32>} : memref<1x32x16xf32, #tpu.memory_space<vmem>>, vector<1x32x16xf32>,
    } else {
    }
    return
  }
  func.func @transform_0(%arg0: i32, %arg1: i32) -> (i32, i32, i32) {
    %c0_i32 = arith.constant 0 : i32
    %c0_i32_0 = arith.constant 0 : i32
    %c0_i32_1 = arith.constant 0 : i32
    return %arg0, %c0_i32, %c0_i32_0 : i32, i32, i32
  }
  func.func @transform_1(%arg0: i32, %arg1: i32) -> (i32, i32) {
    %c0_i32 = arith.constant 0 : i32
    %c0_i32_0 = arith.constant 0 : i32
    %c0_i32_1 = arith.constant 0 : i32
    return %c0_i32, %c0_i32_0 : i32, i32
  }
  func.func @transform_2(%arg0: i32, %arg1: i32) -> (i32, i32) {
    %c0_i32 = arith.constant 0 : i32
    %c0_i32_0 = arith.constant 0 : i32
    %c0_i32_1 = arith.constant 0 : i32
    return %c0_i32, %c0_i32_0 : i32, i32
  }
  func.func @transform_3(%arg0: i32, %arg1: i32) -> (i32, i32) {
    %c0_i32 = arith.constant 0 : i32
    %c0_i32_0 = arith.constant 0 : i32
    %c0_i32_1 = arith.constant 0 : i32
    return %c0_i32, %c0_i32_0 : i32, i32
  }
  func.func @transform_4(%arg0: i32, %arg1: i32) -> (i32, i32) {
    %c0_i32 = arith.constant 0 : i32
    %c0_i32_0 = arith.constant 0 : i32
    %c0_i32_1 = arith.constant 0 : i32
    return %c0_i32, %c0_i32_0 : i32, i32
  }
  func.func @transform_5(%arg0: i32, %arg1: i32) -> (i32, i32, i32) {
    %c0_i32 = arith.constant 0 : i32
    %c0_i32_0 = arith.constant 0 : i32
    %c0_i32_1 = arith.constant 0 : i32
    return %arg1, %c0_i32, %c0_i32_0 : i32, i32, i32
  }
  func.func @transform_6(%arg0: i32, %arg1: i32) -> (i32, i32, i32) {
    %c0_i32 = arith.constant 0 : i32
    %c0_i32_0 = arith.constant 0 : i32
    %c0_i32_1 = arith.constant 0 : i32
    return %arg1, %c0_i32, %c0_i32_0 : i32, i32, i32
  }
  func.func @transform_7(%arg0: i32, %arg1: i32) -> (i32, i32, i32) {
    %c0_i32 = arith.constant 0 : i32
    %c0_i32_0 = arith.constant 0 : i32
    %c0_i32_1 = arith.constant 0 : i32
    return %arg1, %c0_i32, %c0_i32_0 : i32, i32, i32
  }
  func.func @transform_8(%arg0: i32, %arg1: i32) -> (i32, i32, i32) {
    %c0_i32 = arith.constant 0 : i32
    %c0_i32_0 = arith.constant 0 : i32
    %c0_i32_1 = arith.constant 0 : i32
    return %arg1, %c0_i32, %c0_i32_0 : i32, i32, i32
  }
  func.func @transform_9(%arg0: i32, %arg1: i32) -> (i32, i32, i32) {
    %c0_i32 = arith.constant 0 : i32
    %c0_i32_0 = arith.constant 0 : i32
    %c0_i32_1 = arith.constant 0 : i32
    return %arg1, %c0_i32, %c0_i32_0 : i32, i32, i32
  }
  func.func @transform_10(%arg0: i32, %arg1: i32) -> (i32, i32, i32) {
    %c0_i32 = arith.constant 0 : i32
    %c0_i32_0 = arith.constant 0 : i32
    %c0_i32_1 = arith.constant 0 : i32
    return %arg1, %c0_i32, %c0_i32_0 : i32, i32, i32
  }
  func.func @transform_11(%arg0: i32, %arg1: i32) -> (i32, i32, i32) {
    %c0_i32 = arith.constant 0 : i32
    %c0_i32_0 = arith.constant 0 : i32
    %c0_i32_1 = arith.constant 0 : i32
    return %arg1, %c0_i32, %c0_i32_0 : i32, i32, i32
  }
  func.func @transform_12(%arg0: i32, %arg1: i32) -> (i32, i32, i32) {
    %c0_i32 = arith.constant 0 : i32
    %c0_i32_0 = arith.constant 0 : i32
    %c0_i32_1 = arith.constant 0 : i32
    return %arg1, %c0_i32, %c0_i32_0 : i32, i32, i32
  }
  func.func @transform_13(%arg0: i32, %arg1: i32) -> (i32, i32, i32) {
    %c0_i32 = arith.constant 0 : i32
    %c0_i32_0 = arith.constant 0 : i32
    %c0_i32_1 = arith.constant 0 : i32
    return %arg1, %c0_i32, %c0_i32_0 : i32, i32, i32
  }
  func.func @transform_14(%arg0: i32, %arg1: i32) -> (i32, i32, i32) {
    %c0_i32 = arith.constant 0 : i32
    %c0_i32_0 = arith.constant 0 : i32
    %c0_i32_1 = arith.constant 0 : i32
    return %arg0, %c0_i32, %c0_i32_0 : i32, i32, i32
  }
}

module attributes {stable_mosaic.version = 11 : i64} {
  func.func @kernel(%arg0: i32, %arg1: i32, %arg2: memref<1x16x16xbf16, #tpu.memory_space<vmem>>, %arg3: memref<32x16xbf16, #tpu.memory_space<vmem>>, %arg4: memref<32x1xf32, #tpu.memory_space<vmem>>, %arg5: memref<32x32xbf16, #tpu.memory_space<vmem>>, %arg6: memref<32x1xf32, #tpu.memory_space<vmem>>, %arg7: memref<1x32x32xbf16, #tpu.memory_space<vmem>>, %arg8: memref<1x32x1xf32, #tpu.memory_space<vmem>>, %arg9: memref<1x32x32xbf16, #tpu.memory_space<vmem>>, %arg10: memref<1x32x1xf32, #tpu.memory_space<vmem>>, %arg11: memref<1x32x32xbf16, #tpu.memory_space<vmem>>, %arg12: memref<1x32x1xf32, #tpu.memory_space<vmem>>, %arg13: memref<1x32x32xbf16, #tpu.memory_space<vmem>>, %arg14: memref<1x32x1xf32, #tpu.memory_space<vmem>>, %arg15: memref<1x32x32xbf16, #tpu.memory_space<vmem>>, %arg16: memref<1x32x16xf32, #tpu.memory_space<vmem>>, %arg17: memref<32x16xf32, #tpu.memory_space<vmem>>) attributes {dimension_semantics = [#tpu.dimension_semantics<parallel>, #tpu.dimension_semantics<arbitrary>], iteration_bounds = array<i64: 2, 2>, scalar_prefetch = 0 : i64, scratch_operands = 1 : i64, tpu.core_type = #tpu.core_type<tc>, window_params = [{transform_indices = @transform_0, window_bounds = array<i64: 1, 16, 16>}, {pipeline_mode = #tpu.pipeline_mode<synchronous>, transform_indices = @transform_1, window_bounds = array<i64: 32, 16>}, {pipeline_mode = #tpu.pipeline_mode<synchronous>, transform_indices = @transform_2, window_bounds = array<i64: 32, 1>}, {pipeline_mode = #tpu.pipeline_mode<synchronous>, transform_indices = @transform_3, window_bounds = array<i64: 32, 32>}, {pipeline_mode = #tpu.pipeline_mode<synchronous>, transform_indices = @transform_4, window_bounds = array<i64: 32, 1>}, {transform_indices = @transform_5, window_bounds = array<i64: 1, 32, 32>}, {transform_indices = @transform_6, window_bounds = array<i64: 1, 32, 1>}, {transform_indices = @transform_7, window_bounds = array<i64: 1, 32, 32>}, {transform_indices = @transform_8, window_bounds = array<i64: 1, 32, 1>}, {transform_indices = @transform_9, window_bounds = array<i64: 1, 32, 32>}, {transform_indices = @transform_10, window_bounds = array<i64: 1, 32, 1>}, {transform_indices = @transform_11, window_bounds = array<i64: 1, 32, 32>}, {transform_indices = @transform_12, window_bounds = array<i64: 1, 32, 1>}, {transform_indices = @transform_13, window_bounds = array<i64: 1, 32, 32>}, {transform_indices = @transform_14, window_bounds = array<i64: 1, 32, 16>}]} {
    %c0_i32 = arith.constant 0 : i32
    %0 = arith.cmpi eq, %arg1, %c0_i32 : i32
    %1 = arith.extui %0 : i1 to i32
    %c0_i32_0 = arith.constant 0 : i32
    %2 = arith.cmpi ne, %1, %c0_i32_0 : i32
    scf.if %2 {
      %c0_40 = arith.constant 0 : index
      %c0_41 = arith.constant 0 : index
      %69 = vector.load %arg3[%c0_40, %c0_41] : memref<32x16xbf16, #tpu.memory_space<vmem>>, vector<32x16xbf16>
      %c0_42 = arith.constant 0 : index
      %c0_43 = arith.constant 0 : index
      %c0_44 = arith.constant 0 : index
      %70 = vector.load %arg2[%c0_42, %c0_43, %c0_44] : memref<1x16x16xbf16, #tpu.memory_space<vmem>>, vector<1x16x16xbf16>
      %71 = vector.shape_cast %70 : vector<1x16x16xbf16> to vector<16x16xbf16>
      %cst_45 = arith.constant dense<0.000000e+00> : vector<32x16xf32>
      %72 = tpu.matmul %69, %71, %cst_45 {dimension_numbers = #tpu.dot_dimension_numbers<[1], [0], [0], [1], [0, 0, 1, 1], [], []>} : vector<32x16xbf16>, vector<16x16xbf16>, vector<32x16xf32> -> vector<32x16xf32>
      %c0_46 = arith.constant 0 : index
      %c0_47 = arith.constant 0 : index
      %73 = vector.load %arg4[%c0_46, %c0_47] : memref<32x1xf32, #tpu.memory_space<vmem>>, vector<32x1xf32>
      %74 = vector.broadcast %73 : vector<32x1xf32> to vector<32x16xf32>
      %75 = arith.addf %72, %74 : vector<32x16xf32>
      %cst_48 = arith.constant 0.000000e+00 : f32
      %76 = vector.broadcast %cst_48 : f32 to vector<32x16xf32>
      %77 = arith.subf %76, %75 : vector<32x16xf32>
      %78 = math.exp %77 : vector<32x16xf32>
      %cst_49 = arith.constant 1.000000e+00 : f32
      %79 = vector.broadcast %cst_49 : f32 to vector<32x16xf32>
      %80 = arith.addf %79, %78 : vector<32x16xf32>
      %cst_50 = arith.constant 1.000000e+00 : f32
      %81 = vector.broadcast %cst_50 : f32 to vector<32x16xf32>
      %82 = arith.divf %81, %80 : vector<32x16xf32>
      %83 = arith.mulf %75, %82 : vector<32x16xf32>
      %c0_51 = arith.constant 0 : index
      %c0_52 = arith.constant 0 : index
      %84 = vector.load %arg5[%c0_51, %c0_52] : memref<32x32xbf16, #tpu.memory_space<vmem>>, vector<32x32xbf16>
      %85 = arith.truncf %83 : vector<32x16xf32> to vector<32x16xbf16>
      %cst_53 = arith.constant dense<0.000000e+00> : vector<32x16xf32>
      %86 = tpu.matmul %84, %85, %cst_53 {dimension_numbers = #tpu.dot_dimension_numbers<[1], [0], [0], [1], [0, 0, 1, 1], [], []>} : vector<32x32xbf16>, vector<32x16xbf16>, vector<32x16xf32> -> vector<32x16xf32>
      %87 = arith.addf %83, %86 : vector<32x16xf32>
      %c0_54 = arith.constant 0 : index
      %c0_55 = arith.constant 0 : index
      %88 = vector.load %arg6[%c0_54, %c0_55] : memref<32x1xf32, #tpu.memory_space<vmem>>, vector<32x1xf32>
      %89 = vector.broadcast %88 : vector<32x1xf32> to vector<32x16xf32>
      %90 = arith.addf %87, %89 : vector<32x16xf32>
      %c0_56 = arith.constant 0 : index
      %c0_57 = arith.constant 0 : index
      %91 = vector.load %arg17[%c0_56, %c0_57] : memref<32x16xf32, #tpu.memory_space<vmem>>, vector<32x16xf32>
      tpu.vector_store %arg17[%c0_56, %c0_57], %90 {strides = array<i32>} : memref<32x16xf32, #tpu.memory_space<vmem>>, vector<32x16xf32>,
    } else {
    }
    %c0 = arith.constant 0 : index
    %c0_1 = arith.constant 0 : index
    %3 = vector.load %arg17[%c0, %c0_1] : memref<32x16xf32, #tpu.memory_space<vmem>>, vector<32x16xf32>
    %c0_2 = arith.constant 0 : index
    %c0_3 = arith.constant 0 : index
    %c0_4 = arith.constant 0 : index
    %4 = vector.load %arg7[%c0_2, %c0_3, %c0_4] : memref<1x32x32xbf16, #tpu.memory_space<vmem>>, vector<1x32x32xbf16>
    %5 = vector.shape_cast %4 : vector<1x32x32xbf16> to vector<32x32xbf16>
    %6 = arith.truncf %3 : vector<32x16xf32> to vector<32x16xbf16>
    %cst = arith.constant dense<0.000000e+00> : vector<32x16xf32>
    %7 = tpu.matmul %5, %6, %cst {dimension_numbers = #tpu.dot_dimension_numbers<[1], [0], [0], [1], [0, 0, 1, 1], [], []>} : vector<32x32xbf16>, vector<32x16xbf16>, vector<32x16xf32> -> vector<32x16xf32>
    %c0_5 = arith.constant 0 : index
    %c0_6 = arith.constant 0 : index
    %c0_7 = arith.constant 0 : index
    %8 = vector.load %arg8[%c0_5, %c0_6, %c0_7] : memref<1x32x1xf32, #tpu.memory_space<vmem>>, vector<1x32x1xf32>
    %9 = vector.shape_cast %8 : vector<1x32x1xf32> to vector<32x1xf32>
    %10 = vector.broadcast %9 : vector<32x1xf32> to vector<32x16xf32>
    %11 = arith.addf %7, %10 : vector<32x16xf32>
    %c0_8 = arith.constant 0 : index
    %c0_9 = arith.constant 0 : index
    %c0_10 = arith.constant 0 : index
    %12 = vector.load %arg9[%c0_8, %c0_9, %c0_10] : memref<1x32x32xbf16, #tpu.memory_space<vmem>>, vector<1x32x32xbf16>
    %13 = vector.shape_cast %12 : vector<1x32x32xbf16> to vector<32x32xbf16>
    %14 = arith.truncf %3 : vector<32x16xf32> to vector<32x16xbf16>
    %cst_11 = arith.constant dense<0.000000e+00> : vector<32x16xf32>
    %15 = tpu.matmul %13, %14, %cst_11 {dimension_numbers = #tpu.dot_dimension_numbers<[1], [0], [0], [1], [0, 0, 1, 1], [], []>} : vector<32x32xbf16>, vector<32x16xbf16>, vector<32x16xf32> -> vector<32x16xf32>
    %c0_12 = arith.constant 0 : index
    %c0_13 = arith.constant 0 : index
    %c0_14 = arith.constant 0 : index
    %16 = vector.load %arg10[%c0_12, %c0_13, %c0_14] : memref<1x32x1xf32, #tpu.memory_space<vmem>>, vector<1x32x1xf32>
    %17 = vector.shape_cast %16 : vector<1x32x1xf32> to vector<32x1xf32>
    %18 = vector.broadcast %17 : vector<32x1xf32> to vector<32x16xf32>
    %19 = arith.addf %15, %18 : vector<32x16xf32>
    %c0_15 = arith.constant 0 : index
    %c0_16 = arith.constant 0 : index
    %c0_17 = arith.constant 0 : index
    %20 = vector.load %arg11[%c0_15, %c0_16, %c0_17] : memref<1x32x32xbf16, #tpu.memory_space<vmem>>, vector<1x32x32xbf16>
    %21 = vector.shape_cast %20 : vector<1x32x32xbf16> to vector<32x32xbf16>
    %22 = arith.truncf %3 : vector<32x16xf32> to vector<32x16xbf16>
    %cst_18 = arith.constant dense<0.000000e+00> : vector<32x16xf32>
    %23 = tpu.matmul %21, %22, %cst_18 {dimension_numbers = #tpu.dot_dimension_numbers<[1], [0], [0], [1], [0, 0, 1, 1], [], []>} : vector<32x32xbf16>, vector<32x16xbf16>, vector<32x16xf32> -> vector<32x16xf32>
    %c0_19 = arith.constant 0 : index
    %c0_20 = arith.constant 0 : index
    %c0_21 = arith.constant 0 : index
    %24 = vector.load %arg12[%c0_19, %c0_20, %c0_21] : memref<1x32x1xf32, #tpu.memory_space<vmem>>, vector<1x32x1xf32>
    %25 = vector.shape_cast %24 : vector<1x32x1xf32> to vector<32x1xf32>
    %26 = vector.broadcast %25 : vector<32x1xf32> to vector<32x16xf32>
    %27 = arith.addf %23, %26 : vector<32x16xf32>
    %28 = vector.shape_cast %19 : vector<32x16xf32> to vector<4x8x16xf32>
    %29 = arith.truncf %28 : vector<4x8x16xf32> to vector<4x8x16xbf16>
    %30 = vector.shape_cast %11 : vector<32x16xf32> to vector<4x8x16xf32>
    %31 = tpu.transpose %30, [0, 2, 1] : vector<4x8x16xf32> -> vector<4x16x8xf32>
    %32 = arith.truncf %31 : vector<4x16x8xf32> to vector<4x16x8xbf16>
    %33 = vector.shape_cast %27 : vector<32x16xf32> to vector<4x8x16xf32>
    %34 = tpu.transpose %33, [0, 2, 1] : vector<4x8x16xf32> -> vector<4x16x8xf32>
    %35 = arith.truncf %34 : vector<4x16x8xf32> to vector<4x16x8xbf16>
    %cst_22 = arith.constant dense<0.000000e+00> : vector<4x16x16xf32>
    %36 = tpu.matmul %32, %29, %cst_22 {dimension_numbers = #tpu.dot_dimension_numbers<[2], [1], [1], [2], [0, 0, 0, 1, 1, 2], [0], [0]>} : vector<4x16x8xbf16>, vector<4x8x16xbf16>, vector<4x16x16xf32> -> vector<4x16x16xf32>
    %cst_23 = arith.constant dense<0xFF800000> : vector<4x16xf32>
    %37 = vector.multi_reduction <maximumf>, %36, %cst_23 [2] : vector<4x16x16xf32> to vector<4x16xf32>
    %38 = vector.shape_cast %37 : vector<4x16xf32> to vector<4x16x1xf32>
    %39 = vector.broadcast %38 : vector<4x16x1xf32> to vector<4x16x16xf32>
    %40 = arith.subf %36, %39 : vector<4x16x16xf32>
    %41 = math.exp %40 : vector<4x16x16xf32>
    %cst_24 = arith.constant dense<0.000000e+00> : vector<4x16xf32>
    %42 = vector.multi_reduction <add>, %41, %cst_24 [2] : vector<4x16x16xf32> to vector<4x16xf32>
    %43 = vector.shape_cast %42 : vector<4x16xf32> to vector<4x16x1xf32>
    %44 = tpu.reciprocal %43 {approx = true} : vector<4x16x1xf32> -> vector<4x16x1xf32>
    %45 = arith.truncf %41 : vector<4x16x16xf32> to vector<4x16x16xbf16>
    %cst_25 = arith.constant dense<0.000000e+00> : vector<4x16x8xf32>
    %46 = tpu.matmul %45, %35, %cst_25 {dimension_numbers = #tpu.dot_dimension_numbers<[2], [1], [1], [2], [0, 0, 0, 1, 1, 2], [0], [0]>} : vector<4x16x16xbf16>, vector<4x16x8xbf16>, vector<4x16x8xf32> -> vector<4x16x8xf32>
    %47 = vector.broadcast %44 : vector<4x16x1xf32> to vector<4x16x8xf32>
    %48 = arith.mulf %46, %47 : vector<4x16x8xf32>
    %49 = tpu.transpose %48, [0, 2, 1] : vector<4x16x8xf32> -> vector<4x8x16xf32>
    %50 = vector.shape_cast %49 : vector<4x8x16xf32> to vector<32x16xf32>
    %c0_26 = arith.constant 0 : index
    %c0_27 = arith.constant 0 : index
    %c0_28 = arith.constant 0 : index
    %51 = vector.load %arg13[%c0_26, %c0_27, %c0_28] : memref<1x32x32xbf16, #tpu.memory_space<vmem>>, vector<1x32x32xbf16>
    %52 = vector.shape_cast %51 : vector<1x32x32xbf16> to vector<32x32xbf16>
    %53 = arith.truncf %50 : vector<32x16xf32> to vector<32x16xbf16>
    %cst_29 = arith.constant dense<0.000000e+00> : vector<32x16xf32>
    %54 = tpu.matmul %52, %53, %cst_29 {dimension_numbers = #tpu.dot_dimension_numbers<[1], [0], [0], [1], [0, 0, 1, 1], [], []>} : vector<32x32xbf16>, vector<32x16xbf16>, vector<32x16xf32> -> vector<32x16xf32>
    %c0_30 = arith.constant 0 : index
    %c0_31 = arith.constant 0 : index
    %c0_32 = arith.constant 0 : index
    %55 = vector.load %arg14[%c0_30, %c0_31, %c0_32] : memref<1x32x1xf32, #tpu.memory_space<vmem>>, vector<1x32x1xf32>
    %56 = vector.shape_cast %55 : vector<1x32x1xf32> to vector<32x1xf32>
    %57 = vector.broadcast %56 : vector<32x1xf32> to vector<32x16xf32>
    %58 = arith.addf %54, %57 : vector<32x16xf32>
    %59 = arith.addf %58, %3 : vector<32x16xf32>
    %c0_33 = arith.constant 0 : index
    %c0_34 = arith.constant 0 : index
    %c0_35 = arith.constant 0 : index
    %60 = vector.load %arg15[%c0_33, %c0_34, %c0_35] : memref<1x32x32xbf16, #tpu.memory_space<vmem>>, vector<1x32x32xbf16>
    %61 = vector.shape_cast %60 : vector<1x32x32xbf16> to vector<32x32xbf16>
    %62 = arith.truncf %59 : vector<32x16xf32> to vector<32x16xbf16>
    %cst_36 = arith.constant dense<0.000000e+00> : vector<32x16xf32>
    %63 = tpu.matmul %61, %62, %cst_36 {dimension_numbers = #tpu.dot_dimension_numbers<[1], [0], [0], [1], [0, 0, 1, 1], [], []>} : vector<32x32xbf16>, vector<32x16xbf16>, vector<32x16xf32> -> vector<32x16xf32>
    %64 = arith.addf %63, %59 : vector<32x16xf32>
    %c0_37 = arith.constant 0 : index
    %c0_38 = arith.constant 0 : index
    %65 = vector.load %arg17[%c0_37, %c0_38] : memref<32x16xf32, #tpu.memory_space<vmem>>, vector<32x16xf32>
    tpu.vector_store %arg17[%c0_37, %c0_38], %64 {strides = array<i32>} : memref<32x16xf32, #tpu.memory_space<vmem>>, vector<32x16xf32>,
    %c1_i32 = arith.constant 1 : i32
    %66 = arith.cmpi eq, %arg1, %c1_i32 : i32
    %67 = arith.extui %66 : i1 to i32
    %c0_i32_39 = arith.constant 0 : i32
    %68 = arith.cmpi ne, %67, %c0_i32_39 : i32
    scf.if %68 {
      %c0_40 = arith.constant 0 : index
      %c0_41 = arith.constant 0 : index
      %c0_42 = arith.constant 0 : index
      %69 = vector.load %arg16[%c0_40, %c0_41, %c0_42] : memref<1x32x16xf32, #tpu.memory_space<vmem>>, vector<1x32x16xf32>
      %70 = vector.shape_cast %69 : vector<1x32x16xf32> to vector<32x16xf32>
      %71 = vector.shape_cast %64 : vector<32x16xf32> to vector<1x32x16xf32>
      tpu.vector_store %arg16[%c0_40, %c0_41, %c0_42], %71 {strides = array<i32>} : memref<1x32x16xf32, #tpu.memory_space<vmem>>, vector<1x32x16xf32>,
    } else {
    }
    return
  }
  func.func @transform_0(%arg0: i32, %arg1: i32) -> (i32, i32, i32) {
    %c0_i32 = arith.constant 0 : i32
    %c0_i32_0 = arith.constant 0 : i32
    %c0_i32_1 = arith.constant 0 : i32
    return %arg0, %c0_i32, %c0_i32_0 : i32, i32, i32
  }
  func.func @transform_1(%arg0: i32, %arg1: i32) -> (i32, i32) {
    %c0_i32 = arith.constant 0 : i32
    %c0_i32_0 = arith.constant 0 : i32
    %c0_i32_1 = arith.constant 0 : i32
    return %c0_i32, %c0_i32_0 : i32, i32
  }
  func.func @transform_2(%arg0: i32, %arg1: i32) -> (i32, i32) {
    %c0_i32 = arith.constant 0 : i32
    %c0_i32_0 = arith.constant 0 : i32
    %c0_i32_1 = arith.constant 0 : i32
    return %c0_i32, %c0_i32_0 : i32, i32
  }
  func.func @transform_3(%arg0: i32, %arg1: i32) -> (i32, i32) {
    %c0_i32 = arith.constant 0 : i32
    %c0_i32_0 = arith.constant 0 : i32
    %c0_i32_1 = arith.constant 0 : i32
    return %c0_i32, %c0_i32_0 : i32, i32
  }
  func.func @transform_4(%arg0: i32, %arg1: i32) -> (i32, i32) {
    %c0_i32 = arith.constant 0 : i32
    %c0_i32_0 = arith.constant 0 : i32
    %c0_i32_1 = arith.constant 0 : i32
    return %c0_i32, %c0_i32_0 : i32, i32
  }
  func.func @transform_5(%arg0: i32, %arg1: i32) -> (i32, i32, i32) {
    %c0_i32 = arith.constant 0 : i32
    %c0_i32_0 = arith.constant 0 : i32
    %c0_i32_1 = arith.constant 0 : i32
    return %arg1, %c0_i32, %c0_i32_0 : i32, i32, i32
  }
  func.func @transform_6(%arg0: i32, %arg1: i32) -> (i32, i32, i32) {
    %c0_i32 = arith.constant 0 : i32
    %c0_i32_0 = arith.constant 0 : i32
    %c0_i32_1 = arith.constant 0 : i32
    return %arg1, %c0_i32, %c0_i32_0 : i32, i32, i32
  }
  func.func @transform_7(%arg0: i32, %arg1: i32) -> (i32, i32, i32) {
    %c0_i32 = arith.constant 0 : i32
    %c0_i32_0 = arith.constant 0 : i32
    %c0_i32_1 = arith.constant 0 : i32
    return %arg1, %c0_i32, %c0_i32_0 : i32, i32, i32
  }
  func.func @transform_8(%arg0: i32, %arg1: i32) -> (i32, i32, i32) {
    %c0_i32 = arith.constant 0 : i32
    %c0_i32_0 = arith.constant 0 : i32
    %c0_i32_1 = arith.constant 0 : i32
    return %arg1, %c0_i32, %c0_i32_0 : i32, i32, i32
  }
  func.func @transform_9(%arg0: i32, %arg1: i32) -> (i32, i32, i32) {
    %c0_i32 = arith.constant 0 : i32
    %c0_i32_0 = arith.constant 0 : i32
    %c0_i32_1 = arith.constant 0 : i32
    return %arg1, %c0_i32, %c0_i32_0 : i32, i32, i32
  }
  func.func @transform_10(%arg0: i32, %arg1: i32) -> (i32, i32, i32) {
    %c0_i32 = arith.constant 0 : i32
    %c0_i32_0 = arith.constant 0 : i32
    %c0_i32_1 = arith.constant 0 : i32
    return %arg1, %c0_i32, %c0_i32_0 : i32, i32, i32
  }
  func.func @transform_11(%arg0: i32, %arg1: i32) -> (i32, i32, i32) {
    %c0_i32 = arith.constant 0 : i32
    %c0_i32_0 = arith.constant 0 : i32
    %c0_i32_1 = arith.constant 0 : i32
    return %arg1, %c0_i32, %c0_i32_0 : i32, i32, i32
  }
  func.func @transform_12(%arg0: i32, %arg1: i32) -> (i32, i32, i32) {
    %c0_i32 = arith.constant 0 : i32
    %c0_i32_0 = arith.constant 0 : i32
    %c0_i32_1 = arith.constant 0 : i32
    return %arg1, %c0_i32, %c0_i32_0 : i32, i32, i32
  }
  func.func @transform_13(%arg0: i32, %arg1: i32) -> (i32, i32, i32) {
    %c0_i32 = arith.constant 0 : i32
    %c0_i32_0 = arith.constant 0 : i32
    %c0_i32_1 = arith.constant 0 : i32
    return %arg1, %c0_i32, %c0_i32_0 : i32, i32, i32
  }
  func.func @transform_14(%arg0: i32, %arg1: i32) -> (i32, i32, i32) {
    %c0_i32 = arith.constant 0 : i32
    %c0_i32_0 = arith.constant 0 : i32
    %c0_i32_1 = arith.constant 0 : i32
    return %arg0, %c0_i32, %c0_i32_0 : i32, i32, i32
  }
}

</mosaic_0001>

<llo_original>
// kernel: tpu_custom_call.1
$region0: #{tpu_custom_call.1}
  #allocation0 [shape = 'u32[]', space=smem, size = 0x4, offset = 0x4, fixed_abs, tag = 'smem constant byte address 0x4 - core index']
  #allocation1 [shape = 'u32[72,128]{1,0:T(1,128)}', space=vmem, size = 0x9000, scoped, tag = 'internal scratch']
  #allocation2 [shape = 'f32[32,16]{1,0:T(8,128)}', space=vmem, size = 0x4000, scoped, tag = 'scratch operand']
  %s0 = inlined_call_operand.vmem [shape: bf16[2,16,16], index: 0, kind: input, shape index: {}]
  %s1 = inlined_call_operand.vmem [shape: bf16[32,16], index: 1, kind: input, shape index: {}]
  %s2 = inlined_call_operand.vmem [shape: f32[32,1], index: 2, kind: input, shape index: {}]
  %s3 = inlined_call_operand.vmem [shape: bf16[32,32], index: 3, kind: input, shape index: {}]
  %s4 = inlined_call_operand.vmem [shape: f32[32,1], index: 4, kind: input, shape index: {}]
  %s5 = inlined_call_operand.vmem [shape: bf16[2,32,32], index: 5, kind: input, shape index: {}]
  %s6 = inlined_call_operand.vmem [shape: f32[2,32,1], index: 6, kind: input, shape index: {}]
  %s7 = inlined_call_operand.vmem [shape: bf16[2,32,32], index: 7, kind: input, shape index: {}]
  %s8 = inlined_call_operand.vmem [shape: f32[2,32,1], index: 8, kind: input, shape index: {}]
  %s9 = inlined_call_operand.vmem [shape: bf16[2,32,32], index: 9, kind: input, shape index: {}]
  %s10 = inlined_call_operand.vmem [shape: f32[2,32,1], index: 10, kind: input, shape index: {}]
  %s11 = inlined_call_operand.vmem [shape: bf16[2,32,32], index: 11, kind: input, shape index: {}]
  %s12 = inlined_call_operand.vmem [shape: f32[2,32,1], index: 12, kind: input, shape index: {}]
  %s13 = inlined_call_operand.vmem [shape: bf16[2,32,32], index: 13, kind: input, shape index: {}]
  %s14 = inlined_call_operand.vmem [shape: f32[2,32,16], index: 14, kind: output, shape index: {}]
  %s15 = sld [smem:[#allocation0]]
  $region97: #{tpu_custom_call.1} parent=0
    _
  %s17 = ssub.s32 1, %s15
  %s18 = scalar_select 0, %s17, %s15
  loop: start=0, step=1, limit=6
  $region2: #{tpu_custom_call.1} parent=0 // loop_pre_header
    _
  $region3: #{tpu_custom_call.1} parent=0 // loop_header
    %s20 = sphi 0, %s24
    %p21 = scmp.ge.s32.totalorder %s20, 6
    %s27 = sphi 0, %s39
    %s28 = sphi 0, %s35
    %s29 = sphi 0, %s27
    %s30 = sphi 0, %s28
    %s31 = sphi 0, %s29
    %s32 = sphi 0, %s30
    %s42 = sphi 0, %s44
    %s45 = sphi 0, %s42
    %s46 = sphi 0, %s45
    %s62 = sphi 0, %s46
    %s66 = sphi 0, %s66
    %s68 = sphi 0, %s66
    %s69 = sphi 0, %s68
    %s83 = sphi 0, %s69
    %s87 = sphi 0, %s87
    %s89 = sphi 0, %s87
    %s90 = sphi 0, %s89
    %s104 = sphi 0, %s90
    %s108 = sphi 0, %s108
    %s110 = sphi 0, %s108
    %s111 = sphi 0, %s110
    %s125 = sphi 0, %s111
    %s129 = sphi 0, %s129
    %s131 = sphi 0, %s129
    %s132 = sphi 0, %s131
    %s146 = sphi 0, %s132
    %s152 = sphi 0, %s154
    %s155 = sphi 0, %s152
    %s156 = sphi 0, %s155
    %s172 = sphi 0, %s156
    %s178 = sphi 0, %s180
    %s181 = sphi 0, %s178
    %s182 = sphi 0, %s181
    %s198 = sphi 0, %s182
    %s204 = sphi 0, %s206
    %s207 = sphi 0, %s204
    %s208 = sphi 0, %s207
    %s224 = sphi 0, %s208
    %s230 = sphi 0, %s232
    %s233 = sphi 0, %s230
    %s234 = sphi 0, %s233
    %s250 = sphi 0, %s234
    %s256 = sphi 0, %s258
    %s259 = sphi 0, %s256
    %s260 = sphi 0, %s259
    %s276 = sphi 0, %s260
    %s282 = sphi 0, %s284
    %s285 = sphi 0, %s282
    %s286 = sphi 0, %s285
    %s302 = sphi 0, %s286
    %s308 = sphi 0, %s310
    %s311 = sphi 0, %s308
    %s312 = sphi 0, %s311
    %s328 = sphi 0, %s312
    %s334 = sphi 0, %s336
    %s337 = sphi 0, %s334
    %s338 = sphi 0, %s337
    %s354 = sphi 0, %s338
    %s360 = sphi 0, %s362
    %s363 = sphi 0, %s360
    %s364 = sphi 0, %s363
    %s380 = sphi 0, %s364
    %s386 = sphi 0, %s388
    %s389 = sphi 0, %s386
    %s390 = sphi 0, %s389
    %s406 = sphi 0, %s390
  $region4: #{tpu_custom_call.1} parent=0 // loop_header_branch
    %23 = sbr.rel (%p21) target = $region8
  $region5: #{tpu_custom_call.1} parent=0 // loop_body
    %s25 = ssub.s32 %s20, 1
    %s26 = ssub.s32 %s20, 2
    %s33 = sadd.s32 1, %s28
    %p34 = scmp.ge.s32.totalorder %s33, 2
    %s35 = scalar_select %p34, 0, %s33
    %s36 = sadd.s32 1, %s27
    %s37 = scalar_select %p34, %s36, %s27
    %p38 = scmp.ge.s32.totalorder %s37, 2
    %s39 = scalar_select %p38, 0, %s37
    %s40 = ssub.s32 %s27, %s39
    %p41 = scmp.eq.s32.totalorder %s40, 0
    %s43 = sadd.s32 %s42, 1
    %s44 = scalar_select %p41, %s42, %s43
    %p47 = pneg %p41
    %p48 = scmp.eq.s32.totalorder %s20, 3
    %p49 = por %p47, %p48
    %p50 = scmp.ne.s32.totalorder %s42, %s45
    %p51 = scmp.eq.s32.totalorder %s20, 0
    %p52 = por %p50, %p51
    %p53 = scmp.ne.s32.totalorder %s42, %s45
    %p54 = scmp.eq.s32.totalorder %s25, 3
    %p55 = por %p53, %p54
    %p56 = scmp.ne.s32.totalorder %s45, %s46
    %p57 = scmp.eq.s32.totalorder %s25, 0
    %p58 = por %p56, %p57
    %p59 = scmp.ne.s32.totalorder %s45, %s46
    %p60 = scmp.eq.s32.totalorder %s26, 3
    %p61 = por %p59, %p60
    %p63 = scmp.ne.s32.totalorder %s46, %s62
    %p64 = scmp.eq.s32.totalorder %s26, 0
    %p65 = por %p63, %p64
    %s67 = sadd.s32 %s66, 1
    %p70 = scmp.eq.s32.totalorder %s20, 3
    %p71 = scmp.ne.s32.totalorder %s66, %s68
    %p72 = scmp.eq.s32.totalorder %s20, 0
    %p73 = por %p71, %p72
    %p74 = scmp.ne.s32.totalorder %s66, %s68
    %p75 = scmp.eq.s32.totalorder %s25, 3
    %p76 = por %p74, %p75
    %p77 = scmp.ne.s32.totalorder %s68, %s69
    %p78 = scmp.eq.s32.totalorder %s25, 0
    %p79 = por %p77, %p78
    %p80 = scmp.ne.s32.totalorder %s68, %s69
    %p81 = scmp.eq.s32.totalorder %s26, 3
    %p82 = por %p80, %p81
    %p84 = scmp.ne.s32.totalorder %s69, %s83
    %p85 = scmp.eq.s32.totalorder %s26, 0
    %p86 = por %p84, %p85
    %s88 = sadd.s32 %s87, 1
    %p91 = scmp.eq.s32.totalorder %s20, 3
    %p92 = scmp.ne.s32.totalorder %s87, %s89
    %p93 = scmp.eq.s32.totalorder %s20, 0
    %p94 = por %p92, %p93
    %p95 = scmp.ne.s32.totalorder %s87, %s89
    %p96 = scmp.eq.s32.totalorder %s25, 3
    %p97 = por %p95, %p96
    %p98 = scmp.ne.s32.totalorder %s89, %s90
    %p99 = scmp.eq.s32.totalorder %s25, 0
    %p100 = por %p98, %p99
    %p101 = scmp.ne.s32.totalorder %s89, %s90
    %p102 = scmp.eq.s32.totalorder %s26, 3
    %p103 = por %p101, %p102
    %p105 = scmp.ne.s32.totalorder %s90, %s104
    %p106 = scmp.eq.s32.totalorder %s26, 0
    %p107 = por %p105, %p106
    %s109 = sadd.s32 %s108, 1
    %p112 = scmp.eq.s32.totalorder %s20, 3
    %p113 = scmp.ne.s32.totalorder %s108, %s110
    %p114 = scmp.eq.s32.totalorder %s20, 0
    %p115 = por %p113, %p114
    %p116 = scmp.ne.s32.totalorder %s108, %s110
    %p117 = scmp.eq.s32.totalorder %s25, 3
    %p118 = por %p116, %p117
    %p119 = scmp.ne.s32.totalorder %s110, %s111
    %p120 = scmp.eq.s32.totalorder %s25, 0
    %p121 = por %p119, %p120
    %p122 = scmp.ne.s32.totalorder %s110, %s111
    %p123 = scmp.eq.s32.totalorder %s26, 3
    %p124 = por %p122, %p123
    %p126 = scmp.ne.s32.totalorder %s111, %s125
    %p127 = scmp.eq.s32.totalorder %s26, 0
    %p128 = por %p126, %p127
    %s130 = sadd.s32 %s129, 1
    %p133 = scmp.eq.s32.totalorder %s20, 3
    %p134 = scmp.ne.s32.totalorder %s129, %s131
    %p135 = scmp.eq.s32.totalorder %s20, 0
    %p136 = por %p134, %p135
    %p137 = scmp.ne.s32.totalorder %s129, %s131
    %p138 = scmp.eq.s32.totalorder %s25, 3
    %p139 = por %p137, %p138
    %p140 = scmp.ne.s32.totalorder %s131, %s132
    %p141 = scmp.eq.s32.totalorder %s25, 0
    %p142 = por %p140, %p141
    %p143 = scmp.ne.s32.totalorder %s131, %s132
    %p144 = scmp.eq.s32.totalorder %s26, 3
    %p145 = por %p143, %p144
    %p147 = scmp.ne.s32.totalorder %s132, %s146
    %p148 = scmp.eq.s32.totalorder %s26, 0
    %p149 = por %p147, %p148
    %s150 = ssub.s32 %s28, %s35
    %p151 = scmp.eq.s32.totalorder %s150, 0
    %s153 = sadd.s32 %s152, 1
    %s154 = scalar_select %p151, %s152, %s153
    %p157 = pneg %p151
    %p158 = scmp.eq.s32.totalorder %s20, 3
    %p159 = por %p157, %p158
    %p160 = scmp.ne.s32.totalorder %s152, %s155
    %p161 = scmp.eq.s32.totalorder %s20, 0
    %p162 = por %p160, %p161
    %p163 = scmp.ne.s32.totalorder %s152, %s155
    %p164 = scmp.eq.s32.totalorder %s25, 3
    %p165 = por %p163, %p164
    %p166 = scmp.ne.s32.totalorder %s155, %s156
    %p167 = scmp.eq.s32.totalorder %s25, 0
    %p168 = por %p166, %p167
    %p169 = scmp.ne.s32.totalorder %s155, %s156
    %p170 = scmp.eq.s32.totalorder %s26, 3
    %p171 = por %p169, %p170
    %p173 = scmp.ne.s32.totalorder %s156, %s172
    %p174 = scmp.eq.s32.totalorder %s26, 0
    %p175 = por %p173, %p174
    %s176 = ssub.s32 %s28, %s35
    %p177 = scmp.eq.s32.totalorder %s176, 0
    %s179 = sadd.s32 %s178, 1
    %s180 = scalar_select %p177, %s178, %s179
    %p183 = pneg %p177
    %p184 = scmp.eq.s32.totalorder %s20, 3
    %p185 = por %p183, %p184
    %p186 = scmp.ne.s32.totalorder %s178, %s181
    %p187 = scmp.eq.s32.totalorder %s20, 0
    %p188 = por %p186, %p187
    %p189 = scmp.ne.s32.totalorder %s178, %s181
    %p190 = scmp.eq.s32.totalorder %s25, 3
    %p191 = por %p189, %p190
    %p192 = scmp.ne.s32.totalorder %s181, %s182
    %p193 = scmp.eq.s32.totalorder %s25, 0
    %p194 = por %p192, %p193
    %p195 = scmp.ne.s32.totalorder %s181, %s182
    %p196 = scmp.eq.s32.totalorder %s26, 3
    %p197 = por %p195, %p196
    %p199 = scmp.ne.s32.totalorder %s182, %s198
    %p200 = scmp.eq.s32.totalorder %s26, 0
    %p201 = por %p199, %p200
    %s202 = ssub.s32 %s28, %s35
    %p203 = scmp.eq.s32.totalorder %s202, 0
    %s205 = sadd.s32 %s204, 1
    %s206 = scalar_select %p203, %s204, %s205
    %p209 = pneg %p203
    %p210 = scmp.eq.s32.totalorder %s20, 3
    %p211 = por %p209, %p210
    %p212 = scmp.ne.s32.totalorder %s204, %s207
    %p213 = scmp.eq.s32.totalorder %s20, 0
    %p214 = por %p212, %p213
    %p215 = scmp.ne.s32.totalorder %s204, %s207
    %p216 = scmp.eq.s32.totalorder %s25, 3
    %p217 = por %p215, %p216
    %p218 = scmp.ne.s32.totalorder %s207, %s208
    %p219 = scmp.eq.s32.totalorder %s25, 0
    %p220 = por %p218, %p219
    %p221 = scmp.ne.s32.totalorder %s207, %s208
    %p222 = scmp.eq.s32.totalorder %s26, 3
    %p223 = por %p221, %p222
    %p225 = scmp.ne.s32.totalorder %s208, %s224
    %p226 = scmp.eq.s32.totalorder %s26, 0
    %p227 = por %p225, %p226
    %s228 = ssub.s32 %s28, %s35
    %p229 = scmp.eq.s32.totalorder %s228, 0
    %s231 = sadd.s32 %s230, 1
    %s232 = scalar_select %p229, %s230, %s231
    %p235 = pneg %p229
    %p236 = scmp.eq.s32.totalorder %s20, 3
    %p237 = por %p235, %p236
    %p238 = scmp.ne.s32.totalorder %s230, %s233
    %p239 = scmp.eq.s32.totalorder %s20, 0
    %p240 = por %p238, %p239
    %p241 = scmp.ne.s32.totalorder %s230, %s233
    %p242 = scmp.eq.s32.totalorder %s25, 3
    %p243 = por %p241, %p242
    %p244 = scmp.ne.s32.totalorder %s233, %s234
    %p245 = scmp.eq.s32.totalorder %s25, 0
    %p246 = por %p244, %p245
    %p247 = scmp.ne.s32.totalorder %s233, %s234
    %p248 = scmp.eq.s32.totalorder %s26, 3
    %p249 = por %p247, %p248
    %p251 = scmp.ne.s32.totalorder %s234, %s250
    %p252 = scmp.eq.s32.totalorder %s26, 0
    %p253 = por %p251, %p252
    %s254 = ssub.s32 %s28, %s35
    %p255 = scmp.eq.s32.totalorder %s254, 0
    %s257 = sadd.s32 %s256, 1
    %s258 = scalar_select %p255, %s256, %s257
    %p261 = pneg %p255
    %p262 = scmp.eq.s32.totalorder %s20, 3
    %p263 = por %p261, %p262
    %p264 = scmp.ne.s32.totalorder %s256, %s259
    %p265 = scmp.eq.s32.totalorder %s20, 0
    %p266 = por %p264, %p265
    %p267 = scmp.ne.s32.totalorder %s256, %s259
    %p268 = scmp.eq.s32.totalorder %s25, 3
    %p269 = por %p267, %p268
    %p270 = scmp.ne.s32.totalorder %s259, %s260
    %p271 = scmp.eq.s32.totalorder %s25, 0
    %p272 = por %p270, %p271
    %p273 = scmp.ne.s32.totalorder %s259, %s260
    %p274 = scmp.eq.s32.totalorder %s26, 3
    %p275 = por %p273, %p274
    %p277 = scmp.ne.s32.totalorder %s260, %s276
    %p278 = scmp.eq.s32.totalorder %s26, 0
    %p279 = por %p277, %p278
    %s280 = ssub.s32 %s28, %s35
    %p281 = scmp.eq.s32.totalorder %s280, 0
    %s283 = sadd.s32 %s282, 1
    %s284 = scalar_select %p281, %s282, %s283
    %p287 = pneg %p281
    %p288 = scmp.eq.s32.totalorder %s20, 3
    %p289 = por %p287, %p288
    %p290 = scmp.ne.s32.totalorder %s282, %s285
    %p291 = scmp.eq.s32.totalorder %s20, 0
    %p292 = por %p290, %p291
    %p293 = scmp.ne.s32.totalorder %s282, %s285
    %p294 = scmp.eq.s32.totalorder %s25, 3
    %p295 = por %p293, %p294
    %p296 = scmp.ne.s32.totalorder %s285, %s286
    %p297 = scmp.eq.s32.totalorder %s25, 0
    %p298 = por %p296, %p297
    %p299 = scmp.ne.s32.totalorder %s285, %s286
    %p300 = scmp.eq.s32.totalorder %s26, 3
    %p301 = por %p299, %p300
    %p303 = scmp.ne.s32.totalorder %s286, %s302
    %p304 = scmp.eq.s32.totalorder %s26, 0
    %p305 = por %p303, %p304
    %s306 = ssub.s32 %s28, %s35
    %p307 = scmp.eq.s32.totalorder %s306, 0
    %s309 = sadd.s32 %s308, 1
    %s310 = scalar_select %p307, %s308, %s309
    %p313 = pneg %p307
    %p314 = scmp.eq.s32.totalorder %s20, 3
    %p315 = por %p313, %p314
    %p316 = scmp.ne.s32.totalorder %s308, %s311
    %p317 = scmp.eq.s32.totalorder %s20, 0
    %p318 = por %p316, %p317
    %p319 = scmp.ne.s32.totalorder %s308, %s311
    %p320 = scmp.eq.s32.totalorder %s25, 3
    %p321 = por %p319, %p320
    %p322 = scmp.ne.s32.totalorder %s311, %s312
    %p323 = scmp.eq.s32.totalorder %s25, 0
    %p324 = por %p322, %p323
    %p325 = scmp.ne.s32.totalorder %s311, %s312
    %p326 = scmp.eq.s32.totalorder %s26, 3
    %p327 = por %p325, %p326
    %p329 = scmp.ne.s32.totalorder %s312, %s328
    %p330 = scmp.eq.s32.totalorder %s26, 0
    %p331 = por %p329, %p330
    %s332 = ssub.s32 %s28, %s35
    %p333 = scmp.eq.s32.totalorder %s332, 0
    %s335 = sadd.s32 %s334, 1
    %s336 = scalar_select %p333, %s334, %s335
    %p339 = pneg %p333
    %p340 = scmp.eq.s32.totalorder %s20, 3
    %p341 = por %p339, %p340
    %p342 = scmp.ne.s32.totalorder %s334, %s337
    %p343 = scmp.eq.s32.totalorder %s20, 0
    %p344 = por %p342, %p343
    %p345 = scmp.ne.s32.totalorder %s334, %s337
    %p346 = scmp.eq.s32.totalorder %s25, 3
    %p347 = por %p345, %p346
    %p348 = scmp.ne.s32.totalorder %s337, %s338
    %p349 = scmp.eq.s32.totalorder %s25, 0
    %p350 = por %p348, %p349
    %p351 = scmp.ne.s32.totalorder %s337, %s338
    %p352 = scmp.eq.s32.totalorder %s26, 3
    %p353 = por %p351, %p352
    %p355 = scmp.ne.s32.totalorder %s338, %s354
    %p356 = scmp.eq.s32.totalorder %s26, 0
    %p357 = por %p355, %p356
    %s358 = ssub.s32 %s28, %s35
    %p359 = scmp.eq.s32.totalorder %s358, 0
    %s361 = sadd.s32 %s360, 1
    %s362 = scalar_select %p359, %s360, %s361
    %p365 = pneg %p359
    %p366 = scmp.eq.s32.totalorder %s20, 3
    %p367 = por %p365, %p366
    %p368 = scmp.ne.s32.totalorder %s360, %s363
    %p369 = scmp.eq.s32.totalorder %s20, 0
    %p370 = por %p368, %p369
    %p371 = scmp.ne.s32.totalorder %s360, %s363
    %p372 = scmp.eq.s32.totalorder %s25, 3
    %p373 = por %p371, %p372
    %p374 = scmp.ne.s32.totalorder %s363, %s364
    %p375 = scmp.eq.s32.totalorder %s25, 0
    %p376 = por %p374, %p375
    %p377 = scmp.ne.s32.totalorder %s363, %s364
    %p378 = scmp.eq.s32.totalorder %s26, 3
    %p379 = por %p377, %p378
    %p381 = scmp.ne.s32.totalorder %s364, %s380
    %p382 = scmp.eq.s32.totalorder %s26, 0
    %p383 = por %p381, %p382
    %s384 = ssub.s32 %s27, %s39
    %p385 = scmp.eq.s32.totalorder %s384, 0
    %s387 = sadd.s32 %s386, 1
    %s388 = scalar_select %p385, %s386, %s387
    %p391 = pneg %p385
    %p392 = scmp.eq.s32.totalorder %s20, 3
    %p393 = por %p391, %p392
    %p394 = scmp.ne.s32.totalorder %s386, %s389
    %p395 = scmp.eq.s32.totalorder %s20, 0
    %p396 = por %p394, %p395
    %p397 = scmp.ne.s32.totalorder %s386, %s389
    %p398 = scmp.eq.s32.totalorder %s25, 3
    %p399 = por %p397, %p398
    %p400 = scmp.ne.s32.totalorder %s389, %s390
    %p401 = scmp.eq.s32.totalorder %s25, 0
    %p402 = por %p400, %p401
    %p403 = scmp.ne.s32.totalorder %s389, %s390
    %p404 = scmp.eq.s32.totalorder %s26, 3
    %p405 = por %p403, %p404
    %p407 = scmp.ne.s32.totalorder %s390, %s406
    %p408 = scmp.eq.s32.totalorder %s26, 0
    %p409 = por %p407, %p408
    %p410 = scmp.le.s32.totalorder 1, %s20
    %p411 = scmp.lt.s32.totalorder %s20, 5
    %p412 = pnand %p410, %p411
    %p413 = pneg %p412
    // Predicated region
    $region9: #{tpu_custom_call.1} parent=5 // pred_check
      _
    $region10: #{tpu_custom_call.1} parent=5 // pred_check_branch
      %415 = sbr.rel (%p412) target = $region12
    $region11: #{tpu_custom_call.1} parent=5 // pred_region
      %s416 = ssub.s32 %s20, 1
      // Predicated region
      $region13: #{tpu_custom_call.1} parent=11 // pred_check
        %p417 = pneg %p79
      $region14: #{tpu_custom_call.1} parent=11 // pred_check_branch
        %419 = sbr.rel (%p417) target = $region16
      $region15: #{tpu_custom_call.1} parent=11 // pred_region
        _
      $region16: #{tpu_custom_call.1} parent=11 // pred_fallthru
        _
      // Predicated region
      $region17: #{tpu_custom_call.1} parent=11 // pred_check
        %p420 = pneg %p100
      $region18: #{tpu_custom_call.1} parent=11 // pred_check_branch
        %422 = sbr.rel (%p420) target = $region20
      $region19: #{tpu_custom_call.1} parent=11 // pred_region
        _
      $region20: #{tpu_custom_call.1} parent=11 // pred_fallthru
        _
      // Predicated region
      $region21: #{tpu_custom_call.1} parent=11 // pred_check
        %p423 = pneg %p121
      $region22: #{tpu_custom_call.1} parent=11 // pred_check_branch
        %425 = sbr.rel (%p423) target = $region24
      $region23: #{tpu_custom_call.1} parent=11 // pred_region
        _
      $region24: #{tpu_custom_call.1} parent=11 // pred_fallthru
        _
      // Predicated region
      $region25: #{tpu_custom_call.1} parent=11 // pred_check
        %p426 = pneg %p142
      $region26: #{tpu_custom_call.1} parent=11 // pred_check_branch
        %428 = sbr.rel (%p426) target = $region28
      $region27: #{tpu_custom_call.1} parent=11 // pred_region
        _
      $region28: #{tpu_custom_call.1} parent=11 // pred_fallthru
        _
    $region12: #{tpu_custom_call.1} parent=5 // pred_fallthru
      _
    %p429 = scmp.lt.s32.totalorder %s20, 4
    // Predicated region
    $region29: #{tpu_custom_call.1} parent=5 // pred_check
      %p430 = pneg %p429
    $region30: #{tpu_custom_call.1} parent=5 // pred_check_branch
      %432 = sbr.rel (%p430) target = $region32
    $region31: #{tpu_custom_call.1} parent=5 // pred_region
      // Predicated region
      $region33: #{tpu_custom_call.1} parent=31 // pred_check
        %p433 = pneg %p52
      $region34: #{tpu_custom_call.1} parent=31 // pred_check_branch
        %435 = sbr.rel (%p433) target = $region36
      $region35: #{tpu_custom_call.1} parent=31 // pred_region
        %p436 = scmp.lt.s32.totalorder %s27, 1
        %s437 = scalar_select %p436, %s27, 1
        %s438 = smul.addr %s437, 2
        %s439 = smul.addr %s438, 4
        %s440 = scalar_lea.vmem %s0, %s439
      $region36: #{tpu_custom_call.1} parent=31 // pred_fallthru
        _
      // Predicated region
      $region37: #{tpu_custom_call.1} parent=31 // pred_check
        %p441 = pneg %p162
      $region38: #{tpu_custom_call.1} parent=31 // pred_check_branch
        %443 = sbr.rel (%p441) target = $region40
      $region39: #{tpu_custom_call.1} parent=31 // pred_region
        %p444 = scmp.lt.s32.totalorder %s28, 1
        %s445 = scalar_select %p444, %s28, 1
        %s446 = smul.addr %s445, 4
        %s447 = smul.addr %s446, 4
        %s448 = scalar_lea.vmem %s5, %s447
      $region40: #{tpu_custom_call.1} parent=31 // pred_fallthru
        _
      // Predicated region
      $region41: #{tpu_custom_call.1} parent=31 // pred_check
        %p449 = pneg %p188
      $region42: #{tpu_custom_call.1} parent=31 // pred_check_branch
        %451 = sbr.rel (%p449) target = $region44
      $region43: #{tpu_custom_call.1} parent=31 // pred_region
        %p452 = scmp.lt.s32.totalorder %s28, 1
        %s453 = scalar_select %p452, %s28, 1
        %s454 = smul.addr %s453, 4
        %s455 = smul.addr %s454, 8
        %s456 = scalar_lea.vmem %s6, %s455
      $region44: #{tpu_custom_call.1} parent=31 // pred_fallthru
        _
      // Predicated region
      $region45: #{tpu_custom_call.1} parent=31 // pred_check
        %p457 = pneg %p214
      $region46: #{tpu_custom_call.1} parent=31 // pred_check_branch
        %459 = sbr.rel (%p457) target = $region48
      $region47: #{tpu_custom_call.1} parent=31 // pred_region
        %p460 = scmp.lt.s32.totalorder %s28, 1
        %s461 = scalar_select %p460, %s28, 1
        %s462 = smul.addr %s461, 4
        %s463 = smul.addr %s462, 4
        %s464 = scalar_lea.vmem %s7, %s463
      $region48: #{tpu_custom_call.1} parent=31 // pred_fallthru
        _
      // Predicated region
      $region49: #{tpu_custom_call.1} parent=31 // pred_check
        %p465 = pneg %p240
      $region50: #{tpu_custom_call.1} parent=31 // pred_check_branch
        %467 = sbr.rel (%p465) target = $region52
      $region51: #{tpu_custom_call.1} parent=31 // pred_region
        %p468 = scmp.lt.s32.totalorder %s28, 1
        %s469 = scalar_select %p468, %s28, 1
        %s470 = smul.addr %s469, 4
        %s471 = smul.addr %s470, 8
        %s472 = scalar_lea.vmem %s8, %s471
      $region52: #{tpu_custom_call.1} parent=31 // pred_fallthru
        _
      // Predicated region
      $region53: #{tpu_custom_call.1} parent=31 // pred_check
        %p473 = pneg %p266
      $region54: #{tpu_custom_call.1} parent=31 // pred_check_branch
        %475 = sbr.rel (%p473) target = $region56
      $region55: #{tpu_custom_call.1} parent=31 // pred_region
        %p476 = scmp.lt.s32.totalorder %s28, 1
        %s477 = scalar_select %p476, %s28, 1
        %s478 = smul.addr %s477, 4
        %s479 = smul.addr %s478, 4
        %s480 = scalar_lea.vmem %s9, %s479
      $region56: #{tpu_custom_call.1} parent=31 // pred_fallthru
        _
      // Predicated region
      $region57: #{tpu_custom_call.1} parent=31 // pred_check
        %p481 = pneg %p292
      $region58: #{tpu_custom_call.1} parent=31 // pred_check_branch
        %483 = sbr.rel (%p481) target = $region60
      $region59: #{tpu_custom_call.1} parent=31 // pred_region
        %p484 = scmp.lt.s32.totalorder %s28, 1
        %s485 = scalar_select %p484, %s28, 1
        %s486 = smul.addr %s485, 4
        %s487 = smul.addr %s486, 8
        %s488 = scalar_lea.vmem %s10, %s487
      $region60: #{tpu_custom_call.1} parent=31 // pred_fallthru
        _
      // Predicated region
      $region61: #{tpu_custom_call.1} parent=31 // pred_check
        %p489 = pneg %p318
      $region62: #{tpu_custom_call.1} parent=31 // pred_check_branch
        %491 = sbr.rel (%p489) target = $region64
      $region63: #{tpu_custom_call.1} parent=31 // pred_region
        %p492 = scmp.lt.s32.totalorder %s28, 1
        %s493 = scalar_select %p492, %s28, 1
        %s494 = smul.addr %s493, 4
        %s495 = smul.addr %s494, 4
        %s496 = scalar_lea.vmem %s11, %s495
      $region64: #{tpu_custom_call.1} parent=31 // pred_fallthru
        _
      // Predicated region
      $region65: #{tpu_custom_call.1} parent=31 // pred_check
        %p497 = pneg %p344
      $region66: #{tpu_custom_call.1} parent=31 // pred_check_branch
        %499 = sbr.rel (%p497) target = $region68
      $region67: #{tpu_custom_call.1} parent=31 // pred_region
        %p500 = scmp.lt.s32.totalorder %s28, 1
        %s501 = scalar_select %p500, %s28, 1
        %s502 = smul.addr %s501, 4
        %s503 = smul.addr %s502, 8
        %s504 = scalar_lea.vmem %s12, %s503
      $region68: #{tpu_custom_call.1} parent=31 // pred_fallthru
        _
      // Predicated region
      $region69: #{tpu_custom_call.1} parent=31 // pred_check
        %p505 = pneg %p370
      $region70: #{tpu_custom_call.1} parent=31 // pred_check_branch
        %507 = sbr.rel (%p505) target = $region72
      $region71: #{tpu_custom_call.1} parent=31 // pred_region
        %p508 = scmp.lt.s32.totalorder %s28, 1
        %s509 = scalar_select %p508, %s28, 1
        %s510 = smul.addr %s509, 4
        %s511 = smul.addr %s510, 4
        %s512 = scalar_lea.vmem %s13, %s511
      $region72: #{tpu_custom_call.1} parent=31 // pred_fallthru
        _
    $region32: #{tpu_custom_call.1} parent=5 // pred_fallthru
      _
    %p513 = scmp.le.s32.totalorder 1, %s20
    %p514 = scmp.lt.s32.totalorder %s20, 5
    %p515 = pnand %p513, %p514
    %p516 = pneg %p515
    // Predicated region
    $region73: #{tpu_custom_call.1} parent=5 // pred_check
      _
    $region74: #{tpu_custom_call.1} parent=5 // pred_check_branch
      %518 = sbr.rel (%p515) target = $region76
    $region75: #{tpu_custom_call.1} parent=5 // pred_region
      %s519 = ssub.s32 %s20, 1
      %p520 = scmp.lt.s32.totalorder %s29, 1
      %s521 = scalar_select %p520, %s29, 1
      %s522 = smul.addr %s521, 2
      %s523 = smul.addr %s522, 4
      %s524 = scalar_lea.vmem %s0, %s523
      %p525 = pneg %p58
      %p526 = pneg %p55
      %p527 = pneg %p79
      %p528 = pneg %p76
      %p529 = pneg %p100
      %p530 = pneg %p97
      %p531 = pneg %p121
      %p532 = pneg %p118
      %p533 = pneg %p142
      %p534 = pneg %p139
      %p535 = scmp.lt.s32.totalorder %s30, 1
      %s536 = scalar_select %p535, %s30, 1
      %s537 = smul.addr %s536, 4
      %s538 = smul.addr %s537, 4
      %s539 = scalar_lea.vmem %s5, %s538
      %p540 = pneg %p168
      %p541 = pneg %p165
      %p542 = scmp.lt.s32.totalorder %s30, 1
      %s543 = scalar_select %p542, %s30, 1
      %s544 = smul.addr %s543, 4
      %s545 = smul.addr %s544, 8
      %s546 = scalar_lea.vmem %s6, %s545
      %p547 = pneg %p194
      %p548 = pneg %p191
      %p549 = scmp.lt.s32.totalorder %s30, 1
      %s550 = scalar_select %p549, %s30, 1
      %s551 = smul.addr %s550, 4
      %s552 = smul.addr %s551, 4
      %s553 = scalar_lea.vmem %s7, %s552
      %p554 = pneg %p220
      %p555 = pneg %p217
      %p556 = scmp.lt.s32.totalorder %s30, 1
      %s557 = scalar_select %p556, %s30, 1
      %s558 = smul.addr %s557, 4
      %s559 = smul.addr %s558, 8
      %s560 = scalar_lea.vmem %s8, %s559
      %p561 = pneg %p246
      %p562 = pneg %p243
      %p563 = scmp.lt.s32.totalorder %s30, 1
      %s564 = scalar_select %p563, %s30, 1
      %s565 = smul.addr %s564, 4
      %s566 = smul.addr %s565, 4
      %s567 = scalar_lea.vmem %s9, %s566
      %p568 = pneg %p272
      %p569 = pneg %p269
      %p570 = scmp.lt.s32.totalorder %s30, 1
      %s571 = scalar_select %p570, %s30, 1
      %s572 = smul.addr %s571, 4
      %s573 = smul.addr %s572, 8
      %s574 = scalar_lea.vmem %s10, %s573
      %p575 = pneg %p298
      %p576 = pneg %p295
      %p577 = scmp.lt.s32.totalorder %s30, 1
      %s578 = scalar_select %p577, %s30, 1
      %s579 = smul.addr %s578, 4
      %s580 = smul.addr %s579, 4
      %s581 = scalar_lea.vmem %s11, %s580
      %p582 = pneg %p324
      %p583 = pneg %p321
      %p584 = scmp.lt.s32.totalorder %s30, 1
      %s585 = scalar_select %p584, %s30, 1
      %s586 = smul.addr %s585, 4
      %s587 = smul.addr %s586, 8
      %s588 = scalar_lea.vmem %s12, %s587
      %p589 = pneg %p350
      %p590 = pneg %p347
      %p591 = scmp.lt.s32.totalorder %s30, 1
      %s592 = scalar_select %p591, %s30, 1
      %s593 = smul.addr %s592, 4
      %s594 = smul.addr %s593, 4
      %s595 = scalar_lea.vmem %s13, %s594
      %p596 = pneg %p376
      %p597 = pneg %p373
      %p598 = pneg %p402
      %p599 = pneg %p399
      %p600 = scmp.lt.s32.totalorder %s29, 1
      %s601 = scalar_select %p600, %s29, 1
      %s602 = smul.addr %s601, 4
      %s603 = smul.addr %s602, 8
      %s604 = scalar_lea.vmem %s14, %s603
      %p605 = scmp.lt.s32.totalorder %s29, 1
      %s606 = scalar_select %p605, %s29, 1
      %s607 = smul.addr %s606, 2
      %s608 = smul.addr %s607, 4
      %s609 = scalar_lea.vmem %s0, %s608
      %p610 = scmp.lt.s32.totalorder %s30, 1
      %s611 = scalar_select %p610, %s30, 1
      %s612 = smul.addr %s611, 4
      %s613 = smul.addr %s612, 4
      %s614 = scalar_lea.vmem %s5, %s613
      %p615 = scmp.lt.s32.totalorder %s30, 1
      %s616 = scalar_select %p615, %s30, 1
      %s617 = smul.addr %s616, 4
      %s618 = smul.addr %s617, 8
      %s619 = scalar_lea.vmem %s6, %s618
      %p620 = scmp.lt.s32.totalorder %s30, 1
      %s621 = scalar_select %p620, %s30, 1
      %s622 = smul.addr %s621, 4
      %s623 = smul.addr %s622, 4
      %s624 = scalar_lea.vmem %s7, %s623
      %p625 = scmp.lt.s32.totalorder %s30, 1
      %s626 = scalar_select %p625, %s30, 1
      %s627 = smul.addr %s626, 4
      %s628 = smul.addr %s627, 8
      %s629 = scalar_lea.vmem %s8, %s628
      %p630 = scmp.lt.s32.totalorder %s30, 1
      %s631 = scalar_select %p630, %s30, 1
      %s632 = smul.addr %s631, 4
      %s633 = smul.addr %s632, 4
      %s634 = scalar_lea.vmem %s9, %s633
      %p635 = scmp.lt.s32.totalorder %s30, 1
      %s636 = scalar_select %p635, %s30, 1
      %s637 = smul.addr %s636, 4
      %s638 = smul.addr %s637, 8
      %s639 = scalar_lea.vmem %s10, %s638
      %p640 = scmp.lt.s32.totalorder %s30, 1
      %s641 = scalar_select %p640, %s30, 1
      %s642 = smul.addr %s641, 4
      %s643 = smul.addr %s642, 4
      %s644 = scalar_lea.vmem %s11, %s643
      %p645 = scmp.lt.s32.totalorder %s30, 1
      %s646 = scalar_select %p645, %s30, 1
      %s647 = smul.addr %s646, 4
      %s648 = smul.addr %s647, 8
      %s649 = scalar_lea.vmem %s12, %s648
      %p650 = scmp.lt.s32.totalorder %s30, 1
      %s651 = scalar_select %p650, %s30, 1
      %s652 = smul.addr %s651, 4
      %s653 = smul.addr %s652, 4
      %s654 = scalar_lea.vmem %s13, %s653
      %p655 = scmp.lt.s32.totalorder %s29, 1
      %s656 = scalar_select %p655, %s29, 1
      %s657 = smul.addr %s656, 4
      %s658 = smul.addr %s657, 8
      %s659 = scalar_lea.vmem %s14, %s658
      %p661 = scmp.eq.s32.totalorder %s30, 0
      // Predicated region
      $region77: #{tpu_custom_call.1} parent=75 // pred_check
        %p662 = pneg %p661
      $region78: #{tpu_custom_call.1} parent=75 // pred_check_branch
        %664 = sbr.rel (%p662) target = $region80
      $region79: #{tpu_custom_call.1} parent=75 // pred_region
        %v665 = vld [vmem:[%s1] sm:$0xf]
        %v666 = vld [vmem:[%s1 + $0x4] sm:$0xf]
        %v667 = vld [vmem:[%s1 + $0x8] sm:$0xf]
        %v668 = vld [vmem:[%s1 + $0xc] sm:$0xf]
        %v669 = vld [vmem:[%s609] sm:$0xf]
        %v670 = vld [vmem:[%s609 + $0x4] sm:$0xf]
        %v671 = vld [vmem:[%s2] sm:$0xff]
        %v672 = vld [vmem:[%s2 + $0x8] sm:$0xff]
        %v673 = vld [vmem:[%s2 + $0x10] sm:$0xff]
        %v674 = vld [vmem:[%s2 + $0x18] sm:$0xff]
        %676 = vset.pattern.permute.xlu0 0
        %677 = vperm.xlu0 %676, %v671
        %v678 = vpop.permute.xlu0 %677
        %681 = vset.pattern.permute.xlu0 0
        %682 = vperm.xlu0 %681, %v672
        %v683 = vpop.permute.xlu0 %682
        %686 = vset.pattern.permute.xlu0 0
        %687 = vperm.xlu0 %686, %v673
        %v688 = vpop.permute.xlu0 %687
        %691 = vset.pattern.permute.xlu0 0
        %692 = vperm.xlu0 %691, %v674
        %v693 = vpop.permute.xlu0 %692
        %v699 = vunpack.c.l.b16 %v665
        %v700 = vunpack.c.l.b16 %v666
        %v701 = vunpack.c.l.b16 %v667
        %v702 = vunpack.c.l.b16 %v668
        %v703 = vpack.c.b16 %v700, %v699
        %v704 = vpack.c.b16 %v702, %v701
        %v707 = vunpack.c.l.b16 %v669
        %v708 = vunpack.c.l.b16 %v670
        %v709 = vpack.c.b16 %v708, %v707
        %vm711 = vcmask 130048
        %v713 = vsel %vm711, %v703, 0
        %v716 = vsel %vm711, %v704, 0
        %718 = vmatpush.bf16.msra.mxu0 0
        %719 = vmatpush.bf16.msra.mxu0 0
        %720 = vmatpush.bf16.msra.mxu0 0
        %721 = vmatpush.bf16.msra.mxu0 0
        %722 = vmatpush.bf16.msra.mxu0 0
        %723 = vmatpush.bf16.msra.mxu0 0
        %724 = vmatpush.bf16.msra.mxu0 0
        %725 = vmatpush.bf16.msra.mxu0 %v709
        %726 = vmatmul.bf16.gmra.mxu0 %v713
        %v727 = vpop.f32.mrf.mxu0
        %v728 = vadd.f32 %v678, %v727
        %v729 = vpop.f32.mrf.mxu0
        %v730 = vadd.f32 %v683, %v729
        %731 = vmatmul.bf16.gmra.mxu0 %v716
        %v732 = vpop.f32.mrf.mxu0
        %v733 = vadd.f32 %v688, %v732
        %v734 = vpop.f32.mrf.mxu0
        %v735 = vadd.f32 %v693, %v734
        %736 = vdwg.mxu0
        %v737 = vsub.f32 0.0, %v728
        %v738 = vsub.f32 0.0, %v730
        %v739 = vsub.f32 0.0, %v733
        %v740 = vsub.f32 0.0, %v735
        %v741 = vmul.f32 %v737, 1.442695
        %v742 = vpow.pop %v741
        %v743 = vmul.f32 %v738, 1.442695
        %v744 = vpow.pop %v743
        %v745 = vmul.f32 %v739, 1.442695
        %v746 = vpow.pop %v745
        %v747 = vmul.f32 %v740, 1.442695
        %v748 = vpow.pop %v747
        %v749 = vadd.f32 %v742, 1.0
        %v750 = vadd.f32 %v744, 1.0
        %v751 = vadd.f32 %v746, 1.0
        %v752 = vadd.f32 %v748, 1.0
        %v753 = vrcp.pop %v749
        %v754 = vmul.f32 %v749, %v753
        %v755 = vsub.f32 1.0, %v754
        %v756 = vmul.f32 %v753, %v755
        %v757 = vadd.f32 %v753, %v756
        %vm758 = vweird.f32 %v749
        %vm759 = vweird.f32 %v753
        %vm760 = vmor %vm758, %vm759
        %v761 = vsel %vm760, %v753, %v757
        %v762 = vand.u32 2147483647, %v749
        %vm763 = vcmp.eq.f32.partialorder %v762, 8.507059e+37
        %v764 = vand.u32 %v749, 2147483648
        %v765 = vor.u32 1.1754944e-38, %v764
        %v766 = vsel %vm763, %v765, %v761
        %v767 = vmul.f32 1.0, %v766
        %v768 = vrcp.pop %v750
        %v769 = vmul.f32 %v750, %v768
        %v770 = vsub.f32 1.0, %v769
        %v771 = vmul.f32 %v768, %v770
        %v772 = vadd.f32 %v768, %v771
        %vm773 = vweird.f32 %v750
        %vm774 = vweird.f32 %v768
        %vm775 = vmor %vm773, %vm774
        %v776 = vsel %vm775, %v768, %v772
        %v777 = vand.u32 2147483647, %v750
        %vm778 = vcmp.eq.f32.partialorder %v777, 8.507059e+37
        %v779 = vand.u32 %v750, 2147483648
        %v780 = vor.u32 1.1754944e-38, %v779
        %v781 = vsel %vm778, %v780, %v776
        %v782 = vmul.f32 1.0, %v781
        %v783 = vrcp.pop %v751
        %v784 = vmul.f32 %v751, %v783
        %v785 = vsub.f32 1.0, %v784
        %v786 = vmul.f32 %v783, %v785
        %v787 = vadd.f32 %v783, %v786
        %vm788 = vweird.f32 %v751
        %vm789 = vweird.f32 %v783
        %vm790 = vmor %vm788, %vm789
        %v791 = vsel %vm790, %v783, %v787
        %v792 = vand.u32 2147483647, %v751
        %vm793 = vcmp.eq.f32.partialorder %v792, 8.507059e+37
        %v794 = vand.u32 %v751, 2147483648
        %v795 = vor.u32 1.1754944e-38, %v794
        %v796 = vsel %vm793, %v795, %v791
        %v797 = vmul.f32 1.0, %v796
        %v798 = vrcp.pop %v752
        %v799 = vmul.f32 %v752, %v798
        %v800 = vsub.f32 1.0, %v799
        %v801 = vmul.f32 %v798, %v800
        %v802 = vadd.f32 %v798, %v801
        %vm803 = vweird.f32 %v752
        %vm804 = vweird.f32 %v798
        %vm805 = vmor %vm803, %vm804
        %v806 = vsel %vm805, %v798, %v802
        %v807 = vand.u32 2147483647, %v752
        %vm808 = vcmp.eq.f32.partialorder %v807, 8.507059e+37
        %v809 = vand.u32 %v752, 2147483648
        %v810 = vor.u32 1.1754944e-38, %v809
        %v811 = vsel %vm808, %v810, %v806
        %v812 = vmul.f32 1.0, %v811
        %v813 = vmul.f32 %v728, %v767
        %v814 = vmul.f32 %v730, %v782
        %v815 = vmul.f32 %v733, %v797
        %v816 = vmul.f32 %v735, %v812
        %v817 = vld [vmem:[%s3] sm:$0xf]
        %v818 = vld [vmem:[%s3 + $0x4] sm:$0xf]
        %v819 = vld [vmem:[%s3 + $0x8] sm:$0xf]
        %v820 = vld [vmem:[%s3 + $0xc] sm:$0xf]
        %v821 = vpack.c.bf16 %v814, %v813
        %v822 = vpack.c.bf16 %v816, %v815
        %v827 = vunpack.c.l.b16 %v817
        %v828 = vunpack.c.l.b16 %v818
        %v829 = vunpack.c.l.b16 %v819
        %v830 = vunpack.c.l.b16 %v820
        %v831 = vpack.c.b16 %v828, %v827
        %v832 = vpack.c.b16 %v830, %v829
        %vm833 = vcmask 261120
        %v835 = vsel %vm833, %v831, 0
        %v838 = vsel %vm833, %v832, 0
        %840 = vmatpush.bf16.msra.mxu0 0
        %841 = vmatpush.bf16.msra.mxu0 0
        %842 = vmatpush.bf16.msra.mxu0 0
        %843 = vmatpush.bf16.msra.mxu0 0
        %844 = vmatpush.bf16.msra.mxu0 0
        %845 = vmatpush.bf16.msra.mxu0 0
        %846 = vmatpush.bf16.msra.mxu0 %v822
        %847 = vmatpush.bf16.msra.mxu0 %v821
        %848 = vmatmul.bf16.gmra.mxu0 %v835
        %v849 = vpop.f32.mrf.mxu0
        %v850 = vadd.f32 0.0, %v849
        %v851 = vpop.f32.mrf.mxu0
        %v852 = vadd.f32 0.0, %v851
        %853 = vmatmul.bf16.gmra.mxu0 %v838
        %v854 = vpop.f32.mrf.mxu0
        %v855 = vadd.f32 0.0, %v854
        %v856 = vpop.f32.mrf.mxu0
        %v857 = vadd.f32 0.0, %v856
        %858 = vdwg.mxu0
        %v859 = vadd.f32 %v813, %v850
        %v860 = vadd.f32 %v814, %v852
        %v861 = vadd.f32 %v815, %v855
        %v862 = vadd.f32 %v816, %v857
        %v863 = vld [vmem:[%s4] sm:$0xff]
        %v864 = vld [vmem:[%s4 + $0x8] sm:$0xff]
        %v865 = vld [vmem:[%s4 + $0x10] sm:$0xff]
        %v866 = vld [vmem:[%s4 + $0x18] sm:$0xff]
        %868 = vset.pattern.permute.xlu0 0
        %869 = vperm.xlu0 %868, %v863
        %v870 = vpop.permute.xlu0 %869
        %873 = vset.pattern.permute.xlu0 0
        %874 = vperm.xlu0 %873, %v864
        %v875 = vpop.permute.xlu0 %874
        %878 = vset.pattern.permute.xlu0 0
        %879 = vperm.xlu0 %878, %v865
        %v880 = vpop.permute.xlu0 %879
        %883 = vset.pattern.permute.xlu0 0
        %884 = vperm.xlu0 %883, %v866
        %v885 = vpop.permute.xlu0 %884
        %v887 = vadd.f32 %v859, %v870
        %v888 = vadd.f32 %v860, %v875
        %v889 = vadd.f32 %v861, %v880
        %v890 = vadd.f32 %v862, %v885
        %891 = vst.msk [vmem:[#allocation2] sm:$0xff] %vm711, %v887
        %892 = vst.msk [vmem:[#allocation2 + $0x8] sm:$0xff] %vm711, %v888
        %893 = vst.msk [vmem:[#allocation2 + $0x10] sm:$0xff] %vm711, %v889
        %894 = vst.msk [vmem:[#allocation2 + $0x18] sm:$0xff] %vm711, %v890
      $region80: #{tpu_custom_call.1} parent=75 // pred_fallthru
        _
      %v895 = vld [vmem:[#allocation2] sm:$0xff]
      %v896 = vld [vmem:[#allocation2 + $0x8] sm:$0xff]
      %v897 = vld [vmem:[#allocation2 + $0x10] sm:$0xff]
      %v898 = vld [vmem:[#allocation2 + $0x18] sm:$0xff]
      %v899 = vld [vmem:[%s614] sm:$0xf]
      %v900 = vld [vmem:[%s614 + $0x4] sm:$0xf]
      %v901 = vld [vmem:[%s614 + $0x8] sm:$0xf]
      %v902 = vld [vmem:[%s614 + $0xc] sm:$0xf]
      %v903 = vpack.c.bf16 %v896, %v895
      %v904 = vpack.c.bf16 %v898, %v897
      %v905 = vld [vmem:[%s619] sm:$0xff]
      %v906 = vld [vmem:[%s619 + $0x8] sm:$0xff]
      %v907 = vld [vmem:[%s619 + $0x10] sm:$0xff]
      %v908 = vld [vmem:[%s619 + $0x18] sm:$0xff]
      %910 = vset.pattern.permute.xlu0 0
      %911 = vperm.xlu0 %910, %v905
      %v912 = vpop.permute.xlu0 %911
      %915 = vset.pattern.permute.xlu0 0
      %916 = vperm.xlu0 %915, %v906
      %v917 = vpop.permute.xlu0 %916
      %920 = vset.pattern.permute.xlu0 0
      %921 = vperm.xlu0 %920, %v907
      %v922 = vpop.permute.xlu0 %921
      %925 = vset.pattern.permute.xlu0 0
      %926 = vperm.xlu0 %925, %v908
      %v927 = vpop.permute.xlu0 %926
      %v933 = vunpack.c.l.b16 %v899
      %v934 = vunpack.c.l.b16 %v900
      %v935 = vunpack.c.l.b16 %v901
      %v936 = vunpack.c.l.b16 %v902
      %v937 = vpack.c.b16 %v934, %v933
      %v938 = vpack.c.b16 %v936, %v935
      %vm939 = vcmask 261120
      %v941 = vsel %vm939, %v937, 0
      %v944 = vsel %vm939, %v938, 0
      %946 = vmatpush.bf16.msra.mxu0 0
      %947 = vmatpush.bf16.msra.mxu0 0
      %948 = vmatpush.bf16.msra.mxu0 0
      %949 = vmatpush.bf16.msra.mxu0 0
      %950 = vmatpush.bf16.msra.mxu0 0
      %951 = vmatpush.bf16.msra.mxu0 0
      %952 = vmatpush.bf16.msra.mxu0 %v904
      %953 = vmatpush.bf16.msra.mxu0 %v903
      %954 = vmatmul.bf16.gmra.mxu0 %v941
      %v955 = vpop.f32.mrf.mxu0
      %v956 = vadd.f32 %v912, %v955
      %v957 = vpop.f32.mrf.mxu0
      %v958 = vadd.f32 %v917, %v957
      %959 = vmatmul.bf16.gmra.mxu0 %v944
      %v960 = vpop.f32.mrf.mxu0
      %v961 = vadd.f32 %v922, %v960
      %v962 = vpop.f32.mrf.mxu0
      %v963 = vadd.f32 %v927, %v962
      %964 = vdwg.mxu0
      %v965 = vld [vmem:[%s624] sm:$0xf]
      %v966 = vld [vmem:[%s624 + $0x4] sm:$0xf]
      %v967 = vld [vmem:[%s624 + $0x8] sm:$0xf]
      %v968 = vld [vmem:[%s624 + $0xc] sm:$0xf]
      %v969 = vld [vmem:[%s629] sm:$0xff]
      %v970 = vld [vmem:[%s629 + $0x8] sm:$0xff]
      %v971 = vld [vmem:[%s629 + $0x10] sm:$0xff]
      %v972 = vld [vmem:[%s629 + $0x18] sm:$0xff]
      %974 = vset.pattern.permute.xlu0 0
      %975 = vperm.xlu0 %974, %v969
      %v976 = vpop.permute.xlu0 %975
      %979 = vset.pattern.permute.xlu0 0
      %980 = vperm.xlu0 %979, %v970
      %v981 = vpop.permute.xlu0 %980
      %984 = vset.pattern.permute.xlu0 0
      %985 = vperm.xlu0 %984, %v971
      %v986 = vpop.permute.xlu0 %985
      %989 = vset.pattern.permute.xlu0 0
      %990 = vperm.xlu0 %989, %v972
      %v991 = vpop.permute.xlu0 %990
      %v997 = vunpack.c.l.b16 %v965
      %v998 = vunpack.c.l.b16 %v966
      %v999 = vunpack.c.l.b16 %v967
      %v1000 = vunpack.c.l.b16 %v968
      %v1001 = vpack.c.b16 %v998, %v997
      %v1002 = vpack.c.b16 %v1000, %v999
      %v1004 = vsel %vm939, %v1001, 0
      %v1007 = vsel %vm939, %v1002, 0
      %1009 = vmatpush.bf16.msra.mxu0 0
      %1010 = vmatpush.bf16.msra.mxu0 0
      %1011 = vmatpush.bf16.msra.mxu0 0
      %1012 = vmatpush.bf16.msra.mxu0 0
      %1013 = vmatpush.bf16.msra.mxu0 0
      %1014 = vmatpush.bf16.msra.mxu0 0
      %1015 = vmatpush.bf16.msra.mxu0 %v904
      %1016 = vmatpush.bf16.msra.mxu0 %v903
      %1017 = vmatmul.bf16.gmra.mxu0 %v1004
      %v1018 = vpop.f32.mrf.mxu0
      %v1019 = vadd.f32 %v976, %v1018
      %v1020 = vpop.f32.mrf.mxu0
      %v1021 = vadd.f32 %v981, %v1020
      %1022 = vmatmul.bf16.gmra.mxu0 %v1007
      %v1023 = vpop.f32.mrf.mxu0
      %v1024 = vadd.f32 %v986, %v1023
      %v1025 = vpop.f32.mrf.mxu0
      %v1026 = vadd.f32 %v991, %v1025
      %1027 = vdwg.mxu0
      %v1028 = vld [vmem:[%s634] sm:$0xf]
      %v1029 = vld [vmem:[%s634 + $0x4] sm:$0xf]
      %v1030 = vld [vmem:[%s634 + $0x8] sm:$0xf]
      %v1031 = vld [vmem:[%s634 + $0xc] sm:$0xf]
      %v1032 = vld [vmem:[%s639] sm:$0xff]
      %v1033 = vld [vmem:[%s639 + $0x8] sm:$0xff]
      %v1034 = vld [vmem:[%s639 + $0x10] sm:$0xff]
      %v1035 = vld [vmem:[%s639 + $0x18] sm:$0xff]
      %1037 = vset.pattern.permute.xlu0 0
      %1038 = vperm.xlu0 %1037, %v1032
      %v1039 = vpop.permute.xlu0 %1038
      %1042 = vset.pattern.permute.xlu0 0
      %1043 = vperm.xlu0 %1042, %v1033
      %v1044 = vpop.permute.xlu0 %1043
      %1047 = vset.pattern.permute.xlu0 0
      %1048 = vperm.xlu0 %1047, %v1034
      %v1049 = vpop.permute.xlu0 %1048
      %1052 = vset.pattern.permute.xlu0 0
      %1053 = vperm.xlu0 %1052, %v1035
      %v1054 = vpop.permute.xlu0 %1053
      %v1060 = vunpack.c.l.b16 %v1028
      %v1061 = vunpack.c.l.b16 %v1029
      %v1062 = vunpack.c.l.b16 %v1030
      %v1063 = vunpack.c.l.b16 %v1031
      %v1064 = vpack.c.b16 %v1061, %v1060
      %v1065 = vpack.c.b16 %v1063, %v1062
      %v1067 = vsel %vm939, %v1064, 0
      %v1070 = vsel %vm939, %v1065, 0
      %1072 = vmatpush.bf16.msra.mxu0 0
      %1073 = vmatpush.bf16.msra.mxu0 0
      %1074 = vmatpush.bf16.msra.mxu0 0
      %1075 = vmatpush.bf16.msra.mxu0 0
      %1076 = vmatpush.bf16.msra.mxu0 0
      %1077 = vmatpush.bf16.msra.mxu0 0
      %1078 = vmatpush.bf16.msra.mxu0 %v904
      %1079 = vmatpush.bf16.msra.mxu0 %v903
      %1080 = vmatmul.bf16.gmra.mxu0 %v1067
      %v1081 = vpop.f32.mrf.mxu0
      %v1082 = vadd.f32 %v1039, %v1081
      %v1083 = vpop.f32.mrf.mxu0
      %v1084 = vadd.f32 %v1044, %v1083
      %1085 = vmatmul.bf16.gmra.mxu0 %v1070
      %v1086 = vpop.f32.mrf.mxu0
      %v1087 = vadd.f32 %v1049, %v1086
      %v1088 = vpop.f32.mrf.mxu0
      %v1089 = vadd.f32 %v1054, %v1088
      %1090 = vdwg.mxu0
      %v1091 = vpack.c.bf16 %v1019, %v1019
      %v1092 = vpack.c.bf16 %v1021, %v1021
      %v1093 = vpack.c.bf16 %v1024, %v1024
      %v1094 = vpack.c.bf16 %v1026, %v1026
      %1095 = vxpose.xlu0.b32.start [1/16] %v956, 128
      %1096 = vxpose.xlu0.b32.cont [2/16] 0.0, 128
      %1097 = vxpose.xlu0.b32.cont [3/16] 0.0, 128
      %1098 = vxpose.xlu0.b32.cont [4/16] 0.0, 128
      %1099 = vxpose.xlu0.b32.cont [5/16] 0.0, 128
      %1100 = vxpose.xlu0.b32.cont [6/16] 0.0, 128
      %1101 = vxpose.xlu0.b32.cont [7/16] 0.0, 128
      %1102 = vxpose.xlu0.b32.cont [8/16] 0.0, 128
      %1103 = vxpose.xlu0.b32.cont [9/16] 0.0, 128
      %1104 = vxpose.xlu0.b32.cont [10/16] 0.0, 128
      %1105 = vxpose.xlu0.b32.cont [11/16] 0.0, 128
      %1106 = vxpose.xlu0.b32.cont [12/16] 0.0, 128
      %1107 = vxpose.xlu0.b32.cont [13/16] 0.0, 128
      %1108 = vxpose.xlu0.b32.cont [14/16] 0.0, 128
      %1109 = vxpose.xlu0.b32.cont [15/16] 0.0, 128
      %1110 = vxpose.xlu0.b32.end [16/16] 0.0, 128
      %v1111 = vpop.trf.xlu0
      %v1112 = vpop.trf.xlu0
      %v1113 = vpop.trf.xlu0
      %v1114 = vpop.trf.xlu0
      %v1115 = vpop.trf.xlu0
      %v1116 = vpop.trf.xlu0
      %v1117 = vpop.trf.xlu0
      %v1118 = vpop.trf.xlu0
      %v1119 = vpop.trf.xlu0
      %v1120 = vpop.trf.xlu0
      %v1121 = vpop.trf.xlu0
      %v1122 = vpop.trf.xlu0
      %v1123 = vpop.trf.xlu0
      %v1124 = vpop.trf.xlu0
      %v1125 = vpop.trf.xlu0
      %v1126 = vpop.trf.xlu0
      %1127 = vxpose.xlu0.b32.start [1/16] %v958, 128
      %1128 = vxpose.xlu0.b32.cont [2/16] 0.0, 128
      %1129 = vxpose.xlu0.b32.cont [3/16] 0.0, 128
      %1130 = vxpose.xlu0.b32.cont [4/16] 0.0, 128
      %1131 = vxpose.xlu0.b32.cont [5/16] 0.0, 128
      %1132 = vxpose.xlu0.b32.cont [6/16] 0.0, 128
      %1133 = vxpose.xlu0.b32.cont [7/16] 0.0, 128
      %1134 = vxpose.xlu0.b32.cont [8/16] 0.0, 128
      %1135 = vxpose.xlu0.b32.cont [9/16] 0.0, 128
      %1136 = vxpose.xlu0.b32.cont [10/16] 0.0, 128
      %1137 = vxpose.xlu0.b32.cont [11/16] 0.0, 128
      %1138 = vxpose.xlu0.b32.cont [12/16] 0.0, 128
      %1139 = vxpose.xlu0.b32.cont [13/16] 0.0, 128
      %1140 = vxpose.xlu0.b32.cont [14/16] 0.0, 128
      %1141 = vxpose.xlu0.b32.cont [15/16] 0.0, 128
      %1142 = vxpose.xlu0.b32.end [16/16] 0.0, 128
      %v1143 = vpop.trf.xlu0
      %v1144 = vpop.trf.xlu0
      %v1145 = vpop.trf.xlu0
      %v1146 = vpop.trf.xlu0
      %v1147 = vpop.trf.xlu0
      %v1148 = vpop.trf.xlu0
      %v1149 = vpop.trf.xlu0
      %v1150 = vpop.trf.xlu0
      %v1151 = vpop.trf.xlu0
      %v1152 = vpop.trf.xlu0
      %v1153 = vpop.trf.xlu0
      %v1154 = vpop.trf.xlu0
      %v1155 = vpop.trf.xlu0
      %v1156 = vpop.trf.xlu0
      %v1157 = vpop.trf.xlu0
      %v1158 = vpop.trf.xlu0
      %1159 = vxpose.xlu0.b32.start [1/16] %v961, 128
      %1160 = vxpose.xlu0.b32.cont [2/16] 0.0, 128
      %1161 = vxpose.xlu0.b32.cont [3/16] 0.0, 128
      %1162 = vxpose.xlu0.b32.cont [4/16] 0.0, 128
      %1163 = vxpose.xlu0.b32.cont [5/16] 0.0, 128
      %1164 = vxpose.xlu0.b32.cont [6/16] 0.0, 128
      %1165 = vxpose.xlu0.b32.cont [7/16] 0.0, 128
      %1166 = vxpose.xlu0.b32.cont [8/16] 0.0, 128
      %1167 = vxpose.xlu0.b32.cont [9/16] 0.0, 128
      %1168 = vxpose.xlu0.b32.cont [10/16] 0.0, 128
      %1169 = vxpose.xlu0.b32.cont [11/16] 0.0, 128
      %1170 = vxpose.xlu0.b32.cont [12/16] 0.0, 128
      %1171 = vxpose.xlu0.b32.cont [13/16] 0.0, 128
      %1172 = vxpose.xlu0.b32.cont [14/16] 0.0, 128
      %1173 = vxpose.xlu0.b32.cont [15/16] 0.0, 128
      %1174 = vxpose.xlu0.b32.end [16/16] 0.0, 128
      %v1175 = vpop.trf.xlu0
      %v1176 = vpop.trf.xlu0
      %v1177 = vpop.trf.xlu0
      %v1178 = vpop.trf.xlu0
      %v1179 = vpop.trf.xlu0
      %v1180 = vpop.trf.xlu0
      %v1181 = vpop.trf.xlu0
      %v1182 = vpop.trf.xlu0
      %v1183 = vpop.trf.xlu0
      %v1184 = vpop.trf.xlu0
      %v1185 = vpop.trf.xlu0
      %v1186 = vpop.trf.xlu0
      %v1187 = vpop.trf.xlu0
      %v1188 = vpop.trf.xlu0
      %v1189 = vpop.trf.xlu0
      %v1190 = vpop.trf.xlu0
      %1191 = vxpose.xlu0.b32.start [1/16] %v963, 128
      %1192 = vxpose.xlu0.b32.cont [2/16] 0.0, 128
      %1193 = vxpose.xlu0.b32.cont [3/16] 0.0, 128
      %1194 = vxpose.xlu0.b32.cont [4/16] 0.0, 128
      %1195 = vxpose.xlu0.b32.cont [5/16] 0.0, 128
      %1196 = vxpose.xlu0.b32.cont [6/16] 0.0, 128
      %1197 = vxpose.xlu0.b32.cont [7/16] 0.0, 128
      %1198 = vxpose.xlu0.b32.cont [8/16] 0.0, 128
      %1199 = vxpose.xlu0.b32.cont [9/16] 0.0, 128
      %1200 = vxpose.xlu0.b32.cont [10/16] 0.0, 128
      %1201 = vxpose.xlu0.b32.cont [11/16] 0.0, 128
      %1202 = vxpose.xlu0.b32.cont [12/16] 0.0, 128
      %1203 = vxpose.xlu0.b32.cont [13/16] 0.0, 128
      %1204 = vxpose.xlu0.b32.cont [14/16] 0.0, 128
      %1205 = vxpose.xlu0.b32.cont [15/16] 0.0, 128
      %1206 = vxpose.xlu0.b32.end [16/16] 0.0, 128
      %v1207 = vpop.trf.xlu0
      %v1208 = vpop.trf.xlu0
      %v1209 = vpop.trf.xlu0
      %v1210 = vpop.trf.xlu0
      %v1211 = vpop.trf.xlu0
      %v1212 = vpop.trf.xlu0
      %v1213 = vpop.trf.xlu0
      %v1214 = vpop.trf.xlu0
      %v1215 = vpop.trf.xlu0
      %v1216 = vpop.trf.xlu0
      %v1217 = vpop.trf.xlu0
      %v1218 = vpop.trf.xlu0
      %v1219 = vpop.trf.xlu0
      %v1220 = vpop.trf.xlu0
      %v1221 = vpop.trf.xlu0
      %v1222 = vpop.trf.xlu0
      %v1223 = vpack.c.bf16 %v1111, %v1111
      %v1224 = vpack.c.bf16 %v1112, %v1112
      %v1225 = vpack.c.bf16 %v1143, %v1143
      %v1226 = vpack.c.bf16 %v1144, %v1144
      %v1227 = vpack.c.bf16 %v1175, %v1175
      %v1228 = vpack.c.bf16 %v1176, %v1176
      %v1229 = vpack.c.bf16 %v1207, %v1207
      %v1230 = vpack.c.bf16 %v1208, %v1208
      %1231 = vxpose.xlu0.b32.start [1/16] %v1082, 128
      %1232 = vxpose.xlu0.b32.cont [2/16] 0.0, 128
      %1233 = vxpose.xlu0.b32.cont [3/16] 0.0, 128
      %1234 = vxpose.xlu0.b32.cont [4/16] 0.0, 128
      %1235 = vxpose.xlu0.b32.cont [5/16] 0.0, 128
      %1236 = vxpose.xlu0.b32.cont [6/16] 0.0, 128
      %1237 = vxpose.xlu0.b32.cont [7/16] 0.0, 128
      %1238 = vxpose.xlu0.b32.cont [8/16] 0.0, 128
      %1239 = vxpose.xlu0.b32.cont [9/16] 0.0, 128
      %1240 = vxpose.xlu0.b32.cont [10/16] 0.0, 128
      %1241 = vxpose.xlu0.b32.cont [11/16] 0.0, 128
      %1242 = vxpose.xlu0.b32.cont [12/16] 0.0, 128
      %1243 = vxpose.xlu0.b32.cont [13/16] 0.0, 128
      %1244 = vxpose.xlu0.b32.cont [14/16] 0.0, 128
      %1245 = vxpose.xlu0.b32.cont [15/16] 0.0, 128
      %1246 = vxpose.xlu0.b32.end [16/16] 0.0, 128
      %v1247 = vpop.trf.xlu0
      %v1248 = vpop.trf.xlu0
      %v1249 = vpop.trf.xlu0
      %v1250 = vpop.trf.xlu0
      %v1251 = vpop.trf.xlu0
      %v1252 = vpop.trf.xlu0
      %v1253 = vpop.trf.xlu0
      %v1254 = vpop.trf.xlu0
      %v1255 = vpop.trf.xlu0
      %v1256 = vpop.trf.xlu0
      %v1257 = vpop.trf.xlu0
      %v1258 = vpop.trf.xlu0
      %v1259 = vpop.trf.xlu0
      %v1260 = vpop.trf.xlu0
      %v1261 = vpop.trf.xlu0
      %v1262 = vpop.trf.xlu0
      %1263 = vxpose.xlu0.b32.start [1/16] %v1084, 128
      %1264 = vxpose.xlu0.b32.cont [2/16] 0.0, 128
      %1265 = vxpose.xlu0.b32.cont [3/16] 0.0, 128
      %1266 = vxpose.xlu0.b32.cont [4/16] 0.0, 128
      %1267 = vxpose.xlu0.b32.cont [5/16] 0.0, 128
      %1268 = vxpose.xlu0.b32.cont [6/16] 0.0, 128
      %1269 = vxpose.xlu0.b32.cont [7/16] 0.0, 128
      %1270 = vxpose.xlu0.b32.cont [8/16] 0.0, 128
      %1271 = vxpose.xlu0.b32.cont [9/16] 0.0, 128
      %1272 = vxpose.xlu0.b32.cont [10/16] 0.0, 128
      %1273 = vxpose.xlu0.b32.cont [11/16] 0.0, 128
      %1274 = vxpose.xlu0.b32.cont [12/16] 0.0, 128
      %1275 = vxpose.xlu0.b32.cont [13/16] 0.0, 128
      %1276 = vxpose.xlu0.b32.cont [14/16] 0.0, 128
      %1277 = vxpose.xlu0.b32.cont [15/16] 0.0, 128
      %1278 = vxpose.xlu0.b32.end [16/16] 0.0, 128
      %v1279 = vpop.trf.xlu0
      %v1280 = vpop.trf.xlu0
      %v1281 = vpop.trf.xlu0
      %v1282 = vpop.trf.xlu0
      %v1283 = vpop.trf.xlu0
      %v1284 = vpop.trf.xlu0
      %v1285 = vpop.trf.xlu0
      %v1286 = vpop.trf.xlu0
      %v1287 = vpop.trf.xlu0
      %v1288 = vpop.trf.xlu0
      %v1289 = vpop.trf.xlu0
      %v1290 = vpop.trf.xlu0
      %v1291 = vpop.trf.xlu0
      %v1292 = vpop.trf.xlu0
      %v1293 = vpop.trf.xlu0
      %v1294 = vpop.trf.xlu0
      %1295 = vxpose.xlu0.b32.start [1/16] %v1087, 128
      %1296 = vxpose.xlu0.b32.cont [2/16] 0.0, 128
      %1297 = vxpose.xlu0.b32.cont [3/16] 0.0, 128
      %1298 = vxpose.xlu0.b32.cont [4/16] 0.0, 128
      %1299 = vxpose.xlu0.b32.cont [5/16] 0.0, 128
      %1300 = vxpose.xlu0.b32.cont [6/16] 0.0, 128
      %1301 = vxpose.xlu0.b32.cont [7/16] 0.0, 128
      %1302 = vxpose.xlu0.b32.cont [8/16] 0.0, 128
      %1303 = vxpose.xlu0.b32.cont [9/16] 0.0, 128
      %1304 = vxpose.xlu0.b32.cont [10/16] 0.0, 128
      %1305 = vxpose.xlu0.b32.cont [11/16] 0.0, 128
      %1306 = vxpose.xlu0.b32.cont [12/16] 0.0, 128
      %1307 = vxpose.xlu0.b32.cont [13/16] 0.0, 128
      %1308 = vxpose.xlu0.b32.cont [14/16] 0.0, 128
      %1309 = vxpose.xlu0.b32.cont [15/16] 0.0, 128
      %1310 = vxpose.xlu0.b32.end [16/16] 0.0, 128
      %v1311 = vpop.trf.xlu0
      %v1312 = vpop.trf.xlu0
      %v1313 = vpop.trf.xlu0
      %v1314 = vpop.trf.xlu0
      %v1315 = vpop.trf.xlu0
      %v1316 = vpop.trf.xlu0
      %v1317 = vpop.trf.xlu0
      %v1318 = vpop.trf.xlu0
      %v1319 = vpop.trf.xlu0
      %v1320 = vpop.trf.xlu0
      %v1321 = vpop.trf.xlu0
      %v1322 = vpop.trf.xlu0
      %v1323 = vpop.trf.xlu0
      %v1324 = vpop.trf.xlu0
      %v1325 = vpop.trf.xlu0
      %v1326 = vpop.trf.xlu0
      %1327 = vxpose.xlu0.b32.start [1/16] %v1089, 128
      %1328 = vxpose.xlu0.b32.cont [2/16] 0.0, 128
      %1329 = vxpose.xlu0.b32.cont [3/16] 0.0, 128
      %1330 = vxpose.xlu0.b32.cont [4/16] 0.0, 128
      %1331 = vxpose.xlu0.b32.cont [5/16] 0.0, 128
      %1332 = vxpose.xlu0.b32.cont [6/16] 0.0, 128
      %1333 = vxpose.xlu0.b32.cont [7/16] 0.0, 128
      %1334 = vxpose.xlu0.b32.cont [8/16] 0.0, 128
      %1335 = vxpose.xlu0.b32.cont [9/16] 0.0, 128
      %1336 = vxpose.xlu0.b32.cont [10/16] 0.0, 128
      %1337 = vxpose.xlu0.b32.cont [11/16] 0.0, 128
      %1338 = vxpose.xlu0.b32.cont [12/16] 0.0, 128
      %1339 = vxpose.xlu0.b32.cont [13/16] 0.0, 128
      %1340 = vxpose.xlu0.b32.cont [14/16] 0.0, 128
      %1341 = vxpose.xlu0.b32.cont [15/16] 0.0, 128
      %1342 = vxpose.xlu0.b32.end [16/16] 0.0, 128
      %v1343 = vpop.trf.xlu0
      %v1344 = vpop.trf.xlu0
      %v1345 = vpop.trf.xlu0
      %v1346 = vpop.trf.xlu0
      %v1347 = vpop.trf.xlu0
      %v1348 = vpop.trf.xlu0
      %v1349 = vpop.trf.xlu0
      %v1350 = vpop.trf.xlu0
      %v1351 = vpop.trf.xlu0
      %v1352 = vpop.trf.xlu0
      %v1353 = vpop.trf.xlu0
      %v1354 = vpop.trf.xlu0
      %v1355 = vpop.trf.xlu0
      %v1356 = vpop.trf.xlu0
      %v1357 = vpop.trf.xlu0
      %v1358 = vpop.trf.xlu0
      %v1359 = vpack.c.bf16 %v1247, %v1247
      %v1360 = vpack.c.bf16 %v1248, %v1248
      %v1361 = vpack.c.bf16 %v1279, %v1279
      %v1362 = vpack.c.bf16 %v1280, %v1280
      %v1363 = vpack.c.bf16 %v1311, %v1311
      %v1364 = vpack.c.bf16 %v1312, %v1312
      %v1365 = vpack.c.bf16 %v1343, %v1343
      %v1366 = vpack.c.bf16 %v1344, %v1344
      %v1369 = vunpack.c.l.b16 %v1223
      %v1370 = vunpack.c.l.b16 %v1224
      %v1371 = vpack.c.b16 %v1370, %v1369
      %vm1372 = vcmask 64512
      %v1374 = vsel %vm1372, %v1371, 0
      %vm1376 = vcmask 1043456
      %v1378 = vsel %vm1376, %v1091, 0
      %1380 = vmatpush.bf16.msra.mxu0 0
      %1381 = vmatpush.bf16.msra.mxu0 0
      %1382 = vmatpush.bf16.msra.mxu0 0
      %1383 = vmatpush.bf16.msra.mxu0 0
      %1384 = vmatpush.bf16.msra.mxu0 0
      %1385 = vmatpush.bf16.msra.mxu0 0
      %1386 = vmatpush.bf16.msra.mxu0 0
      %1387 = vmatpush.bf16.msra.mxu0 %v1378
      %1388 = vmatmul.bf16.gmra.mxu0 %v1374
      %v1389 = vpop.f32.mrf.mxu0
      %v1390 = vadd.f32 0.0, %v1389
      %v1391 = vpop.f32.mrf.mxu0
      %v1392 = vadd.f32 0.0, %v1391
      %1393 = vdwg.mxu0
      %v1396 = vunpack.c.l.b16 %v1225
      %v1397 = vunpack.c.l.b16 %v1226
      %v1398 = vpack.c.b16 %v1397, %v1396
      %v1400 = vsel %vm1372, %v1398, 0
      %v1403 = vsel %vm1376, %v1092, 0
      %1405 = vmatpush.bf16.msra.mxu0 0
      %1406 = vmatpush.bf16.msra.mxu0 0
      %1407 = vmatpush.bf16.msra.mxu0 0
      %1408 = vmatpush.bf16.msra.mxu0 0
      %1409 = vmatpush.bf16.msra.mxu0 0
      %1410 = vmatpush.bf16.msra.mxu0 0
      %1411 = vmatpush.bf16.msra.mxu0 0
      %1412 = vmatpush.bf16.msra.mxu0 %v1403
      %1413 = vmatmul.bf16.gmra.mxu0 %v1400
      %v1414 = vpop.f32.mrf.mxu0
      %v1415 = vadd.f32 0.0, %v1414
      %v1416 = vpop.f32.mrf.mxu0
      %v1417 = vadd.f32 0.0, %v1416
      %1418 = vdwg.mxu0
      %v1421 = vunpack.c.l.b16 %v1227
      %v1422 = vunpack.c.l.b16 %v1228
      %v1423 = vpack.c.b16 %v1422, %v1421
      %v1425 = vsel %vm1372, %v1423, 0
      %v1428 = vsel %vm1376, %v1093, 0
      %1430 = vmatpush.bf16.msra.mxu0 0
      %1431 = vmatpush.bf16.msra.mxu0 0
      %1432 = vmatpush.bf16.msra.mxu0 0
      %1433 = vmatpush.bf16.msra.mxu0 0
      %1434 = vmatpush.bf16.msra.mxu0 0
      %1435 = vmatpush.bf16.msra.mxu0 0
      %1436 = vmatpush.bf16.msra.mxu0 0
      %1437 = vmatpush.bf16.msra.mxu0 %v1428
      %1438 = vmatmul.bf16.gmra.mxu0 %v1425
      %v1439 = vpop.f32.mrf.mxu0
      %v1440 = vadd.f32 0.0, %v1439
      %v1441 = vpop.f32.mrf.mxu0
      %v1442 = vadd.f32 0.0, %v1441
      %1443 = vdwg.mxu0
      %v1446 = vunpack.c.l.b16 %v1229
      %v1447 = vunpack.c.l.b16 %v1230
      %v1448 = vpack.c.b16 %v1447, %v1446
      %v1450 = vsel %vm1372, %v1448, 0
      %v1453 = vsel %vm1376, %v1094, 0
      %1455 = vmatpush.bf16.msra.mxu0 0
      %1456 = vmatpush.bf16.msra.mxu0 0
      %1457 = vmatpush.bf16.msra.mxu0 0
      %1458 = vmatpush.bf16.msra.mxu0 0
      %1459 = vmatpush.bf16.msra.mxu0 0
      %1460 = vmatpush.bf16.msra.mxu0 0
      %1461 = vmatpush.bf16.msra.mxu0 0
      %1462 = vmatpush.bf16.msra.mxu0 %v1453
      %1463 = vmatmul.bf16.gmra.mxu0 %v1450
      %v1464 = vpop.f32.mrf.mxu0
      %v1465 = vadd.f32 0.0, %v1464
      %v1466 = vpop.f32.mrf.mxu0
      %v1467 = vadd.f32 0.0, %v1466
      %1468 = vdwg.mxu0
      %vm1469 = vcmask 130048
      %v1470 = vsel %vm1469, %v1390, -inf
      %1471 = vmax.xlane.f32.xlu0 %v1470
      %v1472 = vpop.xlane.xlu0 %1471
      %v1473 = vsel %vm1469, %v1392, -inf
      %1474 = vmax.xlane.f32.xlu0 %v1473
      %v1475 = vpop.xlane.xlu0 %1474
      %v1476 = vsel %vm1469, %v1415, -inf
      %1477 = vmax.xlane.f32.xlu0 %v1476
      %v1478 = vpop.xlane.xlu0 %1477
      %v1479 = vsel %vm1469, %v1417, -inf
      %1480 = vmax.xlane.f32.xlu0 %v1479
      %v1481 = vpop.xlane.xlu0 %1480
      %v1482 = vsel %vm1469, %v1440, -inf
      %1483 = vmax.xlane.f32.xlu0 %v1482
      %v1484 = vpop.xlane.xlu0 %1483
      %v1485 = vsel %vm1469, %v1442, -inf
      %1486 = vmax.xlane.f32.xlu0 %v1485
      %v1487 = vpop.xlane.xlu0 %1486
      %v1488 = vsel %vm1469, %v1465, -inf
      %1489 = vmax.xlane.f32.xlu0 %v1488
      %v1490 = vpop.xlane.xlu0 %1489
      %v1491 = vsel %vm1469, %v1467, -inf
      %1492 = vmax.xlane.f32.xlu0 %v1491
      %v1493 = vpop.xlane.xlu0 %1492
      %v1494 = vsub.f32 %v1390, %v1472
      %v1495 = vsub.f32 %v1392, %v1475
      %v1496 = vsub.f32 %v1415, %v1478
      %v1497 = vsub.f32 %v1417, %v1481
      %v1498 = vsub.f32 %v1440, %v1484
      %v1499 = vsub.f32 %v1442, %v1487
      %v1500 = vsub.f32 %v1465, %v1490
      %v1501 = vsub.f32 %v1467, %v1493
      %v1502 = vmul.f32 %v1494, 1.442695
      %v1503 = vpow.pop %v1502
      %v1504 = vmul.f32 %v1495, 1.442695
      %v1505 = vpow.pop %v1504
      %v1506 = vmul.f32 %v1496, 1.442695
      %v1507 = vpow.pop %v1506
      %v1508 = vmul.f32 %v1497, 1.442695
      %v1509 = vpow.pop %v1508
      %v1510 = vmul.f32 %v1498, 1.442695
      %v1511 = vpow.pop %v1510
      %v1512 = vmul.f32 %v1499, 1.442695
      %v1513 = vpow.pop %v1512
      %v1514 = vmul.f32 %v1500, 1.442695
      %v1515 = vpow.pop %v1514
      %v1516 = vmul.f32 %v1501, 1.442695
      %v1517 = vpow.pop %v1516
      %v1518 = vsel %vm1469, %v1503, 0.0
      %1519 = vadd.xlane.f32.xlu0 %v1518
      %v1520 = vpop.xlane.xlu0 %1519
      %v1521 = vsel %vm1469, %v1505, 0.0
      %1522 = vadd.xlane.f32.xlu0 %v1521
      %v1523 = vpop.xlane.xlu0 %1522
      %v1524 = vsel %vm1469, %v1507, 0.0
      %1525 = vadd.xlane.f32.xlu0 %v1524
      %v1526 = vpop.xlane.xlu0 %1525
      %v1527 = vsel %vm1469, %v1509, 0.0
      %1528 = vadd.xlane.f32.xlu0 %v1527
      %v1529 = vpop.xlane.xlu0 %1528
      %v1530 = vsel %vm1469, %v1511, 0.0
      %1531 = vadd.xlane.f32.xlu0 %v1530
      %v1532 = vpop.xlane.xlu0 %1531
      %v1533 = vsel %vm1469, %v1513, 0.0
      %1534 = vadd.xlane.f32.xlu0 %v1533
      %v1535 = vpop.xlane.xlu0 %1534
      %v1536 = vsel %vm1469, %v1515, 0.0
      %1537 = vadd.xlane.f32.xlu0 %v1536
      %v1538 = vpop.xlane.xlu0 %1537
      %v1539 = vsel %vm1469, %v1517, 0.0
      %1540 = vadd.xlane.f32.xlu0 %v1539
      %v1541 = vpop.xlane.xlu0 %1540
      %v1542 = vrcp.pop %v1520
      %v1543 = vrcp.pop %v1523
      %v1544 = vrcp.pop %v1526
      %v1545 = vrcp.pop %v1529
      %v1546 = vrcp.pop %v1532
      %v1547 = vrcp.pop %v1535
      %v1548 = vrcp.pop %v1538
      %v1549 = vrcp.pop %v1541
      %v1550 = vpack.c.bf16 %v1503, %v1503
      %v1551 = vpack.c.bf16 %v1505, %v1505
      %v1552 = vpack.c.bf16 %v1507, %v1507
      %v1553 = vpack.c.bf16 %v1509, %v1509
      %v1554 = vpack.c.bf16 %v1511, %v1511
      %v1555 = vpack.c.bf16 %v1513, %v1513
      %v1556 = vpack.c.bf16 %v1515, %v1515
      %v1557 = vpack.c.bf16 %v1517, %v1517
      %v1560 = vunpack.c.l.b16 %v1550
      %v1561 = vunpack.c.l.b16 %v1551
      %v1562 = vpack.c.b16 %v1561, %v1560
      %v1565 = vunpack.c.l.b16 %v1359
      %v1566 = vunpack.c.l.b16 %v1360
      %v1567 = vpack.c.b16 %v1566, %v1565
      %v1570 = vsel %vm1469, %v1562, 0
      %1572 = vmatpush.bf16.msra.mxu0 0
      %1573 = vmatpush.bf16.msra.mxu0 0
      %1574 = vmatpush.bf16.msra.mxu0 0
      %1575 = vmatpush.bf16.msra.mxu0 0
      %1576 = vmatpush.bf16.msra.mxu0 0
      %1577 = vmatpush.bf16.msra.mxu0 0
      %1578 = vmatpush.bf16.msra.mxu0 0
      %1579 = vmatpush.bf16.msra.mxu0 %v1567
      %1580 = vmatmul.bf16.gmra.mxu0 %v1570
      %v1581 = vpop.f32.mrf.mxu0
      %v1582 = vadd.f32 0.0, %v1581
      %v1583 = vpop.f32.mrf.mxu0
      %v1584 = vadd.f32 0.0, %v1583
      %1585 = vdwg.mxu0
      %v1588 = vunpack.c.l.b16 %v1552
      %v1589 = vunpack.c.l.b16 %v1553
      %v1590 = vpack.c.b16 %v1589, %v1588
      %v1593 = vunpack.c.l.b16 %v1361
      %v1594 = vunpack.c.l.b16 %v1362
      %v1595 = vpack.c.b16 %v1594, %v1593
      %v1598 = vsel %vm1469, %v1590, 0
      %1600 = vmatpush.bf16.msra.mxu0 0
      %1601 = vmatpush.bf16.msra.mxu0 0
      %1602 = vmatpush.bf16.msra.mxu0 0
      %1603 = vmatpush.bf16.msra.mxu0 0
      %1604 = vmatpush.bf16.msra.mxu0 0
      %1605 = vmatpush.bf16.msra.mxu0 0
      %1606 = vmatpush.bf16.msra.mxu0 0
      %1607 = vmatpush.bf16.msra.mxu0 %v1595
      %1608 = vmatmul.bf16.gmra.mxu0 %v1598
      %v1609 = vpop.f32.mrf.mxu0
      %v1610 = vadd.f32 0.0, %v1609
      %v1611 = vpop.f32.mrf.mxu0
      %v1612 = vadd.f32 0.0, %v1611
      %1613 = vdwg.mxu0
      %v1616 = vunpack.c.l.b16 %v1554
      %v1617 = vunpack.c.l.b16 %v1555
      %v1618 = vpack.c.b16 %v1617, %v1616
      %v1621 = vunpack.c.l.b16 %v1363
      %v1622 = vunpack.c.l.b16 %v1364
      %v1623 = vpack.c.b16 %v1622, %v1621
      %v1626 = vsel %vm1469, %v1618, 0
      %1628 = vmatpush.bf16.msra.mxu0 0
      %1629 = vmatpush.bf16.msra.mxu0 0
      %1630 = vmatpush.bf16.msra.mxu0 0
      %1631 = vmatpush.bf16.msra.mxu0 0
      %1632 = vmatpush.bf16.msra.mxu0 0
      %1633 = vmatpush.bf16.msra.mxu0 0
      %1634 = vmatpush.bf16.msra.mxu0 0
      %1635 = vmatpush.bf16.msra.mxu0 %v1623
      %1636 = vmatmul.bf16.gmra.mxu0 %v1626
      %v1637 = vpop.f32.mrf.mxu0
      %v1638 = vadd.f32 0.0, %v1637
      %v1639 = vpop.f32.mrf.mxu0
      %v1640 = vadd.f32 0.0, %v1639
      %1641 = vdwg.mxu0
      %v1644 = vunpack.c.l.b16 %v1556
      %v1645 = vunpack.c.l.b16 %v1557
      %v1646 = vpack.c.b16 %v1645, %v1644
      %v1649 = vunpack.c.l.b16 %v1365
      %v1650 = vunpack.c.l.b16 %v1366
      %v1651 = vpack.c.b16 %v1650, %v1649
      %v1654 = vsel %vm1469, %v1646, 0
      %1656 = vmatpush.bf16.msra.mxu0 0
      %1657 = vmatpush.bf16.msra.mxu0 0
      %1658 = vmatpush.bf16.msra.mxu0 0
      %1659 = vmatpush.bf16.msra.mxu0 0
      %1660 = vmatpush.bf16.msra.mxu0 0
      %1661 = vmatpush.bf16.msra.mxu0 0
      %1662 = vmatpush.bf16.msra.mxu0 0
      %1663 = vmatpush.bf16.msra.mxu0 %v1651
      %1664 = vmatmul.bf16.gmra.mxu0 %v1654
      %v1665 = vpop.f32.mrf.mxu0
      %v1666 = vadd.f32 0.0, %v1665
      %v1667 = vpop.f32.mrf.mxu0
      %v1668 = vadd.f32 0.0, %v1667
      %1669 = vdwg.mxu0
      %v1670 = vmul.f32 %v1582, %v1542
      %v1671 = vmul.f32 %v1584, %v1543
      %v1672 = vmul.f32 %v1610, %v1544
      %v1673 = vmul.f32 %v1612, %v1545
      %v1674 = vmul.f32 %v1638, %v1546
      %v1675 = vmul.f32 %v1640, %v1547
      %v1676 = vmul.f32 %v1666, %v1548
      %v1677 = vmul.f32 %v1668, %v1549
      %1678 = vxpose.xlu0.b32.start [1/16] %v1670, 128
      %1679 = vxpose.xlu0.b32.cont [2/16] %v1671, 128
      %1680 = vxpose.xlu0.b32.cont [3/16] 0.0, 128
      %1681 = vxpose.xlu0.b32.cont [4/16] 0.0, 128
      %1682 = vxpose.xlu0.b32.cont [5/16] 0.0, 128
      %1683 = vxpose.xlu0.b32.cont [6/16] 0.0, 128
      %1684 = vxpose.xlu0.b32.cont [7/16] 0.0, 128
      %1685 = vxpose.xlu0.b32.cont [8/16] 0.0, 128
      %1686 = vxpose.xlu0.b32.cont [9/16] 0.0, 128
      %1687 = vxpose.xlu0.b32.cont [10/16] 0.0, 128
      %1688 = vxpose.xlu0.b32.cont [11/16] 0.0, 128
      %1689 = vxpose.xlu0.b32.cont [12/16] 0.0, 128
      %1690 = vxpose.xlu0.b32.cont [13/16] 0.0, 128
      %1691 = vxpose.xlu0.b32.cont [14/16] 0.0, 128
      %1692 = vxpose.xlu0.b32.cont [15/16] 0.0, 128
      %1693 = vxpose.xlu0.b32.end [16/16] 0.0, 128
      %v1694 = vpop.trf.xlu0
      %v1695 = vpop.trf.xlu0
      %v1696 = vpop.trf.xlu0
      %v1697 = vpop.trf.xlu0
      %v1698 = vpop.trf.xlu0
      %v1699 = vpop.trf.xlu0
      %v1700 = vpop.trf.xlu0
      %v1701 = vpop.trf.xlu0
      %v1702 = vpop.trf.xlu0
      %v1703 = vpop.trf.xlu0
      %v1704 = vpop.trf.xlu0
      %v1705 = vpop.trf.xlu0
      %v1706 = vpop.trf.xlu0
      %v1707 = vpop.trf.xlu0
      %v1708 = vpop.trf.xlu0
      %v1709 = vpop.trf.xlu0
      %1710 = vxpose.xlu0.b32.start [1/16] %v1672, 128
      %1711 = vxpose.xlu0.b32.cont [2/16] %v1673, 128
      %1712 = vxpose.xlu0.b32.cont [3/16] 0.0, 128
      %1713 = vxpose.xlu0.b32.cont [4/16] 0.0, 128
      %1714 = vxpose.xlu0.b32.cont [5/16] 0.0, 128
      %1715 = vxpose.xlu0.b32.cont [6/16] 0.0, 128
      %1716 = vxpose.xlu0.b32.cont [7/16] 0.0, 128
      %1717 = vxpose.xlu0.b32.cont [8/16] 0.0, 128
      %1718 = vxpose.xlu0.b32.cont [9/16] 0.0, 128
      %1719 = vxpose.xlu0.b32.cont [10/16] 0.0, 128
      %1720 = vxpose.xlu0.b32.cont [11/16] 0.0, 128
      %1721 = vxpose.xlu0.b32.cont [12/16] 0.0, 128
      %1722 = vxpose.xlu0.b32.cont [13/16] 0.0, 128
      %1723 = vxpose.xlu0.b32.cont [14/16] 0.0, 128
      %1724 = vxpose.xlu0.b32.cont [15/16] 0.0, 128
      %1725 = vxpose.xlu0.b32.end [16/16] 0.0, 128
      %v1726 = vpop.trf.xlu0
      %v1727 = vpop.trf.xlu0
      %v1728 = vpop.trf.xlu0
      %v1729 = vpop.trf.xlu0
      %v1730 = vpop.trf.xlu0
      %v1731 = vpop.trf.xlu0
      %v1732 = vpop.trf.xlu0
      %v1733 = vpop.trf.xlu0
      %v1734 = vpop.trf.xlu0
      %v1735 = vpop.trf.xlu0
      %v1736 = vpop.trf.xlu0
      %v1737 = vpop.trf.xlu0
      %v1738 = vpop.trf.xlu0
      %v1739 = vpop.trf.xlu0
      %v1740 = vpop.trf.xlu0
      %v1741 = vpop.trf.xlu0
      %1742 = vxpose.xlu0.b32.start [1/16] %v1674, 128
      %1743 = vxpose.xlu0.b32.cont [2/16] %v1675, 128
      %1744 = vxpose.xlu0.b32.cont [3/16] 0.0, 128
      %1745 = vxpose.xlu0.b32.cont [4/16] 0.0, 128
      %1746 = vxpose.xlu0.b32.cont [5/16] 0.0, 128
      %1747 = vxpose.xlu0.b32.cont [6/16] 0.0, 128
      %1748 = vxpose.xlu0.b32.cont [7/16] 0.0, 128
      %1749 = vxpose.xlu0.b32.cont [8/16] 0.0, 128
      %1750 = vxpose.xlu0.b32.cont [9/16] 0.0, 128
      %1751 = vxpose.xlu0.b32.cont [10/16] 0.0, 128
      %1752 = vxpose.xlu0.b32.cont [11/16] 0.0, 128
      %1753 = vxpose.xlu0.b32.cont [12/16] 0.0, 128
      %1754 = vxpose.xlu0.b32.cont [13/16] 0.0, 128
      %1755 = vxpose.xlu0.b32.cont [14/16] 0.0, 128
      %1756 = vxpose.xlu0.b32.cont [15/16] 0.0, 128
      %1757 = vxpose.xlu0.b32.end [16/16] 0.0, 128
      %v1758 = vpop.trf.xlu0
      %v1759 = vpop.trf.xlu0
      %v1760 = vpop.trf.xlu0
      %v1761 = vpop.trf.xlu0
      %v1762 = vpop.trf.xlu0
      %v1763 = vpop.trf.xlu0
      %v1764 = vpop.trf.xlu0
      %v1765 = vpop.trf.xlu0
      %v1766 = vpop.trf.xlu0
      %v1767 = vpop.trf.xlu0
      %v1768 = vpop.trf.xlu0
      %v1769 = vpop.trf.xlu0
      %v1770 = vpop.trf.xlu0
      %v1771 = vpop.trf.xlu0
      %v1772 = vpop.trf.xlu0
      %v1773 = vpop.trf.xlu0
      %1774 = vxpose.xlu0.b32.start [1/16] %v1676, 128
      %1775 = vxpose.xlu0.b32.cont [2/16] %v1677, 128
      %1776 = vxpose.xlu0.b32.cont [3/16] 0.0, 128
      %1777 = vxpose.xlu0.b32.cont [4/16] 0.0, 128
      %1778 = vxpose.xlu0.b32.cont [5/16] 0.0, 128
      %1779 = vxpose.xlu0.b32.cont [6/16] 0.0, 128
      %1780 = vxpose.xlu0.b32.cont [7/16] 0.0, 128
      %1781 = vxpose.xlu0.b32.cont [8/16] 0.0, 128
      %1782 = vxpose.xlu0.b32.cont [9/16] 0.0, 128
      %1783 = vxpose.xlu0.b32.cont [10/16] 0.0, 128
      %1784 = vxpose.xlu0.b32.cont [11/16] 0.0, 128
      %1785 = vxpose.xlu0.b32.cont [12/16] 0.0, 128
      %1786 = vxpose.xlu0.b32.cont [13/16] 0.0, 128
      %1787 = vxpose.xlu0.b32.cont [14/16] 0.0, 128
      %1788 = vxpose.xlu0.b32.cont [15/16] 0.0, 128
      %1789 = vxpose.xlu0.b32.end [16/16] 0.0, 128
      %v1790 = vpop.trf.xlu0
      %v1791 = vpop.trf.xlu0
      %v1792 = vpop.trf.xlu0
      %v1793 = vpop.trf.xlu0
      %v1794 = vpop.trf.xlu0
      %v1795 = vpop.trf.xlu0
      %v1796 = vpop.trf.xlu0
      %v1797 = vpop.trf.xlu0
      %v1798 = vpop.trf.xlu0
      %v1799 = vpop.trf.xlu0
      %v1800 = vpop.trf.xlu0
      %v1801 = vpop.trf.xlu0
      %v1802 = vpop.trf.xlu0
      %v1803 = vpop.trf.xlu0
      %v1804 = vpop.trf.xlu0
      %v1805 = vpop.trf.xlu0
      %v1806 = vld [vmem:[%s644] sm:$0xf]
      %v1807 = vld [vmem:[%s644 + $0x4] sm:$0xf]
      %v1808 = vld [vmem:[%s644 + $0x8] sm:$0xf]
      %v1809 = vld [vmem:[%s644 + $0xc] sm:$0xf]
      %v1810 = vpack.c.bf16 %v1726, %v1694
      %v1811 = vpack.c.bf16 %v1790, %v1758
      %v1812 = vld [vmem:[%s649] sm:$0xff]
      %v1813 = vld [vmem:[%s649 + $0x8] sm:$0xff]
      %v1814 = vld [vmem:[%s649 + $0x10] sm:$0xff]
      %v1815 = vld [vmem:[%s649 + $0x18] sm:$0xff]
      %1817 = vset.pattern.permute.xlu0 0
      %1818 = vperm.xlu0 %1817, %v1812
      %v1819 = vpop.permute.xlu0 %1818
      %1822 = vset.pattern.permute.xlu0 0
      %1823 = vperm.xlu0 %1822, %v1813
      %v1824 = vpop.permute.xlu0 %1823
      %1827 = vset.pattern.permute.xlu0 0
      %1828 = vperm.xlu0 %1827, %v1814
      %v1829 = vpop.permute.xlu0 %1828
      %1832 = vset.pattern.permute.xlu0 0
      %1833 = vperm.xlu0 %1832, %v1815
      %v1834 = vpop.permute.xlu0 %1833
      %v1840 = vunpack.c.l.b16 %v1806
      %v1841 = vunpack.c.l.b16 %v1807
      %v1842 = vunpack.c.l.b16 %v1808
      %v1843 = vunpack.c.l.b16 %v1809
      %v1844 = vpack.c.b16 %v1841, %v1840
      %v1845 = vpack.c.b16 %v1843, %v1842
      %v1847 = vsel %vm939, %v1844, 0
      %v1850 = vsel %vm939, %v1845, 0
      %1852 = vmatpush.bf16.msra.mxu0 0
      %1853 = vmatpush.bf16.msra.mxu0 0
      %1854 = vmatpush.bf16.msra.mxu0 0
      %1855 = vmatpush.bf16.msra.mxu0 0
      %1856 = vmatpush.bf16.msra.mxu0 0
      %1857 = vmatpush.bf16.msra.mxu0 0
      %1858 = vmatpush.bf16.msra.mxu0 %v1811
      %1859 = vmatpush.bf16.msra.mxu0 %v1810
      %1860 = vmatmul.bf16.gmra.mxu0 %v1847
      %v1861 = vpop.f32.mrf.mxu0
      %v1862 = vadd.f32 %v1819, %v1861
      %v1863 = vpop.f32.mrf.mxu0
      %v1864 = vadd.f32 %v1824, %v1863
      %1865 = vmatmul.bf16.gmra.mxu0 %v1850
      %v1866 = vpop.f32.mrf.mxu0
      %v1867 = vadd.f32 %v1829, %v1866
      %v1868 = vpop.f32.mrf.mxu0
      %v1869 = vadd.f32 %v1834, %v1868
      %1870 = vdwg.mxu0
      %v1871 = vadd.f32 %v1862, %v895
      %v1872 = vadd.f32 %v1864, %v896
      %v1873 = vadd.f32 %v1867, %v897
      %v1874 = vadd.f32 %v1869, %v898
      %v1875 = vld [vmem:[%s654] sm:$0xf]
      %v1876 = vld [vmem:[%s654 + $0x4] sm:$0xf]
      %v1877 = vld [vmem:[%s654 + $0x8] sm:$0xf]
      %v1878 = vld [vmem:[%s654 + $0xc] sm:$0xf]
      %v1879 = vpack.c.bf16 %v1872, %v1871
      %v1880 = vpack.c.bf16 %v1874, %v1873
      %v1885 = vunpack.c.l.b16 %v1875
      %v1886 = vunpack.c.l.b16 %v1876
      %v1887 = vunpack.c.l.b16 %v1877
      %v1888 = vunpack.c.l.b16 %v1878
      %v1889 = vpack.c.b16 %v1886, %v1885
      %v1890 = vpack.c.b16 %v1888, %v1887
      %v1892 = vsel %vm939, %v1889, 0
      %v1895 = vsel %vm939, %v1890, 0
      %1897 = vmatpush.bf16.msra.mxu0 0
      %1898 = vmatpush.bf16.msra.mxu0 0
      %1899 = vmatpush.bf16.msra.mxu0 0
      %1900 = vmatpush.bf16.msra.mxu0 0
      %1901 = vmatpush.bf16.msra.mxu0 0
      %1902 = vmatpush.bf16.msra.mxu0 0
      %1903 = vmatpush.bf16.msra.mxu0 %v1880
      %1904 = vmatpush.bf16.msra.mxu0 %v1879
      %1905 = vmatmul.bf16.gmra.mxu0 %v1892
      %v1906 = vpop.f32.mrf.mxu0
      %v1907 = vadd.f32 %v1871, %v1906
      %v1908 = vpop.f32.mrf.mxu0
      %v1909 = vadd.f32 %v1872, %v1908
      %1910 = vmatmul.bf16.gmra.mxu0 %v1895
      %v1911 = vpop.f32.mrf.mxu0
      %v1912 = vadd.f32 %v1873, %v1911
      %v1913 = vpop.f32.mrf.mxu0
      %v1914 = vadd.f32 %v1874, %v1913
      %1915 = vdwg.mxu0
      %1916 = vst.msk [vmem:[#allocation2] sm:$0xff] %vm1469, %v1907
      %1917 = vst.msk [vmem:[#allocation2 + $0x8] sm:$0xff] %vm1469, %v1909
      %1918 = vst.msk [vmem:[#allocation2 + $0x10] sm:$0xff] %vm1469, %v1912
      %1919 = vst.msk [vmem:[#allocation2 + $0x18] sm:$0xff] %vm1469, %v1914
      %p1920 = scmp.eq.s32.totalorder %s30, 1
      // Predicated region
      $region81: #{tpu_custom_call.1} parent=75 // pred_check
        %p1921 = pneg %p1920
      $region82: #{tpu_custom_call.1} parent=75 // pred_check_branch
        %1923 = sbr.rel (%p1921) target = $region84
      $region83: #{tpu_custom_call.1} parent=75 // pred_region
        %1924 = vst.msk [vmem:[%s659] sm:$0xff] %vm1469, %v1907
        %1925 = vst.msk [vmem:[%s659 + $0x8] sm:$0xff] %vm1469, %v1909
        %1926 = vst.msk [vmem:[%s659 + $0x10] sm:$0xff] %vm1469, %v1912
        %1927 = vst.msk [vmem:[%s659 + $0x18] sm:$0xff] %vm1469, %v1914
      $region84: #{tpu_custom_call.1} parent=75 // pred_fallthru
        _
      %p1928 = scmp.lt.s32.totalorder %s29, 1
      %s1929 = scalar_select %p1928, %s29, 1
      %s1930 = smul.addr %s1929, 4
      %s1931 = smul.addr %s1930, 8
      %s1932 = scalar_lea.vmem %s14, %s1931
      // Predicated region
      $region85: #{tpu_custom_call.1} parent=75 // pred_check
        %p1933 = pneg %p399
      $region86: #{tpu_custom_call.1} parent=75 // pred_check_branch
        %1935 = sbr.rel (%p1933) target = $region88
      $region87: #{tpu_custom_call.1} parent=75 // pred_region
        _
      $region88: #{tpu_custom_call.1} parent=75 // pred_fallthru
        _
    $region76: #{tpu_custom_call.1} parent=5 // pred_fallthru
      _
    %p1936 = scmp.le.s32.totalorder 2, %s20
    // Predicated region
    $region89: #{tpu_custom_call.1} parent=5 // pred_check
      %p1937 = pneg %p1936
    $region90: #{tpu_custom_call.1} parent=5 // pred_check_branch
      %1939 = sbr.rel (%p1937) target = $region92
    $region91: #{tpu_custom_call.1} parent=5 // pred_region
      %s1940 = ssub.s32 %s20, 2
      // Predicated region
      $region93: #{tpu_custom_call.1} parent=91 // pred_check
        %p1941 = pneg %p405
      $region94: #{tpu_custom_call.1} parent=91 // pred_check_branch
        %1943 = sbr.rel (%p1941) target = $region96
      $region95: #{tpu_custom_call.1} parent=91 // pred_region
        %p1944 = scmp.lt.s32.totalorder %s31, 1
        %s1945 = scalar_select %p1944, %s31, 1
        %s1946 = smul.addr %s1945, 4
        %s1947 = smul.addr %s1946, 8
        %s1948 = scalar_lea.vmem %s14, %s1947
      $region96: #{tpu_custom_call.1} parent=91 // pred_fallthru
        _
    $region92: #{tpu_custom_call.1} parent=5 // pred_fallthru
      _
  $region6: #{tpu_custom_call.1} parent=0 // loop_footer
    %s24 = sadd.s32 1, %s20
  $region7: #{tpu_custom_call.1} parent=0 // loop_footer_branch
    %19 = sbr.rel target = $region3
  $region8: #{tpu_custom_call.1} parent=0 // loop_exit
    _

// kernel: tpu_custom_call.1
$region0: #{tpu_custom_call.1}
  #allocation0 [shape = 'u32[]', space=smem, size = 0x4, offset = 0x4, fixed_abs, tag = 'smem constant byte address 0x4 - core index']
  #allocation1 [shape = 'u32[72,128]{1,0:T(1,128)}', space=vmem, size = 0x9000, scoped, tag = 'internal scratch']
  #allocation2 [shape = 'f32[32,16]{1,0:T(8,128)}', space=vmem, size = 0x4000, scoped, tag = 'scratch operand']
  %s0 = inlined_call_operand.vmem [shape: bf16[2,16,16], index: 0, kind: input, shape index: {}]
  %s1 = inlined_call_operand.vmem [shape: bf16[32,16], index: 1, kind: input, shape index: {}]
  %s2 = inlined_call_operand.vmem [shape: f32[32,1], index: 2, kind: input, shape index: {}]
  %s3 = inlined_call_operand.vmem [shape: bf16[32,32], index: 3, kind: input, shape index: {}]
  %s4 = inlined_call_operand.vmem [shape: f32[32,1], index: 4, kind: input, shape index: {}]
  %s5 = inlined_call_operand.vmem [shape: bf16[2,32,32], index: 5, kind: input, shape index: {}]
  %s6 = inlined_call_operand.vmem [shape: f32[2,32,1], index: 6, kind: input, shape index: {}]
  %s7 = inlined_call_operand.vmem [shape: bf16[2,32,32], index: 7, kind: input, shape index: {}]
  %s8 = inlined_call_operand.vmem [shape: f32[2,32,1], index: 8, kind: input, shape index: {}]
  %s9 = inlined_call_operand.vmem [shape: bf16[2,32,32], index: 9, kind: input, shape index: {}]
  %s10 = inlined_call_operand.vmem [shape: f32[2,32,1], index: 10, kind: input, shape index: {}]
  %s11 = inlined_call_operand.vmem [shape: bf16[2,32,32], index: 11, kind: input, shape index: {}]
  %s12 = inlined_call_operand.vmem [shape: f32[2,32,1], index: 12, kind: input, shape index: {}]
  %s13 = inlined_call_operand.vmem [shape: bf16[2,32,32], index: 13, kind: input, shape index: {}]
  %s14 = inlined_call_operand.vmem [shape: f32[2,32,16], index: 14, kind: output, shape index: {}]
  %s15 = sld [smem:[#allocation0]]
  $region97: #{tpu_custom_call.1} parent=0
    _
  %s17 = ssub.s32 1, %s15
  %s18 = scalar_select 0, %s17, %s15
  loop: start=0, step=1, limit=6
  $region2: #{tpu_custom_call.1} parent=0 // loop_pre_header
    _
  $region3: #{tpu_custom_call.1} parent=0 // loop_header
    %s20 = sphi 0, %s24
    %p21 = scmp.ge.s32.totalorder %s20, 6
    %s27 = sphi 0, %s39
    %s28 = sphi 0, %s35
    %s29 = sphi 0, %s27
    %s30 = sphi 0, %s28
    %s31 = sphi 0, %s29
    %s32 = sphi 0, %s30
    %s42 = sphi 0, %s44
    %s45 = sphi 0, %s42
    %s46 = sphi 0, %s45
    %s62 = sphi 0, %s46
    %s66 = sphi 0, %s66
    %s68 = sphi 0, %s66
    %s69 = sphi 0, %s68
    %s83 = sphi 0, %s69
    %s87 = sphi 0, %s87
    %s89 = sphi 0, %s87
    %s90 = sphi 0, %s89
    %s104 = sphi 0, %s90
    %s108 = sphi 0, %s108
    %s110 = sphi 0, %s108
    %s111 = sphi 0, %s110
    %s125 = sphi 0, %s111
    %s129 = sphi 0, %s129
    %s131 = sphi 0, %s129
    %s132 = sphi 0, %s131
    %s146 = sphi 0, %s132
    %s152 = sphi 0, %s154
    %s155 = sphi 0, %s152
    %s156 = sphi 0, %s155
    %s172 = sphi 0, %s156
    %s178 = sphi 0, %s180
    %s181 = sphi 0, %s178
    %s182 = sphi 0, %s181
    %s198 = sphi 0, %s182
    %s204 = sphi 0, %s206
    %s207 = sphi 0, %s204
    %s208 = sphi 0, %s207
    %s224 = sphi 0, %s208
    %s230 = sphi 0, %s232
    %s233 = sphi 0, %s230
    %s234 = sphi 0, %s233
    %s250 = sphi 0, %s234
    %s256 = sphi 0, %s258
    %s259 = sphi 0, %s256
    %s260 = sphi 0, %s259
    %s276 = sphi 0, %s260
    %s282 = sphi 0, %s284
    %s285 = sphi 0, %s282
    %s286 = sphi 0, %s285
    %s302 = sphi 0, %s286
    %s308 = sphi 0, %s310
    %s311 = sphi 0, %s308
    %s312 = sphi 0, %s311
    %s328 = sphi 0, %s312
    %s334 = sphi 0, %s336
    %s337 = sphi 0, %s334
    %s338 = sphi 0, %s337
    %s354 = sphi 0, %s338
    %s360 = sphi 0, %s362
    %s363 = sphi 0, %s360
    %s364 = sphi 0, %s363
    %s380 = sphi 0, %s364
    %s386 = sphi 0, %s388
    %s389 = sphi 0, %s386
    %s390 = sphi 0, %s389
    %s406 = sphi 0, %s390
  $region4: #{tpu_custom_call.1} parent=0 // loop_header_branch
    %23 = sbr.rel (%p21) target = $region8
  $region5: #{tpu_custom_call.1} parent=0 // loop_body
    %s25 = ssub.s32 %s20, 1
    %s26 = ssub.s32 %s20, 2
    %s33 = sadd.s32 1, %s28
    %p34 = scmp.ge.s32.totalorder %s33, 2
    %s35 = scalar_select %p34, 0, %s33
    %s36 = sadd.s32 1, %s27
    %s37 = scalar_select %p34, %s36, %s27
    %p38 = scmp.ge.s32.totalorder %s37, 2
    %s39 = scalar_select %p38, 0, %s37
    %s40 = ssub.s32 %s27, %s39
    %p41 = scmp.eq.s32.totalorder %s40, 0
    %s43 = sadd.s32 %s42, 1
    %s44 = scalar_select %p41, %s42, %s43
    %p47 = pneg %p41
    %p48 = scmp.eq.s32.totalorder %s20, 3
    %p49 = por %p47, %p48
    %p50 = scmp.ne.s32.totalorder %s42, %s45
    %p51 = scmp.eq.s32.totalorder %s20, 0
    %p52 = por %p50, %p51
    %p53 = scmp.ne.s32.totalorder %s42, %s45
    %p54 = scmp.eq.s32.totalorder %s25, 3
    %p55 = por %p53, %p54
    %p56 = scmp.ne.s32.totalorder %s45, %s46
    %p57 = scmp.eq.s32.totalorder %s25, 0
    %p58 = por %p56, %p57
    %p59 = scmp.ne.s32.totalorder %s45, %s46
    %p60 = scmp.eq.s32.totalorder %s26, 3
    %p61 = por %p59, %p60
    %p63 = scmp.ne.s32.totalorder %s46, %s62
    %p64 = scmp.eq.s32.totalorder %s26, 0
    %p65 = por %p63, %p64
    %s67 = sadd.s32 %s66, 1
    %p70 = scmp.eq.s32.totalorder %s20, 3
    %p71 = scmp.ne.s32.totalorder %s66, %s68
    %p72 = scmp.eq.s32.totalorder %s20, 0
    %p73 = por %p71, %p72
    %p74 = scmp.ne.s32.totalorder %s66, %s68
    %p75 = scmp.eq.s32.totalorder %s25, 3
    %p76 = por %p74, %p75
    %p77 = scmp.ne.s32.totalorder %s68, %s69
    %p78 = scmp.eq.s32.totalorder %s25, 0
    %p79 = por %p77, %p78
    %p80 = scmp.ne.s32.totalorder %s68, %s69
    %p81 = scmp.eq.s32.totalorder %s26, 3
    %p82 = por %p80, %p81
    %p84 = scmp.ne.s32.totalorder %s69, %s83
    %p85 = scmp.eq.s32.totalorder %s26, 0
    %p86 = por %p84, %p85
    %s88 = sadd.s32 %s87, 1
    %p91 = scmp.eq.s32.totalorder %s20, 3
    %p92 = scmp.ne.s32.totalorder %s87, %s89
    %p93 = scmp.eq.s32.totalorder %s20, 0
    %p94 = por %p92, %p93
    %p95 = scmp.ne.s32.totalorder %s87, %s89
    %p96 = scmp.eq.s32.totalorder %s25, 3
    %p97 = por %p95, %p96
    %p98 = scmp.ne.s32.totalorder %s89, %s90
    %p99 = scmp.eq.s32.totalorder %s25, 0
    %p100 = por %p98, %p99
    %p101 = scmp.ne.s32.totalorder %s89, %s90
    %p102 = scmp.eq.s32.totalorder %s26, 3
    %p103 = por %p101, %p102
    %p105 = scmp.ne.s32.totalorder %s90, %s104
    %p106 = scmp.eq.s32.totalorder %s26, 0
    %p107 = por %p105, %p106
    %s109 = sadd.s32 %s108, 1
    %p112 = scmp.eq.s32.totalorder %s20, 3
    %p113 = scmp.ne.s32.totalorder %s108, %s110
    %p114 = scmp.eq.s32.totalorder %s20, 0
    %p115 = por %p113, %p114
    %p116 = scmp.ne.s32.totalorder %s108, %s110
    %p117 = scmp.eq.s32.totalorder %s25, 3
    %p118 = por %p116, %p117
    %p119 = scmp.ne.s32.totalorder %s110, %s111
    %p120 = scmp.eq.s32.totalorder %s25, 0
    %p121 = por %p119, %p120
    %p122 = scmp.ne.s32.totalorder %s110, %s111
    %p123 = scmp.eq.s32.totalorder %s26, 3
    %p124 = por %p122, %p123
    %p126 = scmp.ne.s32.totalorder %s111, %s125
    %p127 = scmp.eq.s32.totalorder %s26, 0
    %p128 = por %p126, %p127
    %s130 = sadd.s32 %s129, 1
    %p133 = scmp.eq.s32.totalorder %s20, 3
    %p134 = scmp.ne.s32.totalorder %s129, %s131
    %p135 = scmp.eq.s32.totalorder %s20, 0
    %p136 = por %p134, %p135
    %p137 = scmp.ne.s32.totalorder %s129, %s131
    %p138 = scmp.eq.s32.totalorder %s25, 3
    %p139 = por %p137, %p138
    %p140 = scmp.ne.s32.totalorder %s131, %s132
    %p141 = scmp.eq.s32.totalorder %s25, 0
    %p142 = por %p140, %p141
    %p143 = scmp.ne.s32.totalorder %s131, %s132
    %p144 = scmp.eq.s32.totalorder %s26, 3
    %p145 = por %p143, %p144
    %p147 = scmp.ne.s32.totalorder %s132, %s146
    %p148 = scmp.eq.s32.totalorder %s26, 0
    %p149 = por %p147, %p148
    %s150 = ssub.s32 %s28, %s35
    %p151 = scmp.eq.s32.totalorder %s150, 0
    %s153 = sadd.s32 %s152, 1
    %s154 = scalar_select %p151, %s152, %s153
    %p157 = pneg %p151
    %p158 = scmp.eq.s32.totalorder %s20, 3
    %p159 = por %p157, %p158
    %p160 = scmp.ne.s32.totalorder %s152, %s155
    %p161 = scmp.eq.s32.totalorder %s20, 0
    %p162 = por %p160, %p161
    %p163 = scmp.ne.s32.totalorder %s152, %s155
    %p164 = scmp.eq.s32.totalorder %s25, 3
    %p165 = por %p163, %p164
    %p166 = scmp.ne.s32.totalorder %s155, %s156
    %p167 = scmp.eq.s32.totalorder %s25, 0
    %p168 = por %p166, %p167
    %p169 = scmp.ne.s32.totalorder %s155, %s156
    %p170 = scmp.eq.s32.totalorder %s26, 3
    %p171 = por %p169, %p170
    %p173 = scmp.ne.s32.totalorder %s156, %s172
    %p174 = scmp.eq.s32.totalorder %s26, 0
    %p175 = por %p173, %p174
    %s176 = ssub.s32 %s28, %s35
    %p177 = scmp.eq.s32.totalorder %s176, 0
    %s179 = sadd.s32 %s178, 1
    %s180 = scalar_select %p177, %s178, %s179
    %p183 = pneg %p177
    %p184 = scmp.eq.s32.totalorder %s20, 3
    %p185 = por %p183, %p184
    %p186 = scmp.ne.s32.totalorder %s178, %s181
    %p187 = scmp.eq.s32.totalorder %s20, 0
    %p188 = por %p186, %p187
    %p189 = scmp.ne.s32.totalorder %s178, %s181
    %p190 = scmp.eq.s32.totalorder %s25, 3
    %p191 = por %p189, %p190
    %p192 = scmp.ne.s32.totalorder %s181, %s182
    %p193 = scmp.eq.s32.totalorder %s25, 0
    %p194 = por %p192, %p193
    %p195 = scmp.ne.s32.totalorder %s181, %s182
    %p196 = scmp.eq.s32.totalorder %s26, 3
    %p197 = por %p195, %p196
    %p199 = scmp.ne.s32.totalorder %s182, %s198
    %p200 = scmp.eq.s32.totalorder %s26, 0
    %p201 = por %p199, %p200
    %s202 = ssub.s32 %s28, %s35
    %p203 = scmp.eq.s32.totalorder %s202, 0
    %s205 = sadd.s32 %s204, 1
    %s206 = scalar_select %p203, %s204, %s205
    %p209 = pneg %p203
    %p210 = scmp.eq.s32.totalorder %s20, 3
    %p211 = por %p209, %p210
    %p212 = scmp.ne.s32.totalorder %s204, %s207
    %p213 = scmp.eq.s32.totalorder %s20, 0
    %p214 = por %p212, %p213
    %p215 = scmp.ne.s32.totalorder %s204, %s207
    %p216 = scmp.eq.s32.totalorder %s25, 3
    %p217 = por %p215, %p216
    %p218 = scmp.ne.s32.totalorder %s207, %s208
    %p219 = scmp.eq.s32.totalorder %s25, 0
    %p220 = por %p218, %p219
    %p221 = scmp.ne.s32.totalorder %s207, %s208
    %p222 = scmp.eq.s32.totalorder %s26, 3
    %p223 = por %p221, %p222
    %p225 = scmp.ne.s32.totalorder %s208, %s224
    %p226 = scmp.eq.s32.totalorder %s26, 0
    %p227 = por %p225, %p226
    %s228 = ssub.s32 %s28, %s35
    %p229 = scmp.eq.s32.totalorder %s228, 0
    %s231 = sadd.s32 %s230, 1
    %s232 = scalar_select %p229, %s230, %s231
    %p235 = pneg %p229
    %p236 = scmp.eq.s32.totalorder %s20, 3
    %p237 = por %p235, %p236
    %p238 = scmp.ne.s32.totalorder %s230, %s233
    %p239 = scmp.eq.s32.totalorder %s20, 0
    %p240 = por %p238, %p239
    %p241 = scmp.ne.s32.totalorder %s230, %s233
    %p242 = scmp.eq.s32.totalorder %s25, 3
    %p243 = por %p241, %p242
    %p244 = scmp.ne.s32.totalorder %s233, %s234
    %p245 = scmp.eq.s32.totalorder %s25, 0
    %p246 = por %p244, %p245
    %p247 = scmp.ne.s32.totalorder %s233, %s234
    %p248 = scmp.eq.s32.totalorder %s26, 3
    %p249 = por %p247, %p248
    %p251 = scmp.ne.s32.totalorder %s234, %s250
    %p252 = scmp.eq.s32.totalorder %s26, 0
    %p253 = por %p251, %p252
    %s254 = ssub.s32 %s28, %s35
    %p255 = scmp.eq.s32.totalorder %s254, 0
    %s257 = sadd.s32 %s256, 1
    %s258 = scalar_select %p255, %s256, %s257
    %p261 = pneg %p255
    %p262 = scmp.eq.s32.totalorder %s20, 3
    %p263 = por %p261, %p262
    %p264 = scmp.ne.s32.totalorder %s256, %s259
    %p265 = scmp.eq.s32.totalorder %s20, 0
    %p266 = por %p264, %p265
    %p267 = scmp.ne.s32.totalorder %s256, %s259
    %p268 = scmp.eq.s32.totalorder %s25, 3
    %p269 = por %p267, %p268
    %p270 = scmp.ne.s32.totalorder %s259, %s260
    %p271 = scmp.eq.s32.totalorder %s25, 0
    %p272 = por %p270, %p271
    %p273 = scmp.ne.s32.totalorder %s259, %s260
    %p274 = scmp.eq.s32.totalorder %s26, 3
    %p275 = por %p273, %p274
    %p277 = scmp.ne.s32.totalorder %s260, %s276
    %p278 = scmp.eq.s32.totalorder %s26, 0
    %p279 = por %p277, %p278
    %s280 = ssub.s32 %s28, %s35
    %p281 = scmp.eq.s32.totalorder %s280, 0
    %s283 = sadd.s32 %s282, 1
    %s284 = scalar_select %p281, %s282, %s283
    %p287 = pneg %p281
    %p288 = scmp.eq.s32.totalorder %s20, 3
    %p289 = por %p287, %p288
    %p290 = scmp.ne.s32.totalorder %s282, %s285
    %p291 = scmp.eq.s32.totalorder %s20, 0
    %p292 = por %p290, %p291
    %p293 = scmp.ne.s32.totalorder %s282, %s285
    %p294 = scmp.eq.s32.totalorder %s25, 3
    %p295 = por %p293, %p294
    %p296 = scmp.ne.s32.totalorder %s285, %s286
    %p297 = scmp.eq.s32.totalorder %s25, 0
    %p298 = por %p296, %p297
    %p299 = scmp.ne.s32.totalorder %s285, %s286
    %p300 = scmp.eq.s32.totalorder %s26, 3
    %p301 = por %p299, %p300
    %p303 = scmp.ne.s32.totalorder %s286, %s302
    %p304 = scmp.eq.s32.totalorder %s26, 0
    %p305 = por %p303, %p304
    %s306 = ssub.s32 %s28, %s35
    %p307 = scmp.eq.s32.totalorder %s306, 0
    %s309 = sadd.s32 %s308, 1
    %s310 = scalar_select %p307, %s308, %s309
    %p313 = pneg %p307
    %p314 = scmp.eq.s32.totalorder %s20, 3
    %p315 = por %p313, %p314
    %p316 = scmp.ne.s32.totalorder %s308, %s311
    %p317 = scmp.eq.s32.totalorder %s20, 0
    %p318 = por %p316, %p317
    %p319 = scmp.ne.s32.totalorder %s308, %s311
    %p320 = scmp.eq.s32.totalorder %s25, 3
    %p321 = por %p319, %p320
    %p322 = scmp.ne.s32.totalorder %s311, %s312
    %p323 = scmp.eq.s32.totalorder %s25, 0
    %p324 = por %p322, %p323
    %p325 = scmp.ne.s32.totalorder %s311, %s312
    %p326 = scmp.eq.s32.totalorder %s26, 3
    %p327 = por %p325, %p326
    %p329 = scmp.ne.s32.totalorder %s312, %s328
    %p330 = scmp.eq.s32.totalorder %s26, 0
    %p331 = por %p329, %p330
    %s332 = ssub.s32 %s28, %s35
    %p333 = scmp.eq.s32.totalorder %s332, 0
    %s335 = sadd.s32 %s334, 1
    %s336 = scalar_select %p333, %s334, %s335
    %p339 = pneg %p333
    %p340 = scmp.eq.s32.totalorder %s20, 3
    %p341 = por %p339, %p340
    %p342 = scmp.ne.s32.totalorder %s334, %s337
    %p343 = scmp.eq.s32.totalorder %s20, 0
    %p344 = por %p342, %p343
    %p345 = scmp.ne.s32.totalorder %s334, %s337
    %p346 = scmp.eq.s32.totalorder %s25, 3
    %p347 = por %p345, %p346
    %p348 = scmp.ne.s32.totalorder %s337, %s338
    %p349 = scmp.eq.s32.totalorder %s25, 0
    %p350 = por %p348, %p349
    %p351 = scmp.ne.s32.totalorder %s337, %s338
    %p352 = scmp.eq.s32.totalorder %s26, 3
    %p353 = por %p351, %p352
    %p355 = scmp.ne.s32.totalorder %s338, %s354
    %p356 = scmp.eq.s32.totalorder %s26, 0
    %p357 = por %p355, %p356
    %s358 = ssub.s32 %s28, %s35
    %p359 = scmp.eq.s32.totalorder %s358, 0
    %s361 = sadd.s32 %s360, 1
    %s362 = scalar_select %p359, %s360, %s361
    %p365 = pneg %p359
    %p366 = scmp.eq.s32.totalorder %s20, 3
    %p367 = por %p365, %p366
    %p368 = scmp.ne.s32.totalorder %s360, %s363
    %p369 = scmp.eq.s32.totalorder %s20, 0
    %p370 = por %p368, %p369
    %p371 = scmp.ne.s32.totalorder %s360, %s363
    %p372 = scmp.eq.s32.totalorder %s25, 3
    %p373 = por %p371, %p372
    %p374 = scmp.ne.s32.totalorder %s363, %s364
    %p375 = scmp.eq.s32.totalorder %s25, 0
    %p376 = por %p374, %p375
    %p377 = scmp.ne.s32.totalorder %s363, %s364
    %p378 = scmp.eq.s32.totalorder %s26, 3
    %p379 = por %p377, %p378
    %p381 = scmp.ne.s32.totalorder %s364, %s380
    %p382 = scmp.eq.s32.totalorder %s26, 0
    %p383 = por %p381, %p382
    %s384 = ssub.s32 %s27, %s39
    %p385 = scmp.eq.s32.totalorder %s384, 0
    %s387 = sadd.s32 %s386, 1
    %s388 = scalar_select %p385, %s386, %s387
    %p391 = pneg %p385
    %p392 = scmp.eq.s32.totalorder %s20, 3
    %p393 = por %p391, %p392
    %p394 = scmp.ne.s32.totalorder %s386, %s389
    %p395 = scmp.eq.s32.totalorder %s20, 0
    %p396 = por %p394, %p395
    %p397 = scmp.ne.s32.totalorder %s386, %s389
    %p398 = scmp.eq.s32.totalorder %s25, 3
    %p399 = por %p397, %p398
    %p400 = scmp.ne.s32.totalorder %s389, %s390
    %p401 = scmp.eq.s32.totalorder %s25, 0
    %p402 = por %p400, %p401
    %p403 = scmp.ne.s32.totalorder %s389, %s390
    %p404 = scmp.eq.s32.totalorder %s26, 3
    %p405 = por %p403, %p404
    %p407 = scmp.ne.s32.totalorder %s390, %s406
    %p408 = scmp.eq.s32.totalorder %s26, 0
    %p409 = por %p407, %p408
    %p410 = scmp.le.s32.totalorder 1, %s20
    %p411 = scmp.lt.s32.totalorder %s20, 5
    %p412 = pnand %p410, %p411
    %p413 = pneg %p412
    // Predicated region
    $region9: #{tpu_custom_call.1} parent=5 // pred_check
      _
    $region10: #{tpu_custom_call.1} parent=5 // pred_check_branch
      %415 = sbr.rel (%p412) target = $region12
    $region11: #{tpu_custom_call.1} parent=5 // pred_region
      %s416 = ssub.s32 %s20, 1
      // Predicated region
      $region13: #{tpu_custom_call.1} parent=11 // pred_check
        %p417 = pneg %p79
      $region14: #{tpu_custom_call.1} parent=11 // pred_check_branch
        %419 = sbr.rel (%p417) target = $region16
      $region15: #{tpu_custom_call.1} parent=11 // pred_region
        _
      $region16: #{tpu_custom_call.1} parent=11 // pred_fallthru
        _
      // Predicated region
      $region17: #{tpu_custom_call.1} parent=11 // pred_check
        %p420 = pneg %p100
      $region18: #{tpu_custom_call.1} parent=11 // pred_check_branch
        %422 = sbr.rel (%p420) target = $region20
      $region19: #{tpu_custom_call.1} parent=11 // pred_region
        _
      $region20: #{tpu_custom_call.1} parent=11 // pred_fallthru
        _
      // Predicated region
      $region21: #{tpu_custom_call.1} parent=11 // pred_check
        %p423 = pneg %p121
      $region22: #{tpu_custom_call.1} parent=11 // pred_check_branch
        %425 = sbr.rel (%p423) target = $region24
      $region23: #{tpu_custom_call.1} parent=11 // pred_region
        _
      $region24: #{tpu_custom_call.1} parent=11 // pred_fallthru
        _
      // Predicated region
      $region25: #{tpu_custom_call.1} parent=11 // pred_check
        %p426 = pneg %p142
      $region26: #{tpu_custom_call.1} parent=11 // pred_check_branch
        %428 = sbr.rel (%p426) target = $region28
      $region27: #{tpu_custom_call.1} parent=11 // pred_region
        _
      $region28: #{tpu_custom_call.1} parent=11 // pred_fallthru
        _
    $region12: #{tpu_custom_call.1} parent=5 // pred_fallthru
      _
    %p429 = scmp.lt.s32.totalorder %s20, 4
    // Predicated region
    $region29: #{tpu_custom_call.1} parent=5 // pred_check
      %p430 = pneg %p429
    $region30: #{tpu_custom_call.1} parent=5 // pred_check_branch
      %432 = sbr.rel (%p430) target = $region32
    $region31: #{tpu_custom_call.1} parent=5 // pred_region
      // Predicated region
      $region33: #{tpu_custom_call.1} parent=31 // pred_check
        %p433 = pneg %p52
      $region34: #{tpu_custom_call.1} parent=31 // pred_check_branch
        %435 = sbr.rel (%p433) target = $region36
      $region35: #{tpu_custom_call.1} parent=31 // pred_region
        %p436 = scmp.lt.s32.totalorder %s27, 1
        %s437 = scalar_select %p436, %s27, 1
        %s438 = smul.addr %s437, 2
        %s439 = smul.addr %s438, 4
        %s440 = scalar_lea.vmem %s0, %s439
      $region36: #{tpu_custom_call.1} parent=31 // pred_fallthru
        _
      // Predicated region
      $region37: #{tpu_custom_call.1} parent=31 // pred_check
        %p441 = pneg %p162
      $region38: #{tpu_custom_call.1} parent=31 // pred_check_branch
        %443 = sbr.rel (%p441) target = $region40
      $region39: #{tpu_custom_call.1} parent=31 // pred_region
        %p444 = scmp.lt.s32.totalorder %s28, 1
        %s445 = scalar_select %p444, %s28, 1
        %s446 = smul.addr %s445, 4
        %s447 = smul.addr %s446, 4
        %s448 = scalar_lea.vmem %s5, %s447
      $region40: #{tpu_custom_call.1} parent=31 // pred_fallthru
        _
      // Predicated region
      $region41: #{tpu_custom_call.1} parent=31 // pred_check
        %p449 = pneg %p188
      $region42: #{tpu_custom_call.1} parent=31 // pred_check_branch
        %451 = sbr.rel (%p449) target = $region44
      $region43: #{tpu_custom_call.1} parent=31 // pred_region
        %p452 = scmp.lt.s32.totalorder %s28, 1
        %s453 = scalar_select %p452, %s28, 1
        %s454 = smul.addr %s453, 4
        %s455 = smul.addr %s454, 8
        %s456 = scalar_lea.vmem %s6, %s455
      $region44: #{tpu_custom_call.1} parent=31 // pred_fallthru
        _
      // Predicated region
      $region45: #{tpu_custom_call.1} parent=31 // pred_check
        %p457 = pneg %p214
      $region46: #{tpu_custom_call.1} parent=31 // pred_check_branch
        %459 = sbr.rel (%p457) target = $region48
      $region47: #{tpu_custom_call.1} parent=31 // pred_region
        %p460 = scmp.lt.s32.totalorder %s28, 1
        %s461 = scalar_select %p460, %s28, 1
        %s462 = smul.addr %s461, 4
        %s463 = smul.addr %s462, 4
        %s464 = scalar_lea.vmem %s7, %s463
      $region48: #{tpu_custom_call.1} parent=31 // pred_fallthru
        _
      // Predicated region
      $region49: #{tpu_custom_call.1} parent=31 // pred_check
        %p465 = pneg %p240
      $region50: #{tpu_custom_call.1} parent=31 // pred_check_branch
        %467 = sbr.rel (%p465) target = $region52
      $region51: #{tpu_custom_call.1} parent=31 // pred_region
        %p468 = scmp.lt.s32.totalorder %s28, 1
        %s469 = scalar_select %p468, %s28, 1
        %s470 = smul.addr %s469, 4
        %s471 = smul.addr %s470, 8
        %s472 = scalar_lea.vmem %s8, %s471
      $region52: #{tpu_custom_call.1} parent=31 // pred_fallthru
        _
      // Predicated region
      $region53: #{tpu_custom_call.1} parent=31 // pred_check
        %p473 = pneg %p266
      $region54: #{tpu_custom_call.1} parent=31 // pred_check_branch
        %475 = sbr.rel (%p473) target = $region56
      $region55: #{tpu_custom_call.1} parent=31 // pred_region
        %p476 = scmp.lt.s32.totalorder %s28, 1
        %s477 = scalar_select %p476, %s28, 1
        %s478 = smul.addr %s477, 4
        %s479 = smul.addr %s478, 4
        %s480 = scalar_lea.vmem %s9, %s479
      $region56: #{tpu_custom_call.1} parent=31 // pred_fallthru
        _
      // Predicated region
      $region57: #{tpu_custom_call.1} parent=31 // pred_check
        %p481 = pneg %p292
      $region58: #{tpu_custom_call.1} parent=31 // pred_check_branch
        %483 = sbr.rel (%p481) target = $region60
      $region59: #{tpu_custom_call.1} parent=31 // pred_region
        %p484 = scmp.lt.s32.totalorder %s28, 1
        %s485 = scalar_select %p484, %s28, 1
        %s486 = smul.addr %s485, 4
        %s487 = smul.addr %s486, 8
        %s488 = scalar_lea.vmem %s10, %s487
      $region60: #{tpu_custom_call.1} parent=31 // pred_fallthru
        _
      // Predicated region
      $region61: #{tpu_custom_call.1} parent=31 // pred_check
        %p489 = pneg %p318
      $region62: #{tpu_custom_call.1} parent=31 // pred_check_branch
        %491 = sbr.rel (%p489) target = $region64
      $region63: #{tpu_custom_call.1} parent=31 // pred_region
        %p492 = scmp.lt.s32.totalorder %s28, 1
        %s493 = scalar_select %p492, %s28, 1
        %s494 = smul.addr %s493, 4
        %s495 = smul.addr %s494, 4
        %s496 = scalar_lea.vmem %s11, %s495
      $region64: #{tpu_custom_call.1} parent=31 // pred_fallthru
        _
      // Predicated region
      $region65: #{tpu_custom_call.1} parent=31 // pred_check
        %p497 = pneg %p344
      $region66: #{tpu_custom_call.1} parent=31 // pred_check_branch
        %499 = sbr.rel (%p497) target = $region68
      $region67: #{tpu_custom_call.1} parent=31 // pred_region
        %p500 = scmp.lt.s32.totalorder %s28, 1
        %s501 = scalar_select %p500, %s28, 1
        %s502 = smul.addr %s501, 4
        %s503 = smul.addr %s502, 8
        %s504 = scalar_lea.vmem %s12, %s503
      $region68: #{tpu_custom_call.1} parent=31 // pred_fallthru
        _
      // Predicated region
      $region69: #{tpu_custom_call.1} parent=31 // pred_check
        %p505 = pneg %p370
      $region70: #{tpu_custom_call.1} parent=31 // pred_check_branch
        %507 = sbr.rel (%p505) target = $region72
      $region71: #{tpu_custom_call.1} parent=31 // pred_region
        %p508 = scmp.lt.s32.totalorder %s28, 1
        %s509 = scalar_select %p508, %s28, 1
        %s510 = smul.addr %s509, 4
        %s511 = smul.addr %s510, 4
        %s512 = scalar_lea.vmem %s13, %s511
      $region72: #{tpu_custom_call.1} parent=31 // pred_fallthru
        _
    $region32: #{tpu_custom_call.1} parent=5 // pred_fallthru
      _
    %p513 = scmp.le.s32.totalorder 1, %s20
    %p514 = scmp.lt.s32.totalorder %s20, 5
    %p515 = pnand %p513, %p514
    %p516 = pneg %p515
    // Predicated region
    $region73: #{tpu_custom_call.1} parent=5 // pred_check
      _
    $region74: #{tpu_custom_call.1} parent=5 // pred_check_branch
      %518 = sbr.rel (%p515) target = $region76
    $region75: #{tpu_custom_call.1} parent=5 // pred_region
      %s519 = ssub.s32 %s20, 1
      %p520 = scmp.lt.s32.totalorder %s29, 1
      %s521 = scalar_select %p520, %s29, 1
      %s522 = smul.addr %s521, 2
      %s523 = smul.addr %s522, 4
      %s524 = scalar_lea.vmem %s0, %s523
      %p525 = pneg %p58
      %p526 = pneg %p55
      %p527 = pneg %p79
      %p528 = pneg %p76
      %p529 = pneg %p100
      %p530 = pneg %p97
      %p531 = pneg %p121
      %p532 = pneg %p118
      %p533 = pneg %p142
      %p534 = pneg %p139
      %p535 = scmp.lt.s32.totalorder %s30, 1
      %s536 = scalar_select %p535, %s30, 1
      %s537 = smul.addr %s536, 4
      %s538 = smul.addr %s537, 4
      %s539 = scalar_lea.vmem %s5, %s538
      %p540 = pneg %p168
      %p541 = pneg %p165
      %p542 = scmp.lt.s32.totalorder %s30, 1
      %s543 = scalar_select %p542, %s30, 1
      %s544 = smul.addr %s543, 4
      %s545 = smul.addr %s544, 8
      %s546 = scalar_lea.vmem %s6, %s545
      %p547 = pneg %p194
      %p548 = pneg %p191
      %p549 = scmp.lt.s32.totalorder %s30, 1
      %s550 = scalar_select %p549, %s30, 1
      %s551 = smul.addr %s550, 4
      %s552 = smul.addr %s551, 4
      %s553 = scalar_lea.vmem %s7, %s552
      %p554 = pneg %p220
      %p555 = pneg %p217
      %p556 = scmp.lt.s32.totalorder %s30, 1
      %s557 = scalar_select %p556, %s30, 1
      %s558 = smul.addr %s557, 4
      %s559 = smul.addr %s558, 8
      %s560 = scalar_lea.vmem %s8, %s559
      %p561 = pneg %p246
      %p562 = pneg %p243
      %p563 = scmp.lt.s32.totalorder %s30, 1
      %s564 = scalar_select %p563, %s30, 1
      %s565 = smul.addr %s564, 4
      %s566 = smul.addr %s565, 4
      %s567 = scalar_lea.vmem %s9, %s566
      %p568 = pneg %p272
      %p569 = pneg %p269
      %p570 = scmp.lt.s32.totalorder %s30, 1
      %s571 = scalar_select %p570, %s30, 1
      %s572 = smul.addr %s571, 4
      %s573 = smul.addr %s572, 8
      %s574 = scalar_lea.vmem %s10, %s573
      %p575 = pneg %p298
      %p576 = pneg %p295
      %p577 = scmp.lt.s32.totalorder %s30, 1
      %s578 = scalar_select %p577, %s30, 1
      %s579 = smul.addr %s578, 4
      %s580 = smul.addr %s579, 4
      %s581 = scalar_lea.vmem %s11, %s580
      %p582 = pneg %p324
      %p583 = pneg %p321
      %p584 = scmp.lt.s32.totalorder %s30, 1
      %s585 = scalar_select %p584, %s30, 1
      %s586 = smul.addr %s585, 4
      %s587 = smul.addr %s586, 8
      %s588 = scalar_lea.vmem %s12, %s587
      %p589 = pneg %p350
      %p590 = pneg %p347
      %p591 = scmp.lt.s32.totalorder %s30, 1
      %s592 = scalar_select %p591, %s30, 1
      %s593 = smul.addr %s592, 4
      %s594 = smul.addr %s593, 4
      %s595 = scalar_lea.vmem %s13, %s594
      %p596 = pneg %p376
      %p597 = pneg %p373
      %p598 = pneg %p402
      %p599 = pneg %p399
      %p600 = scmp.lt.s32.totalorder %s29, 1
      %s601 = scalar_select %p600, %s29, 1
      %s602 = smul.addr %s601, 4
      %s603 = smul.addr %s602, 8
      %s604 = scalar_lea.vmem %s14, %s603
      %p605 = scmp.lt.s32.totalorder %s29, 1
      %s606 = scalar_select %p605, %s29, 1
      %s607 = smul.addr %s606, 2
      %s608 = smul.addr %s607, 4
      %s609 = scalar_lea.vmem %s0, %s608
      %p610 = scmp.lt.s32.totalorder %s30, 1
      %s611 = scalar_select %p610, %s30, 1
      %s612 = smul.addr %s611, 4
      %s613 = smul.addr %s612, 4
      %s614 = scalar_lea.vmem %s5, %s613
      %p615 = scmp.lt.s32.totalorder %s30, 1
      %s616 = scalar_select %p615, %s30, 1
      %s617 = smul.addr %s616, 4
      %s618 = smul.addr %s617, 8
      %s619 = scalar_lea.vmem %s6, %s618
      %p620 = scmp.lt.s32.totalorder %s30, 1
      %s621 = scalar_select %p620, %s30, 1
      %s622 = smul.addr %s621, 4
      %s623 = smul.addr %s622, 4
      %s624 = scalar_lea.vmem %s7, %s623
      %p625 = scmp.lt.s32.totalorder %s30, 1
      %s626 = scalar_select %p625, %s30, 1
      %s627 = smul.addr %s626, 4
      %s628 = smul.addr %s627, 8
      %s629 = scalar_lea.vmem %s8, %s628
      %p630 = scmp.lt.s32.totalorder %s30, 1
      %s631 = scalar_select %p630, %s30, 1
      %s632 = smul.addr %s631, 4
      %s633 = smul.addr %s632, 4
      %s634 = scalar_lea.vmem %s9, %s633
      %p635 = scmp.lt.s32.totalorder %s30, 1
      %s636 = scalar_select %p635, %s30, 1
      %s637 = smul.addr %s636, 4
      %s638 = smul.addr %s637, 8
      %s639 = scalar_lea.vmem %s10, %s638
      %p640 = scmp.lt.s32.totalorder %s30, 1
      %s641 = scalar_select %p640, %s30, 1
      %s642 = smul.addr %s641, 4
      %s643 = smul.addr %s642, 4
      %s644 = scalar_lea.vmem %s11, %s643
      %p645 = scmp.lt.s32.totalorder %s30, 1
      %s646 = scalar_select %p645, %s30, 1
      %s647 = smul.addr %s646, 4
      %s648 = smul.addr %s647, 8
      %s649 = scalar_lea.vmem %s12, %s648
      %p650 = scmp.lt.s32.totalorder %s30, 1
      %s651 = scalar_select %p650, %s30, 1
      %s652 = smul.addr %s651, 4
      %s653 = smul.addr %s652, 4
      %s654 = scalar_lea.vmem %s13, %s653
      %p655 = scmp.lt.s32.totalorder %s29, 1
      %s656 = scalar_select %p655, %s29, 1
      %s657 = smul.addr %s656, 4
      %s658 = smul.addr %s657, 8
      %s659 = scalar_lea.vmem %s14, %s658
      %p661 = scmp.eq.s32.totalorder %s30, 0
      // Predicated region
      $region77: #{tpu_custom_call.1} parent=75 // pred_check
        %p662 = pneg %p661
      $region78: #{tpu_custom_call.1} parent=75 // pred_check_branch
        %664 = sbr.rel (%p662) target = $region80
      $region79: #{tpu_custom_call.1} parent=75 // pred_region
        %v665 = vld [vmem:[%s1] sm:$0xf]
        %v666 = vld [vmem:[%s1 + $0x4] sm:$0xf]
        %v667 = vld [vmem:[%s1 + $0x8] sm:$0xf]
        %v668 = vld [vmem:[%s1 + $0xc] sm:$0xf]
        %v669 = vld [vmem:[%s609] sm:$0xf]
        %v670 = vld [vmem:[%s609 + $0x4] sm:$0xf]
        %v671 = vld [vmem:[%s2] sm:$0xff]
        %v672 = vld [vmem:[%s2 + $0x8] sm:$0xff]
        %v673 = vld [vmem:[%s2 + $0x10] sm:$0xff]
        %v674 = vld [vmem:[%s2 + $0x18] sm:$0xff]
        %676 = vset.pattern.permute.xlu0 0
        %677 = vperm.xlu0 %676, %v671
        %v678 = vpop.permute.xlu0 %677
        %681 = vset.pattern.permute.xlu0 0
        %682 = vperm.xlu0 %681, %v672
        %v683 = vpop.permute.xlu0 %682
        %686 = vset.pattern.permute.xlu0 0
        %687 = vperm.xlu0 %686, %v673
        %v688 = vpop.permute.xlu0 %687
        %691 = vset.pattern.permute.xlu0 0
        %692 = vperm.xlu0 %691, %v674
        %v693 = vpop.permute.xlu0 %692
        %v699 = vunpack.c.l.b16 %v665
        %v700 = vunpack.c.l.b16 %v666
        %v701 = vunpack.c.l.b16 %v667
        %v702 = vunpack.c.l.b16 %v668
        %v703 = vpack.c.b16 %v700, %v699
        %v704 = vpack.c.b16 %v702, %v701
        %v707 = vunpack.c.l.b16 %v669
        %v708 = vunpack.c.l.b16 %v670
        %v709 = vpack.c.b16 %v708, %v707
        %vm711 = vcmask 130048
        %v713 = vsel %vm711, %v703, 0
        %v716 = vsel %vm711, %v704, 0
        %718 = vmatpush.bf16.msra.mxu0 0
        %719 = vmatpush.bf16.msra.mxu0 0
        %720 = vmatpush.bf16.msra.mxu0 0
        %721 = vmatpush.bf16.msra.mxu0 0
        %722 = vmatpush.bf16.msra.mxu0 0
        %723 = vmatpush.bf16.msra.mxu0 0
        %724 = vmatpush.bf16.msra.mxu0 0
        %725 = vmatpush.bf16.msra.mxu0 %v709
        %726 = vmatmul.bf16.gmra.mxu0 %v713
        %v727 = vpop.f32.mrf.mxu0
        %v728 = vadd.f32 %v678, %v727
        %v729 = vpop.f32.mrf.mxu0
        %v730 = vadd.f32 %v683, %v729
        %731 = vmatmul.bf16.gmra.mxu0 %v716
        %v732 = vpop.f32.mrf.mxu0
        %v733 = vadd.f32 %v688, %v732
        %v734 = vpop.f32.mrf.mxu0
        %v735 = vadd.f32 %v693, %v734
        %736 = vdwg.mxu0
        %v737 = vsub.f32 0.0, %v728
        %v738 = vsub.f32 0.0, %v730
        %v739 = vsub.f32 0.0, %v733
        %v740 = vsub.f32 0.0, %v735
        %v741 = vmul.f32 %v737, 1.442695
        %v742 = vpow.pop %v741
        %v743 = vmul.f32 %v738, 1.442695
        %v744 = vpow.pop %v743
        %v745 = vmul.f32 %v739, 1.442695
        %v746 = vpow.pop %v745
        %v747 = vmul.f32 %v740, 1.442695
        %v748 = vpow.pop %v747
        %v749 = vadd.f32 %v742, 1.0
        %v750 = vadd.f32 %v744, 1.0
        %v751 = vadd.f32 %v746, 1.0
        %v752 = vadd.f32 %v748, 1.0
        %v753 = vrcp.pop %v749
        %v754 = vmul.f32 %v749, %v753
        %v755 = vsub.f32 1.0, %v754
        %v756 = vmul.f32 %v753, %v755
        %v757 = vadd.f32 %v753, %v756
        %vm758 = vweird.f32 %v749
        %vm759 = vweird.f32 %v753
        %vm760 = vmor %vm758, %vm759
        %v761 = vsel %vm760, %v753, %v757
        %v762 = vand.u32 2147483647, %v749
        %vm763 = vcmp.eq.f32.partialorder %v762, 8.507059e+37
        %v764 = vand.u32 %v749, 2147483648
        %v765 = vor.u32 1.1754944e-38, %v764
        %v766 = vsel %vm763, %v765, %v761
        %v767 = vmul.f32 1.0, %v766
        %v768 = vrcp.pop %v750
        %v769 = vmul.f32 %v750, %v768
        %v770 = vsub.f32 1.0, %v769
        %v771 = vmul.f32 %v768, %v770
        %v772 = vadd.f32 %v768, %v771
        %vm773 = vweird.f32 %v750
        %vm774 = vweird.f32 %v768
        %vm775 = vmor %vm773, %vm774
        %v776 = vsel %vm775, %v768, %v772
        %v777 = vand.u32 2147483647, %v750
        %vm778 = vcmp.eq.f32.partialorder %v777, 8.507059e+37
        %v779 = vand.u32 %v750, 2147483648
        %v780 = vor.u32 1.1754944e-38, %v779
        %v781 = vsel %vm778, %v780, %v776
        %v782 = vmul.f32 1.0, %v781
        %v783 = vrcp.pop %v751
        %v784 = vmul.f32 %v751, %v783
        %v785 = vsub.f32 1.0, %v784
        %v786 = vmul.f32 %v783, %v785
        %v787 = vadd.f32 %v783, %v786
        %vm788 = vweird.f32 %v751
        %vm789 = vweird.f32 %v783
        %vm790 = vmor %vm788, %vm789
        %v791 = vsel %vm790, %v783, %v787
        %v792 = vand.u32 2147483647, %v751
        %vm793 = vcmp.eq.f32.partialorder %v792, 8.507059e+37
        %v794 = vand.u32 %v751, 2147483648
        %v795 = vor.u32 1.1754944e-38, %v794
        %v796 = vsel %vm793, %v795, %v791
        %v797 = vmul.f32 1.0, %v796
        %v798 = vrcp.pop %v752
        %v799 = vmul.f32 %v752, %v798
        %v800 = vsub.f32 1.0, %v799
        %v801 = vmul.f32 %v798, %v800
        %v802 = vadd.f32 %v798, %v801
        %vm803 = vweird.f32 %v752
        %vm804 = vweird.f32 %v798
        %vm805 = vmor %vm803, %vm804
        %v806 = vsel %vm805, %v798, %v802
        %v807 = vand.u32 2147483647, %v752
        %vm808 = vcmp.eq.f32.partialorder %v807, 8.507059e+37
        %v809 = vand.u32 %v752, 2147483648
        %v810 = vor.u32 1.1754944e-38, %v809
        %v811 = vsel %vm808, %v810, %v806
        %v812 = vmul.f32 1.0, %v811
        %v813 = vmul.f32 %v728, %v767
        %v814 = vmul.f32 %v730, %v782
        %v815 = vmul.f32 %v733, %v797
        %v816 = vmul.f32 %v735, %v812
        %v817 = vld [vmem:[%s3] sm:$0xf]
        %v818 = vld [vmem:[%s3 + $0x4] sm:$0xf]
        %v819 = vld [vmem:[%s3 + $0x8] sm:$0xf]
        %v820 = vld [vmem:[%s3 + $0xc] sm:$0xf]
        %v821 = vpack.c.bf16 %v814, %v813
        %v822 = vpack.c.bf16 %v816, %v815
        %v827 = vunpack.c.l.b16 %v817
        %v828 = vunpack.c.l.b16 %v818
        %v829 = vunpack.c.l.b16 %v819
        %v830 = vunpack.c.l.b16 %v820
        %v831 = vpack.c.b16 %v828, %v827
        %v832 = vpack.c.b16 %v830, %v829
        %vm833 = vcmask 261120
        %v835 = vsel %vm833, %v831, 0
        %v838 = vsel %vm833, %v832, 0
        %840 = vmatpush.bf16.msra.mxu0 0
        %841 = vmatpush.bf16.msra.mxu0 0
        %842 = vmatpush.bf16.msra.mxu0 0
        %843 = vmatpush.bf16.msra.mxu0 0
        %844 = vmatpush.bf16.msra.mxu0 0
        %845 = vmatpush.bf16.msra.mxu0 0
        %846 = vmatpush.bf16.msra.mxu0 %v822
        %847 = vmatpush.bf16.msra.mxu0 %v821
        %848 = vmatmul.bf16.gmra.mxu0 %v835
        %v849 = vpop.f32.mrf.mxu0
        %v850 = vadd.f32 0.0, %v849
        %v851 = vpop.f32.mrf.mxu0
        %v852 = vadd.f32 0.0, %v851
        %853 = vmatmul.bf16.gmra.mxu0 %v838
        %v854 = vpop.f32.mrf.mxu0
        %v855 = vadd.f32 0.0, %v854
        %v856 = vpop.f32.mrf.mxu0
        %v857 = vadd.f32 0.0, %v856
        %858 = vdwg.mxu0
        %v859 = vadd.f32 %v813, %v850
        %v860 = vadd.f32 %v814, %v852
        %v861 = vadd.f32 %v815, %v855
        %v862 = vadd.f32 %v816, %v857
        %v863 = vld [vmem:[%s4] sm:$0xff]
        %v864 = vld [vmem:[%s4 + $0x8] sm:$0xff]
        %v865 = vld [vmem:[%s4 + $0x10] sm:$0xff]
        %v866 = vld [vmem:[%s4 + $0x18] sm:$0xff]
        %868 = vset.pattern.permute.xlu0 0
        %869 = vperm.xlu0 %868, %v863
        %v870 = vpop.permute.xlu0 %869
        %873 = vset.pattern.permute.xlu0 0
        %874 = vperm.xlu0 %873, %v864
        %v875 = vpop.permute.xlu0 %874
        %878 = vset.pattern.permute.xlu0 0
        %879 = vperm.xlu0 %878, %v865
        %v880 = vpop.permute.xlu0 %879
        %883 = vset.pattern.permute.xlu0 0
        %884 = vperm.xlu0 %883, %v866
        %v885 = vpop.permute.xlu0 %884
        %v887 = vadd.f32 %v859, %v870
        %v888 = vadd.f32 %v860, %v875
        %v889 = vadd.f32 %v861, %v880
        %v890 = vadd.f32 %v862, %v885
        %891 = vst.msk [vmem:[#allocation2] sm:$0xff] %vm711, %v887
        %892 = vst.msk [vmem:[#allocation2 + $0x8] sm:$0xff] %vm711, %v888
        %893 = vst.msk [vmem:[#allocation2 + $0x10] sm:$0xff] %vm711, %v889
        %894 = vst.msk [vmem:[#allocation2 + $0x18] sm:$0xff] %vm711, %v890
      $region80: #{tpu_custom_call.1} parent=75 // pred_fallthru
        _
      %v895 = vld [vmem:[#allocation2] sm:$0xff]
      %v896 = vld [vmem:[#allocation2 + $0x8] sm:$0xff]
      %v897 = vld [vmem:[#allocation2 + $0x10] sm:$0xff]
      %v898 = vld [vmem:[#allocation2 + $0x18] sm:$0xff]
      %v899 = vld [vmem:[%s614] sm:$0xf]
      %v900 = vld [vmem:[%s614 + $0x4] sm:$0xf]
      %v901 = vld [vmem:[%s614 + $0x8] sm:$0xf]
      %v902 = vld [vmem:[%s614 + $0xc] sm:$0xf]
      %v903 = vpack.c.bf16 %v896, %v895
      %v904 = vpack.c.bf16 %v898, %v897
      %v905 = vld [vmem:[%s619] sm:$0xff]
      %v906 = vld [vmem:[%s619 + $0x8] sm:$0xff]
      %v907 = vld [vmem:[%s619 + $0x10] sm:$0xff]
      %v908 = vld [vmem:[%s619 + $0x18] sm:$0xff]
      %910 = vset.pattern.permute.xlu0 0
      %911 = vperm.xlu0 %910, %v905
      %v912 = vpop.permute.xlu0 %911
      %915 = vset.pattern.permute.xlu0 0
      %916 = vperm.xlu0 %915, %v906
      %v917 = vpop.permute.xlu0 %916
      %920 = vset.pattern.permute.xlu0 0
      %921 = vperm.xlu0 %920, %v907
      %v922 = vpop.permute.xlu0 %921
      %925 = vset.pattern.permute.xlu0 0
      %926 = vperm.xlu0 %925, %v908
      %v927 = vpop.permute.xlu0 %926
      %v933 = vunpack.c.l.b16 %v899
      %v934 = vunpack.c.l.b16 %v900
      %v935 = vunpack.c.l.b16 %v901
      %v936 = vunpack.c.l.b16 %v902
      %v937 = vpack.c.b16 %v934, %v933
      %v938 = vpack.c.b16 %v936, %v935
      %vm939 = vcmask 261120
      %v941 = vsel %vm939, %v937, 0
      %v944 = vsel %vm939, %v938, 0
      %946 = vmatpush.bf16.msra.mxu0 0
      %947 = vmatpush.bf16.msra.mxu0 0
      %948 = vmatpush.bf16.msra.mxu0 0
      %949 = vmatpush.bf16.msra.mxu0 0
      %950 = vmatpush.bf16.msra.mxu0 0
      %951 = vmatpush.bf16.msra.mxu0 0
      %952 = vmatpush.bf16.msra.mxu0 %v904
      %953 = vmatpush.bf16.msra.mxu0 %v903
      %954 = vmatmul.bf16.gmra.mxu0 %v941
      %v955 = vpop.f32.mrf.mxu0
      %v956 = vadd.f32 %v912, %v955
      %v957 = vpop.f32.mrf.mxu0
      %v958 = vadd.f32 %v917, %v957
      %959 = vmatmul.bf16.gmra.mxu0 %v944
      %v960 = vpop.f32.mrf.mxu0
      %v961 = vadd.f32 %v922, %v960
      %v962 = vpop.f32.mrf.mxu0
      %v963 = vadd.f32 %v927, %v962
      %964 = vdwg.mxu0
      %v965 = vld [vmem:[%s624] sm:$0xf]
      %v966 = vld [vmem:[%s624 + $0x4] sm:$0xf]
      %v967 = vld [vmem:[%s624 + $0x8] sm:$0xf]
      %v968 = vld [vmem:[%s624 + $0xc] sm:$0xf]
      %v969 = vld [vmem:[%s629] sm:$0xff]
      %v970 = vld [vmem:[%s629 + $0x8] sm:$0xff]
      %v971 = vld [vmem:[%s629 + $0x10] sm:$0xff]
      %v972 = vld [vmem:[%s629 + $0x18] sm:$0xff]
      %974 = vset.pattern.permute.xlu0 0
      %975 = vperm.xlu0 %974, %v969
      %v976 = vpop.permute.xlu0 %975
      %979 = vset.pattern.permute.xlu0 0
      %980 = vperm.xlu0 %979, %v970
      %v981 = vpop.permute.xlu0 %980
      %984 = vset.pattern.permute.xlu0 0
      %985 = vperm.xlu0 %984, %v971
      %v986 = vpop.permute.xlu0 %985
      %989 = vset.pattern.permute.xlu0 0
      %990 = vperm.xlu0 %989, %v972
      %v991 = vpop.permute.xlu0 %990
      %v997 = vunpack.c.l.b16 %v965
      %v998 = vunpack.c.l.b16 %v966
      %v999 = vunpack.c.l.b16 %v967
      %v1000 = vunpack.c.l.b16 %v968
      %v1001 = vpack.c.b16 %v998, %v997
      %v1002 = vpack.c.b16 %v1000, %v999
      %v1004 = vsel %vm939, %v1001, 0
      %v1007 = vsel %vm939, %v1002, 0
      %1009 = vmatpush.bf16.msra.mxu0 0
      %1010 = vmatpush.bf16.msra.mxu0 0
      %1011 = vmatpush.bf16.msra.mxu0 0
      %1012 = vmatpush.bf16.msra.mxu0 0
      %1013 = vmatpush.bf16.msra.mxu0 0
      %1014 = vmatpush.bf16.msra.mxu0 0
      %1015 = vmatpush.bf16.msra.mxu0 %v904
      %1016 = vmatpush.bf16.msra.mxu0 %v903
      %1017 = vmatmul.bf16.gmra.mxu0 %v1004
      %v1018 = vpop.f32.mrf.mxu0
      %v1019 = vadd.f32 %v976, %v1018
      %v1020 = vpop.f32.mrf.mxu0
      %v1021 = vadd.f32 %v981, %v1020
      %1022 = vmatmul.bf16.gmra.mxu0 %v1007
      %v1023 = vpop.f32.mrf.mxu0
      %v1024 = vadd.f32 %v986, %v1023
      %v1025 = vpop.f32.mrf.mxu0
      %v1026 = vadd.f32 %v991, %v1025
      %1027 = vdwg.mxu0
      %v1028 = vld [vmem:[%s634] sm:$0xf]
      %v1029 = vld [vmem:[%s634 + $0x4] sm:$0xf]
      %v1030 = vld [vmem:[%s634 + $0x8] sm:$0xf]
      %v1031 = vld [vmem:[%s634 + $0xc] sm:$0xf]
      %v1032 = vld [vmem:[%s639] sm:$0xff]
      %v1033 = vld [vmem:[%s639 + $0x8] sm:$0xff]
      %v1034 = vld [vmem:[%s639 + $0x10] sm:$0xff]
      %v1035 = vld [vmem:[%s639 + $0x18] sm:$0xff]
      %1037 = vset.pattern.permute.xlu0 0
      %1038 = vperm.xlu0 %1037, %v1032
      %v1039 = vpop.permute.xlu0 %1038
      %1042 = vset.pattern.permute.xlu0 0
      %1043 = vperm.xlu0 %1042, %v1033
      %v1044 = vpop.permute.xlu0 %1043
      %1047 = vset.pattern.permute.xlu0 0
      %1048 = vperm.xlu0 %1047, %v1034
      %v1049 = vpop.permute.xlu0 %1048
      %1052 = vset.pattern.permute.xlu0 0
      %1053 = vperm.xlu0 %1052, %v1035
      %v1054 = vpop.permute.xlu0 %1053
      %v1060 = vunpack.c.l.b16 %v1028
      %v1061 = vunpack.c.l.b16 %v1029
      %v1062 = vunpack.c.l.b16 %v1030
      %v1063 = vunpack.c.l.b16 %v1031
      %v1064 = vpack.c.b16 %v1061, %v1060
      %v1065 = vpack.c.b16 %v1063, %v1062
      %v1067 = vsel %vm939, %v1064, 0
      %v1070 = vsel %vm939, %v1065, 0
      %1072 = vmatpush.bf16.msra.mxu0 0
      %1073 = vmatpush.bf16.msra.mxu0 0
      %1074 = vmatpush.bf16.msra.mxu0 0
      %1075 = vmatpush.bf16.msra.mxu0 0
      %1076 = vmatpush.bf16.msra.mxu0 0
      %1077 = vmatpush.bf16.msra.mxu0 0
      %1078 = vmatpush.bf16.msra.mxu0 %v904
      %1079 = vmatpush.bf16.msra.mxu0 %v903
      %1080 = vmatmul.bf16.gmra.mxu0 %v1067
      %v1081 = vpop.f32.mrf.mxu0
      %v1082 = vadd.f32 %v1039, %v1081
      %v1083 = vpop.f32.mrf.mxu0
      %v1084 = vadd.f32 %v1044, %v1083
      %1085 = vmatmul.bf16.gmra.mxu0 %v1070
      %v1086 = vpop.f32.mrf.mxu0
      %v1087 = vadd.f32 %v1049, %v1086
      %v1088 = vpop.f32.mrf.mxu0
      %v1089 = vadd.f32 %v1054, %v1088
      %1090 = vdwg.mxu0
      %v1091 = vpack.c.bf16 %v1019, %v1019
      %v1092 = vpack.c.bf16 %v1021, %v1021
      %v1093 = vpack.c.bf16 %v1024, %v1024
      %v1094 = vpack.c.bf16 %v1026, %v1026
      %1095 = vxpose.xlu0.b32.start [1/16] %v956, 128
      %1096 = vxpose.xlu0.b32.cont [2/16] 0.0, 128
      %1097 = vxpose.xlu0.b32.cont [3/16] 0.0, 128
      %1098 = vxpose.xlu0.b32.cont [4/16] 0.0, 128
      %1099 = vxpose.xlu0.b32.cont [5/16] 0.0, 128
      %1100 = vxpose.xlu0.b32.cont [6/16] 0.0, 128
      %1101 = vxpose.xlu0.b32.cont [7/16] 0.0, 128
      %1102 = vxpose.xlu0.b32.cont [8/16] 0.0, 128
      %1103 = vxpose.xlu0.b32.cont [9/16] 0.0, 128
      %1104 = vxpose.xlu0.b32.cont [10/16] 0.0, 128
      %1105 = vxpose.xlu0.b32.cont [11/16] 0.0, 128
      %1106 = vxpose.xlu0.b32.cont [12/16] 0.0, 128
      %1107 = vxpose.xlu0.b32.cont [13/16] 0.0, 128
      %1108 = vxpose.xlu0.b32.cont [14/16] 0.0, 128
      %1109 = vxpose.xlu0.b32.cont [15/16] 0.0, 128
      %1110 = vxpose.xlu0.b32.end [16/16] 0.0, 128
      %v1111 = vpop.trf.xlu0
      %v1112 = vpop.trf.xlu0
      %v1113 = vpop.trf.xlu0
      %v1114 = vpop.trf.xlu0
      %v1115 = vpop.trf.xlu0
      %v1116 = vpop.trf.xlu0
      %v1117 = vpop.trf.xlu0
      %v1118 = vpop.trf.xlu0
      %v1119 = vpop.trf.xlu0
      %v1120 = vpop.trf.xlu0
      %v1121 = vpop.trf.xlu0
      %v1122 = vpop.trf.xlu0
      %v1123 = vpop.trf.xlu0
      %v1124 = vpop.trf.xlu0
      %v1125 = vpop.trf.xlu0
      %v1126 = vpop.trf.xlu0
      %1127 = vxpose.xlu0.b32.start [1/16] %v958, 128
      %1128 = vxpose.xlu0.b32.cont [2/16] 0.0, 128
      %1129 = vxpose.xlu0.b32.cont [3/16] 0.0, 128
      %1130 = vxpose.xlu0.b32.cont [4/16] 0.0, 128
      %1131 = vxpose.xlu0.b32.cont [5/16] 0.0, 128
      %1132 = vxpose.xlu0.b32.cont [6/16] 0.0, 128
      %1133 = vxpose.xlu0.b32.cont [7/16] 0.0, 128
      %1134 = vxpose.xlu0.b32.cont [8/16] 0.0, 128
      %1135 = vxpose.xlu0.b32.cont [9/16] 0.0, 128
      %1136 = vxpose.xlu0.b32.cont [10/16] 0.0, 128
      %1137 = vxpose.xlu0.b32.cont [11/16] 0.0, 128
      %1138 = vxpose.xlu0.b32.cont [12/16] 0.0, 128
      %1139 = vxpose.xlu0.b32.cont [13/16] 0.0, 128
      %1140 = vxpose.xlu0.b32.cont [14/16] 0.0, 128
      %1141 = vxpose.xlu0.b32.cont [15/16] 0.0, 128
      %1142 = vxpose.xlu0.b32.end [16/16] 0.0, 128
      %v1143 = vpop.trf.xlu0
      %v1144 = vpop.trf.xlu0
      %v1145 = vpop.trf.xlu0
      %v1146 = vpop.trf.xlu0
      %v1147 = vpop.trf.xlu0
      %v1148 = vpop.trf.xlu0
      %v1149 = vpop.trf.xlu0
      %v1150 = vpop.trf.xlu0
      %v1151 = vpop.trf.xlu0
      %v1152 = vpop.trf.xlu0
      %v1153 = vpop.trf.xlu0
      %v1154 = vpop.trf.xlu0
      %v1155 = vpop.trf.xlu0
      %v1156 = vpop.trf.xlu0
      %v1157 = vpop.trf.xlu0
      %v1158 = vpop.trf.xlu0
      %1159 = vxpose.xlu0.b32.start [1/16] %v961, 128
      %1160 = vxpose.xlu0.b32.cont [2/16] 0.0, 128
      %1161 = vxpose.xlu0.b32.cont [3/16] 0.0, 128
      %1162 = vxpose.xlu0.b32.cont [4/16] 0.0, 128
      %1163 = vxpose.xlu0.b32.cont [5/16] 0.0, 128
      %1164 = vxpose.xlu0.b32.cont [6/16] 0.0, 128
      %1165 = vxpose.xlu0.b32.cont [7/16] 0.0, 128
      %1166 = vxpose.xlu0.b32.cont [8/16] 0.0, 128
      %1167 = vxpose.xlu0.b32.cont [9/16] 0.0, 128
      %1168 = vxpose.xlu0.b32.cont [10/16] 0.0, 128
      %1169 = vxpose.xlu0.b32.cont [11/16] 0.0, 128
      %1170 = vxpose.xlu0.b32.cont [12/16] 0.0, 128
      %1171 = vxpose.xlu0.b32.cont [13/16] 0.0, 128
      %1172 = vxpose.xlu0.b32.cont [14/16] 0.0, 128
      %1173 = vxpose.xlu0.b32.cont [15/16] 0.0, 128
      %1174 = vxpose.xlu0.b32.end [16/16] 0.0, 128
      %v1175 = vpop.trf.xlu0
      %v1176 = vpop.trf.xlu0
      %v1177 = vpop.trf.xlu0
      %v1178 = vpop.trf.xlu0
      %v1179 = vpop.trf.xlu0
      %v1180 = vpop.trf.xlu0
      %v1181 = vpop.trf.xlu0
      %v1182 = vpop.trf.xlu0
      %v1183 = vpop.trf.xlu0
      %v1184 = vpop.trf.xlu0
      %v1185 = vpop.trf.xlu0
      %v1186 = vpop.trf.xlu0
      %v1187 = vpop.trf.xlu0
      %v1188 = vpop.trf.xlu0
      %v1189 = vpop.trf.xlu0
      %v1190 = vpop.trf.xlu0
      %1191 = vxpose.xlu0.b32.start [1/16] %v963, 128
      %1192 = vxpose.xlu0.b32.cont [2/16] 0.0, 128
      %1193 = vxpose.xlu0.b32.cont [3/16] 0.0, 128
      %1194 = vxpose.xlu0.b32.cont [4/16] 0.0, 128
      %1195 = vxpose.xlu0.b32.cont [5/16] 0.0, 128
      %1196 = vxpose.xlu0.b32.cont [6/16] 0.0, 128
      %1197 = vxpose.xlu0.b32.cont [7/16] 0.0, 128
      %1198 = vxpose.xlu0.b32.cont [8/16] 0.0, 128
      %1199 = vxpose.xlu0.b32.cont [9/16] 0.0, 128
      %1200 = vxpose.xlu0.b32.cont [10/16] 0.0, 128
      %1201 = vxpose.xlu0.b32.cont [11/16] 0.0, 128
      %1202 = vxpose.xlu0.b32.cont [12/16] 0.0, 128
      %1203 = vxpose.xlu0.b32.cont [13/16] 0.0, 128
      %1204 = vxpose.xlu0.b32.cont [14/16] 0.0, 128
      %1205 = vxpose.xlu0.b32.cont [15/16] 0.0, 128
      %1206 = vxpose.xlu0.b32.end [16/16] 0.0, 128
      %v1207 = vpop.trf.xlu0
      %v1208 = vpop.trf.xlu0
      %v1209 = vpop.trf.xlu0
      %v1210 = vpop.trf.xlu0
      %v1211 = vpop.trf.xlu0
      %v1212 = vpop.trf.xlu0
      %v1213 = vpop.trf.xlu0
      %v1214 = vpop.trf.xlu0
      %v1215 = vpop.trf.xlu0
      %v1216 = vpop.trf.xlu0
      %v1217 = vpop.trf.xlu0
      %v1218 = vpop.trf.xlu0
      %v1219 = vpop.trf.xlu0
      %v1220 = vpop.trf.xlu0
      %v1221 = vpop.trf.xlu0
      %v1222 = vpop.trf.xlu0
      %v1223 = vpack.c.bf16 %v1111, %v1111
      %v1224 = vpack.c.bf16 %v1112, %v1112
      %v1225 = vpack.c.bf16 %v1143, %v1143
      %v1226 = vpack.c.bf16 %v1144, %v1144
      %v1227 = vpack.c.bf16 %v1175, %v1175
      %v1228 = vpack.c.bf16 %v1176, %v1176
      %v1229 = vpack.c.bf16 %v1207, %v1207
      %v1230 = vpack.c.bf16 %v1208, %v1208
      %1231 = vxpose.xlu0.b32.start [1/16] %v1082, 128
      %1232 = vxpose.xlu0.b32.cont [2/16] 0.0, 128
      %1233 = vxpose.xlu0.b32.cont [3/16] 0.0, 128
      %1234 = vxpose.xlu0.b32.cont [4/16] 0.0, 128
      %1235 = vxpose.xlu0.b32.cont [5/16] 0.0, 128
      %1236 = vxpose.xlu0.b32.cont [6/16] 0.0, 128
      %1237 = vxpose.xlu0.b32.cont [7/16] 0.0, 128
      %1238 = vxpose.xlu0.b32.cont [8/16] 0.0, 128
      %1239 = vxpose.xlu0.b32.cont [9/16] 0.0, 128
      %1240 = vxpose.xlu0.b32.cont [10/16] 0.0, 128
      %1241 = vxpose.xlu0.b32.cont [11/16] 0.0, 128
      %1242 = vxpose.xlu0.b32.cont [12/16] 0.0, 128
      %1243 = vxpose.xlu0.b32.cont [13/16] 0.0, 128
      %1244 = vxpose.xlu0.b32.cont [14/16] 0.0, 128
      %1245 = vxpose.xlu0.b32.cont [15/16] 0.0, 128
      %1246 = vxpose.xlu0.b32.end [16/16] 0.0, 128
      %v1247 = vpop.trf.xlu0
      %v1248 = vpop.trf.xlu0
      %v1249 = vpop.trf.xlu0
      %v1250 = vpop.trf.xlu0
      %v1251 = vpop.trf.xlu0
      %v1252 = vpop.trf.xlu0
      %v1253 = vpop.trf.xlu0
      %v1254 = vpop.trf.xlu0
      %v1255 = vpop.trf.xlu0
      %v1256 = vpop.trf.xlu0
      %v1257 = vpop.trf.xlu0
      %v1258 = vpop.trf.xlu0
      %v1259 = vpop.trf.xlu0
      %v1260 = vpop.trf.xlu0
      %v1261 = vpop.trf.xlu0
      %v1262 = vpop.trf.xlu0
      %1263 = vxpose.xlu0.b32.start [1/16] %v1084, 128
      %1264 = vxpose.xlu0.b32.cont [2/16] 0.0, 128
      %1265 = vxpose.xlu0.b32.cont [3/16] 0.0, 128
      %1266 = vxpose.xlu0.b32.cont [4/16] 0.0, 128
      %1267 = vxpose.xlu0.b32.cont [5/16] 0.0, 128
      %1268 = vxpose.xlu0.b32.cont [6/16] 0.0, 128
      %1269 = vxpose.xlu0.b32.cont [7/16] 0.0, 128
      %1270 = vxpose.xlu0.b32.cont [8/16] 0.0, 128
      %1271 = vxpose.xlu0.b32.cont [9/16] 0.0, 128
      %1272 = vxpose.xlu0.b32.cont [10/16] 0.0, 128
      %1273 = vxpose.xlu0.b32.cont [11/16] 0.0, 128
      %1274 = vxpose.xlu0.b32.cont [12/16] 0.0, 128
      %1275 = vxpose.xlu0.b32.cont [13/16] 0.0, 128
      %1276 = vxpose.xlu0.b32.cont [14/16] 0.0, 128
      %1277 = vxpose.xlu0.b32.cont [15/16] 0.0, 128
      %1278 = vxpose.xlu0.b32.end [16/16] 0.0, 128
      %v1279 = vpop.trf.xlu0
      %v1280 = vpop.trf.xlu0
      %v1281 = vpop.trf.xlu0
      %v1282 = vpop.trf.xlu0
      %v1283 = vpop.trf.xlu0
      %v1284 = vpop.trf.xlu0
      %v1285 = vpop.trf.xlu0
      %v1286 = vpop.trf.xlu0
      %v1287 = vpop.trf.xlu0
      %v1288 = vpop.trf.xlu0
      %v1289 = vpop.trf.xlu0
      %v1290 = vpop.trf.xlu0
      %v1291 = vpop.trf.xlu0
      %v1292 = vpop.trf.xlu0
      %v1293 = vpop.trf.xlu0
      %v1294 = vpop.trf.xlu0
      %1295 = vxpose.xlu0.b32.start [1/16] %v1087, 128
      %1296 = vxpose.xlu0.b32.cont [2/16] 0.0, 128
      %1297 = vxpose.xlu0.b32.cont [3/16] 0.0, 128
      %1298 = vxpose.xlu0.b32.cont [4/16] 0.0, 128
      %1299 = vxpose.xlu0.b32.cont [5/16] 0.0, 128
      %1300 = vxpose.xlu0.b32.cont [6/16] 0.0, 128
      %1301 = vxpose.xlu0.b32.cont [7/16] 0.0, 128
      %1302 = vxpose.xlu0.b32.cont [8/16] 0.0, 128
      %1303 = vxpose.xlu0.b32.cont [9/16] 0.0, 128
      %1304 = vxpose.xlu0.b32.cont [10/16] 0.0, 128
      %1305 = vxpose.xlu0.b32.cont [11/16] 0.0, 128
      %1306 = vxpose.xlu0.b32.cont [12/16] 0.0, 128
      %1307 = vxpose.xlu0.b32.cont [13/16] 0.0, 128
      %1308 = vxpose.xlu0.b32.cont [14/16] 0.0, 128
      %1309 = vxpose.xlu0.b32.cont [15/16] 0.0, 128
      %1310 = vxpose.xlu0.b32.end [16/16] 0.0, 128
      %v1311 = vpop.trf.xlu0
      %v1312 = vpop.trf.xlu0
      %v1313 = vpop.trf.xlu0
      %v1314 = vpop.trf.xlu0
      %v1315 = vpop.trf.xlu0
      %v1316 = vpop.trf.xlu0
      %v1317 = vpop.trf.xlu0
      %v1318 = vpop.trf.xlu0
      %v1319 = vpop.trf.xlu0
      %v1320 = vpop.trf.xlu0
      %v1321 = vpop.trf.xlu0
      %v1322 = vpop.trf.xlu0
      %v1323 = vpop.trf.xlu0
      %v1324 = vpop.trf.xlu0
      %v1325 = vpop.trf.xlu0
      %v1326 = vpop.trf.xlu0
      %1327 = vxpose.xlu0.b32.start [1/16] %v1089, 128
      %1328 = vxpose.xlu0.b32.cont [2/16] 0.0, 128
      %1329 = vxpose.xlu0.b32.cont [3/16] 0.0, 128
      %1330 = vxpose.xlu0.b32.cont [4/16] 0.0, 128
      %1331 = vxpose.xlu0.b32.cont [5/16] 0.0, 128
      %1332 = vxpose.xlu0.b32.cont [6/16] 0.0, 128
      %1333 = vxpose.xlu0.b32.cont [7/16] 0.0, 128
      %1334 = vxpose.xlu0.b32.cont [8/16] 0.0, 128
      %1335 = vxpose.xlu0.b32.cont [9/16] 0.0, 128
      %1336 = vxpose.xlu0.b32.cont [10/16] 0.0, 128
      %1337 = vxpose.xlu0.b32.cont [11/16] 0.0, 128
      %1338 = vxpose.xlu0.b32.cont [12/16] 0.0, 128
      %1339 = vxpose.xlu0.b32.cont [13/16] 0.0, 128
      %1340 = vxpose.xlu0.b32.cont [14/16] 0.0, 128
      %1341 = vxpose.xlu0.b32.cont [15/16] 0.0, 128
      %1342 = vxpose.xlu0.b32.end [16/16] 0.0, 128
      %v1343 = vpop.trf.xlu0
      %v1344 = vpop.trf.xlu0
      %v1345 = vpop.trf.xlu0
      %v1346 = vpop.trf.xlu0
      %v1347 = vpop.trf.xlu0
      %v1348 = vpop.trf.xlu0
      %v1349 = vpop.trf.xlu0
      %v1350 = vpop.trf.xlu0
      %v1351 = vpop.trf.xlu0
      %v1352 = vpop.trf.xlu0
      %v1353 = vpop.trf.xlu0
      %v1354 = vpop.trf.xlu0
      %v1355 = vpop.trf.xlu0
      %v1356 = vpop.trf.xlu0
      %v1357 = vpop.trf.xlu0
      %v1358 = vpop.trf.xlu0
      %v1359 = vpack.c.bf16 %v1247, %v1247
      %v1360 = vpack.c.bf16 %v1248, %v1248
      %v1361 = vpack.c.bf16 %v1279, %v1279
      %v1362 = vpack.c.bf16 %v1280, %v1280
      %v1363 = vpack.c.bf16 %v1311, %v1311
      %v1364 = vpack.c.bf16 %v1312, %v1312
      %v1365 = vpack.c.bf16 %v1343, %v1343
      %v1366 = vpack.c.bf16 %v1344, %v1344
      %v1369 = vunpack.c.l.b16 %v1223
      %v1370 = vunpack.c.l.b16 %v1224
      %v1371 = vpack.c.b16 %v1370, %v1369
      %vm1372 = vcmask 64512
      %v1374 = vsel %vm1372, %v1371, 0
      %vm1376 = vcmask 1043456
      %v1378 = vsel %vm1376, %v1091, 0
      %1380 = vmatpush.bf16.msra.mxu0 0
      %1381 = vmatpush.bf16.msra.mxu0 0
      %1382 = vmatpush.bf16.msra.mxu0 0
      %1383 = vmatpush.bf16.msra.mxu0 0
      %1384 = vmatpush.bf16.msra.mxu0 0
      %1385 = vmatpush.bf16.msra.mxu0 0
      %1386 = vmatpush.bf16.msra.mxu0 0
      %1387 = vmatpush.bf16.msra.mxu0 %v1378
      %1388 = vmatmul.bf16.gmra.mxu0 %v1374
      %v1389 = vpop.f32.mrf.mxu0
      %v1390 = vadd.f32 0.0, %v1389
      %v1391 = vpop.f32.mrf.mxu0
      %v1392 = vadd.f32 0.0, %v1391
      %1393 = vdwg.mxu0
      %v1396 = vunpack.c.l.b16 %v1225
      %v1397 = vunpack.c.l.b16 %v1226
      %v1398 = vpack.c.b16 %v1397, %v1396
      %v1400 = vsel %vm1372, %v1398, 0
      %v1403 = vsel %vm1376, %v1092, 0
      %1405 = vmatpush.bf16.msra.mxu0 0
      %1406 = vmatpush.bf16.msra.mxu0 0
      %1407 = vmatpush.bf16.msra.mxu0 0
      %1408 = vmatpush.bf16.msra.mxu0 0
      %1409 = vmatpush.bf16.msra.mxu0 0
      %1410 = vmatpush.bf16.msra.mxu0 0
      %1411 = vmatpush.bf16.msra.mxu0 0
      %1412 = vmatpush.bf16.msra.mxu0 %v1403
      %1413 = vmatmul.bf16.gmra.mxu0 %v1400
      %v1414 = vpop.f32.mrf.mxu0
      %v1415 = vadd.f32 0.0, %v1414
      %v1416 = vpop.f32.mrf.mxu0
      %v1417 = vadd.f32 0.0, %v1416
      %1418 = vdwg.mxu0
      %v1421 = vunpack.c.l.b16 %v1227
      %v1422 = vunpack.c.l.b16 %v1228
      %v1423 = vpack.c.b16 %v1422, %v1421
      %v1425 = vsel %vm1372, %v1423, 0
      %v1428 = vsel %vm1376, %v1093, 0
      %1430 = vmatpush.bf16.msra.mxu0 0
      %1431 = vmatpush.bf16.msra.mxu0 0
      %1432 = vmatpush.bf16.msra.mxu0 0
      %1433 = vmatpush.bf16.msra.mxu0 0
      %1434 = vmatpush.bf16.msra.mxu0 0
      %1435 = vmatpush.bf16.msra.mxu0 0
      %1436 = vmatpush.bf16.msra.mxu0 0
      %1437 = vmatpush.bf16.msra.mxu0 %v1428
      %1438 = vmatmul.bf16.gmra.mxu0 %v1425
      %v1439 = vpop.f32.mrf.mxu0
      %v1440 = vadd.f32 0.0, %v1439
      %v1441 = vpop.f32.mrf.mxu0
      %v1442 = vadd.f32 0.0, %v1441
      %1443 = vdwg.mxu0
      %v1446 = vunpack.c.l.b16 %v1229
      %v1447 = vunpack.c.l.b16 %v1230
      %v1448 = vpack.c.b16 %v1447, %v1446
      %v1450 = vsel %vm1372, %v1448, 0
      %v1453 = vsel %vm1376, %v1094, 0
      %1455 = vmatpush.bf16.msra.mxu0 0
      %1456 = vmatpush.bf16.msra.mxu0 0
      %1457 = vmatpush.bf16.msra.mxu0 0
      %1458 = vmatpush.bf16.msra.mxu0 0
      %1459 = vmatpush.bf16.msra.mxu0 0
      %1460 = vmatpush.bf16.msra.mxu0 0
      %1461 = vmatpush.bf16.msra.mxu0 0
      %1462 = vmatpush.bf16.msra.mxu0 %v1453
      %1463 = vmatmul.bf16.gmra.mxu0 %v1450
      %v1464 = vpop.f32.mrf.mxu0
      %v1465 = vadd.f32 0.0, %v1464
      %v1466 = vpop.f32.mrf.mxu0
      %v1467 = vadd.f32 0.0, %v1466
      %1468 = vdwg.mxu0
      %vm1469 = vcmask 130048
      %v1470 = vsel %vm1469, %v1390, -inf
      %1471 = vmax.xlane.f32.xlu0 %v1470
      %v1472 = vpop.xlane.xlu0 %1471
      %v1473 = vsel %vm1469, %v1392, -inf
      %1474 = vmax.xlane.f32.xlu0 %v1473
      %v1475 = vpop.xlane.xlu0 %1474
      %v1476 = vsel %vm1469, %v1415, -inf
      %1477 = vmax.xlane.f32.xlu0 %v1476
      %v1478 = vpop.xlane.xlu0 %1477
      %v1479 = vsel %vm1469, %v1417, -inf
      %1480 = vmax.xlane.f32.xlu0 %v1479
      %v1481 = vpop.xlane.xlu0 %1480
      %v1482 = vsel %vm1469, %v1440, -inf
      %1483 = vmax.xlane.f32.xlu0 %v1482
      %v1484 = vpop.xlane.xlu0 %1483
      %v1485 = vsel %vm1469, %v1442, -inf
      %1486 = vmax.xlane.f32.xlu0 %v1485
      %v1487 = vpop.xlane.xlu0 %1486
      %v1488 = vsel %vm1469, %v1465, -inf
      %1489 = vmax.xlane.f32.xlu0 %v1488
      %v1490 = vpop.xlane.xlu0 %1489
      %v1491 = vsel %vm1469, %v1467, -inf
      %1492 = vmax.xlane.f32.xlu0 %v1491
      %v1493 = vpop.xlane.xlu0 %1492
      %v1494 = vsub.f32 %v1390, %v1472
      %v1495 = vsub.f32 %v1392, %v1475
      %v1496 = vsub.f32 %v1415, %v1478
      %v1497 = vsub.f32 %v1417, %v1481
      %v1498 = vsub.f32 %v1440, %v1484
      %v1499 = vsub.f32 %v1442, %v1487
      %v1500 = vsub.f32 %v1465, %v1490
      %v1501 = vsub.f32 %v1467, %v1493
      %v1502 = vmul.f32 %v1494, 1.442695
      %v1503 = vpow.pop %v1502
      %v1504 = vmul.f32 %v1495, 1.442695
      %v1505 = vpow.pop %v1504
      %v1506 = vmul.f32 %v1496, 1.442695
      %v1507 = vpow.pop %v1506
      %v1508 = vmul.f32 %v1497, 1.442695
      %v1509 = vpow.pop %v1508
      %v1510 = vmul.f32 %v1498, 1.442695
      %v1511 = vpow.pop %v1510
      %v1512 = vmul.f32 %v1499, 1.442695
      %v1513 = vpow.pop %v1512
      %v1514 = vmul.f32 %v1500, 1.442695
      %v1515 = vpow.pop %v1514
      %v1516 = vmul.f32 %v1501, 1.442695
      %v1517 = vpow.pop %v1516
      %v1518 = vsel %vm1469, %v1503, 0.0
      %1519 = vadd.xlane.f32.xlu0 %v1518
      %v1520 = vpop.xlane.xlu0 %1519
      %v1521 = vsel %vm1469, %v1505, 0.0
      %1522 = vadd.xlane.f32.xlu0 %v1521
      %v1523 = vpop.xlane.xlu0 %1522
      %v1524 = vsel %vm1469, %v1507, 0.0
      %1525 = vadd.xlane.f32.xlu0 %v1524
      %v1526 = vpop.xlane.xlu0 %1525
      %v1527 = vsel %vm1469, %v1509, 0.0
      %1528 = vadd.xlane.f32.xlu0 %v1527
      %v1529 = vpop.xlane.xlu0 %1528
      %v1530 = vsel %vm1469, %v1511, 0.0
      %1531 = vadd.xlane.f32.xlu0 %v1530
      %v1532 = vpop.xlane.xlu0 %1531
      %v1533 = vsel %vm1469, %v1513, 0.0
      %1534 = vadd.xlane.f32.xlu0 %v1533
      %v1535 = vpop.xlane.xlu0 %1534
      %v1536 = vsel %vm1469, %v1515, 0.0
      %1537 = vadd.xlane.f32.xlu0 %v1536
      %v1538 = vpop.xlane.xlu0 %1537
      %v1539 = vsel %vm1469, %v1517, 0.0
      %1540 = vadd.xlane.f32.xlu0 %v1539
      %v1541 = vpop.xlane.xlu0 %1540
      %v1542 = vrcp.pop %v1520
      %v1543 = vrcp.pop %v1523
      %v1544 = vrcp.pop %v1526
      %v1545 = vrcp.pop %v1529
      %v1546 = vrcp.pop %v1532
      %v1547 = vrcp.pop %v1535
      %v1548 = vrcp.pop %v1538
      %v1549 = vrcp.pop %v1541
      %v1550 = vpack.c.bf16 %v1503, %v1503
      %v1551 = vpack.c.bf16 %v1505, %v1505
      %v1552 = vpack.c.bf16 %v1507, %v1507
      %v1553 = vpack.c.bf16 %v1509, %v1509
      %v1554 = vpack.c.bf16 %v1511, %v1511
      %v1555 = vpack.c.bf16 %v1513, %v1513
      %v1556 = vpack.c.bf16 %v1515, %v1515
      %v1557 = vpack.c.bf16 %v1517, %v1517
      %v1560 = vunpack.c.l.b16 %v1550
      %v1561 = vunpack.c.l.b16 %v1551
      %v1562 = vpack.c.b16 %v1561, %v1560
      %v1565 = vunpack.c.l.b16 %v1359
      %v1566 = vunpack.c.l.b16 %v1360
      %v1567 = vpack.c.b16 %v1566, %v1565
      %v1570 = vsel %vm1469, %v1562, 0
      %1572 = vmatpush.bf16.msra.mxu0 0
      %1573 = vmatpush.bf16.msra.mxu0 0
      %1574 = vmatpush.bf16.msra.mxu0 0
      %1575 = vmatpush.bf16.msra.mxu0 0
      %1576 = vmatpush.bf16.msra.mxu0 0
      %1577 = vmatpush.bf16.msra.mxu0 0
      %1578 = vmatpush.bf16.msra.mxu0 0
      %1579 = vmatpush.bf16.msra.mxu0 %v1567
      %1580 = vmatmul.bf16.gmra.mxu0 %v1570
      %v1581 = vpop.f32.mrf.mxu0
      %v1582 = vadd.f32 0.0, %v1581
      %v1583 = vpop.f32.mrf.mxu0
      %v1584 = vadd.f32 0.0, %v1583
      %1585 = vdwg.mxu0
      %v1588 = vunpack.c.l.b16 %v1552
      %v1589 = vunpack.c.l.b16 %v1553
      %v1590 = vpack.c.b16 %v1589, %v1588
      %v1593 = vunpack.c.l.b16 %v1361
      %v1594 = vunpack.c.l.b16 %v1362
      %v1595 = vpack.c.b16 %v1594, %v1593
      %v1598 = vsel %vm1469, %v1590, 0
      %1600 = vmatpush.bf16.msra.mxu0 0
      %1601 = vmatpush.bf16.msra.mxu0 0
      %1602 = vmatpush.bf16.msra.mxu0 0
      %1603 = vmatpush.bf16.msra.mxu0 0
      %1604 = vmatpush.bf16.msra.mxu0 0
      %1605 = vmatpush.bf16.msra.mxu0 0
      %1606 = vmatpush.bf16.msra.mxu0 0
      %1607 = vmatpush.bf16.msra.mxu0 %v1595
      %1608 = vmatmul.bf16.gmra.mxu0 %v1598
      %v1609 = vpop.f32.mrf.mxu0
      %v1610 = vadd.f32 0.0, %v1609
      %v1611 = vpop.f32.mrf.mxu0
      %v1612 = vadd.f32 0.0, %v1611
      %1613 = vdwg.mxu0
      %v1616 = vunpack.c.l.b16 %v1554
      %v1617 = vunpack.c.l.b16 %v1555
      %v1618 = vpack.c.b16 %v1617, %v1616
      %v1621 = vunpack.c.l.b16 %v1363
      %v1622 = vunpack.c.l.b16 %v1364
      %v1623 = vpack.c.b16 %v1622, %v1621
      %v1626 = vsel %vm1469, %v1618, 0
      %1628 = vmatpush.bf16.msra.mxu0 0
      %1629 = vmatpush.bf16.msra.mxu0 0
      %1630 = vmatpush.bf16.msra.mxu0 0
      %1631 = vmatpush.bf16.msra.mxu0 0
      %1632 = vmatpush.bf16.msra.mxu0 0
      %1633 = vmatpush.bf16.msra.mxu0 0
      %1634 = vmatpush.bf16.msra.mxu0 0
      %1635 = vmatpush.bf16.msra.mxu0 %v1623
      %1636 = vmatmul.bf16.gmra.mxu0 %v1626
      %v1637 = vpop.f32.mrf.mxu0
      %v1638 = vadd.f32 0.0, %v1637
      %v1639 = vpop.f32.mrf.mxu0
      %v1640 = vadd.f32 0.0, %v1639
      %1641 = vdwg.mxu0
      %v1644 = vunpack.c.l.b16 %v1556
      %v1645 = vunpack.c.l.b16 %v1557
      %v1646 = vpack.c.b16 %v1645, %v1644
      %v1649 = vunpack.c.l.b16 %v1365
      %v1650 = vunpack.c.l.b16 %v1366
      %v1651 = vpack.c.b16 %v1650, %v1649
      %v1654 = vsel %vm1469, %v1646, 0
      %1656 = vmatpush.bf16.msra.mxu0 0
      %1657 = vmatpush.bf16.msra.mxu0 0
      %1658 = vmatpush.bf16.msra.mxu0 0
      %1659 = vmatpush.bf16.msra.mxu0 0
      %1660 = vmatpush.bf16.msra.mxu0 0
      %1661 = vmatpush.bf16.msra.mxu0 0
      %1662 = vmatpush.bf16.msra.mxu0 0
      %1663 = vmatpush.bf16.msra.mxu0 %v1651
      %1664 = vmatmul.bf16.gmra.mxu0 %v1654
      %v1665 = vpop.f32.mrf.mxu0
      %v1666 = vadd.f32 0.0, %v1665
      %v1667 = vpop.f32.mrf.mxu0
      %v1668 = vadd.f32 0.0, %v1667
      %1669 = vdwg.mxu0
      %v1670 = vmul.f32 %v1582, %v1542
      %v1671 = vmul.f32 %v1584, %v1543
      %v1672 = vmul.f32 %v1610, %v1544
      %v1673 = vmul.f32 %v1612, %v1545
      %v1674 = vmul.f32 %v1638, %v1546
      %v1675 = vmul.f32 %v1640, %v1547
      %v1676 = vmul.f32 %v1666, %v1548
      %v1677 = vmul.f32 %v1668, %v1549
      %1678 = vxpose.xlu0.b32.start [1/16] %v1670, 128
      %1679 = vxpose.xlu0.b32.cont [2/16] %v1671, 128
      %1680 = vxpose.xlu0.b32.cont [3/16] 0.0, 128
      %1681 = vxpose.xlu0.b32.cont [4/16] 0.0, 128
      %1682 = vxpose.xlu0.b32.cont [5/16] 0.0, 128
      %1683 = vxpose.xlu0.b32.cont [6/16] 0.0, 128
      %1684 = vxpose.xlu0.b32.cont [7/16] 0.0, 128
      %1685 = vxpose.xlu0.b32.cont [8/16] 0.0, 128
      %1686 = vxpose.xlu0.b32.cont [9/16] 0.0, 128
      %1687 = vxpose.xlu0.b32.cont [10/16] 0.0, 128
      %1688 = vxpose.xlu0.b32.cont [11/16] 0.0, 128
      %1689 = vxpose.xlu0.b32.cont [12/16] 0.0, 128
      %1690 = vxpose.xlu0.b32.cont [13/16] 0.0, 128
      %1691 = vxpose.xlu0.b32.cont [14/16] 0.0, 128
      %1692 = vxpose.xlu0.b32.cont [15/16] 0.0, 128
      %1693 = vxpose.xlu0.b32.end [16/16] 0.0, 128
      %v1694 = vpop.trf.xlu0
      %v1695 = vpop.trf.xlu0
      %v1696 = vpop.trf.xlu0
      %v1697 = vpop.trf.xlu0
      %v1698 = vpop.trf.xlu0
      %v1699 = vpop.trf.xlu0
      %v1700 = vpop.trf.xlu0
      %v1701 = vpop.trf.xlu0
      %v1702 = vpop.trf.xlu0
      %v1703 = vpop.trf.xlu0
      %v1704 = vpop.trf.xlu0
      %v1705 = vpop.trf.xlu0
      %v1706 = vpop.trf.xlu0
      %v1707 = vpop.trf.xlu0
      %v1708 = vpop.trf.xlu0
      %v1709 = vpop.trf.xlu0
      %1710 = vxpose.xlu0.b32.start [1/16] %v1672, 128
      %1711 = vxpose.xlu0.b32.cont [2/16] %v1673, 128
      %1712 = vxpose.xlu0.b32.cont [3/16] 0.0, 128
      %1713 = vxpose.xlu0.b32.cont [4/16] 0.0, 128
      %1714 = vxpose.xlu0.b32.cont [5/16] 0.0, 128
      %1715 = vxpose.xlu0.b32.cont [6/16] 0.0, 128
      %1716 = vxpose.xlu0.b32.cont [7/16] 0.0, 128
      %1717 = vxpose.xlu0.b32.cont [8/16] 0.0, 128
      %1718 = vxpose.xlu0.b32.cont [9/16] 0.0, 128
      %1719 = vxpose.xlu0.b32.cont [10/16] 0.0, 128
      %1720 = vxpose.xlu0.b32.cont [11/16] 0.0, 128
      %1721 = vxpose.xlu0.b32.cont [12/16] 0.0, 128
      %1722 = vxpose.xlu0.b32.cont [13/16] 0.0, 128
      %1723 = vxpose.xlu0.b32.cont [14/16] 0.0, 128
      %1724 = vxpose.xlu0.b32.cont [15/16] 0.0, 128
      %1725 = vxpose.xlu0.b32.end [16/16] 0.0, 128
      %v1726 = vpop.trf.xlu0
      %v1727 = vpop.trf.xlu0
      %v1728 = vpop.trf.xlu0
      %v1729 = vpop.trf.xlu0
      %v1730 = vpop.trf.xlu0
      %v1731 = vpop.trf.xlu0
      %v1732 = vpop.trf.xlu0
      %v1733 = vpop.trf.xlu0
      %v1734 = vpop.trf.xlu0
      %v1735 = vpop.trf.xlu0
      %v1736 = vpop.trf.xlu0
      %v1737 = vpop.trf.xlu0
      %v1738 = vpop.trf.xlu0
      %v1739 = vpop.trf.xlu0
      %v1740 = vpop.trf.xlu0
      %v1741 = vpop.trf.xlu0
      %1742 = vxpose.xlu0.b32.start [1/16] %v1674, 128
      %1743 = vxpose.xlu0.b32.cont [2/16] %v1675, 128
      %1744 = vxpose.xlu0.b32.cont [3/16] 0.0, 128
      %1745 = vxpose.xlu0.b32.cont [4/16] 0.0, 128
      %1746 = vxpose.xlu0.b32.cont [5/16] 0.0, 128
      %1747 = vxpose.xlu0.b32.cont [6/16] 0.0, 128
      %1748 = vxpose.xlu0.b32.cont [7/16] 0.0, 128
      %1749 = vxpose.xlu0.b32.cont [8/16] 0.0, 128
      %1750 = vxpose.xlu0.b32.cont [9/16] 0.0, 128
      %1751 = vxpose.xlu0.b32.cont [10/16] 0.0, 128
      %1752 = vxpose.xlu0.b32.cont [11/16] 0.0, 128
      %1753 = vxpose.xlu0.b32.cont [12/16] 0.0, 128
      %1754 = vxpose.xlu0.b32.cont [13/16] 0.0, 128
      %1755 = vxpose.xlu0.b32.cont [14/16] 0.0, 128
      %1756 = vxpose.xlu0.b32.cont [15/16] 0.0, 128
      %1757 = vxpose.xlu0.b32.end [16/16] 0.0, 128
      %v1758 = vpop.trf.xlu0
      %v1759 = vpop.trf.xlu0
      %v1760 = vpop.trf.xlu0
      %v1761 = vpop.trf.xlu0
      %v1762 = vpop.trf.xlu0
      %v1763 = vpop.trf.xlu0
      %v1764 = vpop.trf.xlu0
      %v1765 = vpop.trf.xlu0
      %v1766 = vpop.trf.xlu0
      %v1767 = vpop.trf.xlu0
      %v1768 = vpop.trf.xlu0
      %v1769 = vpop.trf.xlu0
      %v1770 = vpop.trf.xlu0
      %v1771 = vpop.trf.xlu0
      %v1772 = vpop.trf.xlu0
      %v1773 = vpop.trf.xlu0
      %1774 = vxpose.xlu0.b32.start [1/16] %v1676, 128
      %1775 = vxpose.xlu0.b32.cont [2/16] %v1677, 128
      %1776 = vxpose.xlu0.b32.cont [3/16] 0.0, 128
      %1777 = vxpose.xlu0.b32.cont [4/16] 0.0, 128
      %1778 = vxpose.xlu0.b32.cont [5/16] 0.0, 128
      %1779 = vxpose.xlu0.b32.cont [6/16] 0.0, 128
      %1780 = vxpose.xlu0.b32.cont [7/16] 0.0, 128
      %1781 = vxpose.xlu0.b32.cont [8/16] 0.0, 128
      %1782 = vxpose.xlu0.b32.cont [9/16] 0.0, 128
      %1783 = vxpose.xlu0.b32.cont [10/16] 0.0, 128
      %1784 = vxpose.xlu0.b32.cont [11/16] 0.0, 128
      %1785 = vxpose.xlu0.b32.cont [12/16] 0.0, 128
      %1786 = vxpose.xlu0.b32.cont [13/16] 0.0, 128
      %1787 = vxpose.xlu0.b32.cont [14/16] 0.0, 128
      %1788 = vxpose.xlu0.b32.cont [15/16] 0.0, 128
      %1789 = vxpose.xlu0.b32.end [16/16] 0.0, 128
      %v1790 = vpop.trf.xlu0
      %v1791 = vpop.trf.xlu0
      %v1792 = vpop.trf.xlu0
      %v1793 = vpop.trf.xlu0
      %v1794 = vpop.trf.xlu0
      %v1795 = vpop.trf.xlu0
      %v1796 = vpop.trf.xlu0
      %v1797 = vpop.trf.xlu0
      %v1798 = vpop.trf.xlu0
      %v1799 = vpop.trf.xlu0
      %v1800 = vpop.trf.xlu0
      %v1801 = vpop.trf.xlu0
      %v1802 = vpop.trf.xlu0
      %v1803 = vpop.trf.xlu0
      %v1804 = vpop.trf.xlu0
      %v1805 = vpop.trf.xlu0
      %v1806 = vld [vmem:[%s644] sm:$0xf]
      %v1807 = vld [vmem:[%s644 + $0x4] sm:$0xf]
      %v1808 = vld [vmem:[%s644 + $0x8] sm:$0xf]
      %v1809 = vld [vmem:[%s644 + $0xc] sm:$0xf]
      %v1810 = vpack.c.bf16 %v1726, %v1694
      %v1811 = vpack.c.bf16 %v1790, %v1758
      %v1812 = vld [vmem:[%s649] sm:$0xff]
      %v1813 = vld [vmem:[%s649 + $0x8] sm:$0xff]
      %v1814 = vld [vmem:[%s649 + $0x10] sm:$0xff]
      %v1815 = vld [vmem:[%s649 + $0x18] sm:$0xff]
      %1817 = vset.pattern.permute.xlu0 0
      %1818 = vperm.xlu0 %1817, %v1812
      %v1819 = vpop.permute.xlu0 %1818
      %1822 = vset.pattern.permute.xlu0 0
      %1823 = vperm.xlu0 %1822, %v1813
      %v1824 = vpop.permute.xlu0 %1823
      %1827 = vset.pattern.permute.xlu0 0
      %1828 = vperm.xlu0 %1827, %v1814
      %v1829 = vpop.permute.xlu0 %1828
      %1832 = vset.pattern.permute.xlu0 0
      %1833 = vperm.xlu0 %1832, %v1815
      %v1834 = vpop.permute.xlu0 %1833
      %v1840 = vunpack.c.l.b16 %v1806
      %v1841 = vunpack.c.l.b16 %v1807
      %v1842 = vunpack.c.l.b16 %v1808
      %v1843 = vunpack.c.l.b16 %v1809
      %v1844 = vpack.c.b16 %v1841, %v1840
      %v1845 = vpack.c.b16 %v1843, %v1842
      %v1847 = vsel %vm939, %v1844, 0
      %v1850 = vsel %vm939, %v1845, 0
      %1852 = vmatpush.bf16.msra.mxu0 0
      %1853 = vmatpush.bf16.msra.mxu0 0
      %1854 = vmatpush.bf16.msra.mxu0 0
      %1855 = vmatpush.bf16.msra.mxu0 0
      %1856 = vmatpush.bf16.msra.mxu0 0
      %1857 = vmatpush.bf16.msra.mxu0 0
      %1858 = vmatpush.bf16.msra.mxu0 %v1811
      %1859 = vmatpush.bf16.msra.mxu0 %v1810
      %1860 = vmatmul.bf16.gmra.mxu0 %v1847
      %v1861 = vpop.f32.mrf.mxu0
      %v1862 = vadd.f32 %v1819, %v1861
      %v1863 = vpop.f32.mrf.mxu0
      %v1864 = vadd.f32 %v1824, %v1863
      %1865 = vmatmul.bf16.gmra.mxu0 %v1850
      %v1866 = vpop.f32.mrf.mxu0
      %v1867 = vadd.f32 %v1829, %v1866
      %v1868 = vpop.f32.mrf.mxu0
      %v1869 = vadd.f32 %v1834, %v1868
      %1870 = vdwg.mxu0
      %v1871 = vadd.f32 %v1862, %v895
      %v1872 = vadd.f32 %v1864, %v896
      %v1873 = vadd.f32 %v1867, %v897
      %v1874 = vadd.f32 %v1869, %v898
      %v1875 = vld [vmem:[%s654] sm:$0xf]
      %v1876 = vld [vmem:[%s654 + $0x4] sm:$0xf]
      %v1877 = vld [vmem:[%s654 + $0x8] sm:$0xf]
      %v1878 = vld [vmem:[%s654 + $0xc] sm:$0xf]
      %v1879 = vpack.c.bf16 %v1872, %v1871
      %v1880 = vpack.c.bf16 %v1874, %v1873
      %v1885 = vunpack.c.l.b16 %v1875
      %v1886 = vunpack.c.l.b16 %v1876
      %v1887 = vunpack.c.l.b16 %v1877
      %v1888 = vunpack.c.l.b16 %v1878
      %v1889 = vpack.c.b16 %v1886, %v1885
      %v1890 = vpack.c.b16 %v1888, %v1887
      %v1892 = vsel %vm939, %v1889, 0
      %v1895 = vsel %vm939, %v1890, 0
      %1897 = vmatpush.bf16.msra.mxu0 0
      %1898 = vmatpush.bf16.msra.mxu0 0
      %1899 = vmatpush.bf16.msra.mxu0 0
      %1900 = vmatpush.bf16.msra.mxu0 0
      %1901 = vmatpush.bf16.msra.mxu0 0
      %1902 = vmatpush.bf16.msra.mxu0 0
      %1903 = vmatpush.bf16.msra.mxu0 %v1880
      %1904 = vmatpush.bf16.msra.mxu0 %v1879
      %1905 = vmatmul.bf16.gmra.mxu0 %v1892
      %v1906 = vpop.f32.mrf.mxu0
      %v1907 = vadd.f32 %v1871, %v1906
      %v1908 = vpop.f32.mrf.mxu0
      %v1909 = vadd.f32 %v1872, %v1908
      %1910 = vmatmul.bf16.gmra.mxu0 %v1895
      %v1911 = vpop.f32.mrf.mxu0
      %v1912 = vadd.f32 %v1873, %v1911
      %v1913 = vpop.f32.mrf.mxu0
      %v1914 = vadd.f32 %v1874, %v1913
      %1915 = vdwg.mxu0
      %1916 = vst.msk [vmem:[#allocation2] sm:$0xff] %vm1469, %v1907
      %1917 = vst.msk [vmem:[#allocation2 + $0x8] sm:$0xff] %vm1469, %v1909
      %1918 = vst.msk [vmem:[#allocation2 + $0x10] sm:$0xff] %vm1469, %v1912
      %1919 = vst.msk [vmem:[#allocation2 + $0x18] sm:$0xff] %vm1469, %v1914
      %p1920 = scmp.eq.s32.totalorder %s30, 1
      // Predicated region
      $region81: #{tpu_custom_call.1} parent=75 // pred_check
        %p1921 = pneg %p1920
      $region82: #{tpu_custom_call.1} parent=75 // pred_check_branch
        %1923 = sbr.rel (%p1921) target = $region84
      $region83: #{tpu_custom_call.1} parent=75 // pred_region
        %1924 = vst.msk [vmem:[%s659] sm:$0xff] %vm1469, %v1907
        %1925 = vst.msk [vmem:[%s659 + $0x8] sm:$0xff] %vm1469, %v1909
        %1926 = vst.msk [vmem:[%s659 + $0x10] sm:$0xff] %vm1469, %v1912
        %1927 = vst.msk [vmem:[%s659 + $0x18] sm:$0xff] %vm1469, %v1914
      $region84: #{tpu_custom_call.1} parent=75 // pred_fallthru
        _
      %p1928 = scmp.lt.s32.totalorder %s29, 1
      %s1929 = scalar_select %p1928, %s29, 1
      %s1930 = smul.addr %s1929, 4
      %s1931 = smul.addr %s1930, 8
      %s1932 = scalar_lea.vmem %s14, %s1931
      // Predicated region
      $region85: #{tpu_custom_call.1} parent=75 // pred_check
        %p1933 = pneg %p399
      $region86: #{tpu_custom_call.1} parent=75 // pred_check_branch
        %1935 = sbr.rel (%p1933) target = $region88
      $region87: #{tpu_custom_call.1} parent=75 // pred_region
        _
      $region88: #{tpu_custom_call.1} parent=75 // pred_fallthru
        _
    $region76: #{tpu_custom_call.1} parent=5 // pred_fallthru
      _
    %p1936 = scmp.le.s32.totalorder 2, %s20
    // Predicated region
    $region89: #{tpu_custom_call.1} parent=5 // pred_check
      %p1937 = pneg %p1936
    $region90: #{tpu_custom_call.1} parent=5 // pred_check_branch
      %1939 = sbr.rel (%p1937) target = $region92
    $region91: #{tpu_custom_call.1} parent=5 // pred_region
      %s1940 = ssub.s32 %s20, 2
      // Predicated region
      $region93: #{tpu_custom_call.1} parent=91 // pred_check
        %p1941 = pneg %p405
      $region94: #{tpu_custom_call.1} parent=91 // pred_check_branch
        %1943 = sbr.rel (%p1941) target = $region96
      $region95: #{tpu_custom_call.1} parent=91 // pred_region
        %p1944 = scmp.lt.s32.totalorder %s31, 1
        %s1945 = scalar_select %p1944, %s31, 1
        %s1946 = smul.addr %s1945, 4
        %s1947 = smul.addr %s1946, 8
        %s1948 = scalar_lea.vmem %s14, %s1947
      $region96: #{tpu_custom_call.1} parent=91 // pred_fallthru
        _
    $region92: #{tpu_custom_call.1} parent=5 // pred_fallthru
      _
  $region6: #{tpu_custom_call.1} parent=0 // loop_footer
    %s24 = sadd.s32 1, %s20
  $region7: #{tpu_custom_call.1} parent=0 // loop_footer_branch
    %19 = sbr.rel target = $region3
  $region8: #{tpu_custom_call.1} parent=0 // loop_exit
    _

</llo_original>
